<compile_context>
chip_gen: v6e
topology: v6e:2x2x1
jax: 0.10.0
libtpu: 0.0.40
codegen_flags: <defaults>
</compile_context>

<pallas_src>
import jax
import jax.numpy as jnp
from jax.experimental import pallas as pl
from jax.experimental.pallas import tpu as pltpu


# ----------------------------------------------------------------------------
# Pallas kernels
# ----------------------------------------------------------------------------
def _conv_pool_kernel(x_ref, w_ref, b_ref, o_ref):
    """Fused conv (as patches@W) + bias + 2x2 max-pool + ReLU for one M-tile.

    x_ref: (4, TM, K) bf16  -- 4 = the 2x2 pool-window phases
    w_ref: (K, 128)  bf16   -- output channels zero-padded to 128 lanes
    b_ref: (1, 128)  f32
    o_ref: (TM, 128) bf16   -- pooled + relu'd activations (lane-dense)
    """
    w = w_ref[...]
    acc = jnp.dot(x_ref[0], w, preferred_element_type=jnp.float32)
    for j in range(1, 4):  # max over the 2x2 window (bias is per-channel const)
        acc = jnp.maximum(acc, jnp.dot(x_ref[j], w,
                                       preferred_element_type=jnp.float32))
    acc = jnp.maximum(acc + b_ref[...], 0.0)
    o_ref[...] = acc.astype(o_ref.dtype)


def _fc_head_kernel(x_ref, w1_ref, b1_ref, w2_ref, b2_ref, o_ref):
    """Fused fc1(+ReLU) -> out -> log_softmax for one M-tile.

    x_ref:  (TM, 500) bf16
    w1_ref: (500, 128) bf16 (hidden zero-padded to 128)
    b1_ref: (1, 128)   f32
    w2_ref: (128, 128) bf16 (zero-padded rows/cols)
    b2_ref: (1, 128)   f32  (-1e30 in padded logit columns)
    o_ref:  (TM, 128)  f32  (log-probs; valid columns = first 10)
    """
    h = jnp.dot(x_ref[...], w1_ref[...], preferred_element_type=jnp.float32)
    h = jnp.maximum(h + b1_ref[...], 0.0)
    logits = jnp.dot(h.astype(jnp.bfloat16), w2_ref[...],
                     preferred_element_type=jnp.float32)
    logits = logits + b2_ref[...]          # padded cols -> ~-1e30 (exp -> 0)
    m = jnp.max(logits, axis=-1, keepdims=True)
    y = logits - m
    lse = jnp.log(jnp.sum(jnp.exp(y), axis=-1, keepdims=True))
    o_ref[...] = (y - lse).astype(o_ref.dtype)


# ----------------------------------------------------------------------------
# Wrappers
# ----------------------------------------------------------------------------
def _ceil_to(x, m):
    return ((x + m - 1) // m) * m


def _pooled_patches(x, k):
    """im2col combined with the 2x2/stride-2 pool phase split.

    x: (N, H, W, C) NHWC.  Returns (patches, (N, Hp, Wp)) where
    patches[j, n*Hp*Wp + h*Wp + w, :] is the (kh, kw, cin)-ordered conv patch
    at conv-output position (2h+dh, 2w+dw), j = dh*2 + dw.
    """
    N, H, W, C = x.shape
    Ho, Wo = H - k + 1, W - k + 1
    Hp, Wp = Ho // 2, Wo // 2
    phases = []
    for dh in range(2):
        for dw in range(2):
            cols = []
            for di in range(k):
                for dj in range(k):
                    r0, c0 = dh + di, dw + dj
                    cols.append(x[:, r0:r0 + 2 * Hp:2, c0:c0 + 2 * Wp:2, :])
            p = jnp.concatenate(cols, axis=-1)            # (N, Hp, Wp, k*k*C)
            phases.append(p.reshape(N * Hp * Wp, k * k * C))
    return jnp.stack(phases, axis=0), (N, Hp, Wp)


def conv_pool(x_nhwc, w, b, k):
    """Fused valid-conv(k) + bias + maxpool2 + relu.  Returns (N, Hp, Wp, 128)."""
    patches, (n, hp, wp) = _pooled_patches(x_nhwc.astype(jnp.bfloat16), k)
    M, K = patches.shape[1], patches.shape[2]
    assert w.shape == (K, 128)
    tm = min(128, _ceil_to(M, 16))
    grid = pl.cdiv(M, tm)
    out = pl.pallas_call(
        _conv_pool_kernel,
        out_shape=jax.ShapeDtypeStruct((M, 128), jnp.bfloat16),
        grid=(grid,),
        in_specs=[
            pl.BlockSpec((4, tm, K), lambda i: (0, i, 0)),
            pl.BlockSpec((K, 128), lambda i: (0, 0)),
            pl.BlockSpec((1, 128), lambda i: (0, 0)),
        ],
        out_specs=pl.BlockSpec((tm, 128), lambda i: (i, 0)),
        compiler_params=pltpu.CompilerParams(
            dimension_semantics=("parallel",)),
    )(patches, w, b)
    return out.reshape(n, hp, wp, 128)


def fc_head(x, w1, b1, w2, b2):
    """log_softmax(relu(x @ w1 + b1) @ w2 + b2)[:, :10], fused in one kernel."""
    N, K = x.shape
    tm = N if N <= 128 else 128
    grid = pl.cdiv(N, tm)
    # NOTE: at tiny batch this is a single grid step (one TC on v7x); larger
    # batches expose >=2 M-tiles automatically.
    out = pl.pallas_call(
        _fc_head_kernel,
        out_shape=jax.ShapeDtypeStruct((N, 128), jnp.float32),
        grid=(grid,),
        in_specs=[
            pl.BlockSpec((tm, K), lambda i: (i, 0)),
            pl.BlockSpec((K, 128), lambda i: (0, 0)),
            pl.BlockSpec((1, 128), lambda i: (0, 0)),
            pl.BlockSpec((128, 128), lambda i: (0, 0)),
            pl.BlockSpec((1, 128), lambda i: (0, 0)),
        ],
        out_specs=pl.BlockSpec((tm, 128), lambda i: (i, 0)),
        compiler_params=pltpu.CompilerParams(
            dimension_semantics=("parallel",)),
    )(x, w1, b1, w2, b2)
    return out[:, :10]


# ----------------------------------------------------------------------------
# Model: parameters + forward
# ----------------------------------------------------------------------------
def init_params(hidden_dim, key):
    """Deterministic synthetic parameters, shapes as in CifarConvNet.__init__,
    pre-laid-out for the fused kernels (lane-dense 128-wide outputs)."""
    assert hidden_dim <= 128
    ks = jax.random.split(key, 8)

    def w(k, shape, fan_in):
        return jax.random.normal(k, shape, jnp.float32) / jnp.sqrt(fan_in)

    conv1_w = w(ks[0], (10, 3, 5, 5), 75)       # PyTorch (Cout, Cin, kh, kw)
    conv1_b = w(ks[1], (10,), 75)
    conv2_w = w(ks[2], (20, 10, 5, 5), 250)
    conv2_b = w(ks[3], (20,), 250)
    fc1_w = w(ks[4], (hidden_dim, 500), 500)    # PyTorch (out, in)
    fc1_b = w(ks[5], (hidden_dim,), 500)
    out_w = w(ks[6], (10, hidden_dim), hidden_dim)
    out_b = w(ks[7], (10,), hidden_dim)

    def pad_cols(m, n=128):
        return jnp.pad(m, ((0, 0), (0, n - m.shape[1])))

    # conv weights -> (kh*kw*cin, cout) matching the im2col feature ordering.
    w1 = conv1_w.transpose(2, 3, 1, 0).reshape(75, 10)
    w2 = conv2_w.transpose(2, 3, 1, 0).reshape(250, 20)
    # fc1: permute input features from PyTorch's (c,h,w) flatten to our (h,w,c)
    # flatten, so no runtime NHWC->NCHW transpose is needed.
    wf = (fc1_w.reshape(hidden_dim, 20, 5, 5)
          .transpose(0, 2, 3, 1).reshape(hidden_dim, 500).T)      # (500, hidden)
    wo = out_w.T                                                  # (hidden, 10)

    bout = jnp.full((1, 128), -1e30, jnp.float32).at[0, :10].set(out_b)

    return {
        "w1": pad_cols(w1).astype(jnp.bfloat16),                  # (75, 128)
        "b1": pad_cols(conv1_b[None, :]),                         # (1, 128) f32
        "w2": pad_cols(w2).astype(jnp.bfloat16),                  # (250, 128)
        "b2": pad_cols(conv2_b[None, :]),
        "wfc1": pad_cols(wf).astype(jnp.bfloat16),                # (500, 128)
        "bfc1": pad_cols(fc1_b[None, :]),
        "wout": jnp.pad(wo, ((0, 128 - hidden_dim),
                             (0, 128 - 10))).astype(jnp.bfloat16),  # (128, 128)
        "bout": bout,                                             # (1, 128)
    }


def cifar_convnet_forward(x_nchw, params):
    """Matches CifarConvNet.forward.  x_nchw: (N, 3, 32, 32) float32."""
    x = jnp.transpose(x_nchw, (0, 2, 3, 1))                      # -> NHWC

    y = conv_pool(x, params["w1"], params["b1"], k=5)            # (N,14,14,128)
    y = conv_pool(y[..., :10], params["w2"], params["b2"], k=5)  # (N, 5, 5,128)

    n = y.shape[0]
    feats = y[..., :20].reshape(n, 500)        # (h,w,c) flatten; fc1 weight
                                               # rows were permuted at init.
    return fc_head(feats, params["wfc1"], params["bfc1"],
                   params["wout"], params["bout"])               # (N, 10) f32


# ----------------------------------------------------------------------------
if __name__ == "__main__":
    key = jax.random.PRNGKey(0)
    k_x, k_p = jax.random.split(key)

    HIDDEN_DIM = 32
    # fc1 expects 500 = 20*5*5 features, which pins the input to (N, 3, 32, 32).
    x = jax.random.normal(k_x, (2, 3, 32, 32), jnp.float32)
    params = init_params(HIDDEN_DIM, k_p)

    fwd = jax.jit(cifar_convnet_forward)
    logp = fwd(x, params)
    jax.block_until_ready(logp)

    assert logp.shape == (2, 10)
    # log-softmax rows must sum to ~1 in prob space
    assert bool(jnp.all(jnp.abs(jnp.sum(jnp.exp(logp), axis=1) - 1.0) < 1e-4))
    print("KERNEL_OK")
</pallas_src>

<mosaic_0001>
module attributes {stable_mosaic.version = 11 : i64} {
  func.func @_conv_pool_kernel(%arg0: i32, %arg1: memref<4x128x75xbf16, #tpu.memory_space<vmem>>, %arg2: memref<75x128xbf16, #tpu.memory_space<vmem>>, %arg3: memref<1x128xf32, #tpu.memory_space<vmem>>, %arg4: memref<128x128xbf16, #tpu.memory_space<vmem>>) attributes {dimension_semantics = [#tpu.dimension_semantics<parallel>], iteration_bounds = array<i64: 4>, scalar_prefetch = 0 : i64, scratch_operands = 0 : i64, tpu.core_type = #tpu.core_type<tc>, window_params = [{transform_indices = @transform_0, window_bounds = array<i64: 4, 128, 75>}, {pipeline_mode = #tpu.pipeline_mode<synchronous>, transform_indices = @transform_1, window_bounds = array<i64: 75, 128>}, {pipeline_mode = #tpu.pipeline_mode<synchronous>, transform_indices = @transform_2, window_bounds = array<i64: 1, 128>}, {transform_indices = @transform_3, window_bounds = array<i64: 128, 128>}]} {
    %c0 = arith.constant 0 : index
    %c0_0 = arith.constant 0 : index
    %0 = vector.load %arg2[%c0, %c0_0] : memref<75x128xbf16, #tpu.memory_space<vmem>>, vector<75x128xbf16>
    %c0_1 = arith.constant 0 : index
    %c0_2 = arith.constant 0 : index
    %c0_3 = arith.constant 0 : index
    %1 = vector.load %arg1[%c0_1, %c0_2, %c0_3] : memref<4x128x75xbf16, #tpu.memory_space<vmem>>, vector<1x128x75xbf16>
    %2 = vector.shape_cast %1 : vector<1x128x75xbf16> to vector<128x75xbf16>
    %cst = arith.constant dense<0.000000e+00> : vector<128x128xf32>
    %3 = tpu.matmul %2, %0, %cst {dimension_numbers = #tpu.dot_dimension_numbers<[1], [0], [0], [1], [0, 0, 1, 1], [], []>} : vector<128x75xbf16>, vector<75x128xbf16>, vector<128x128xf32> -> vector<128x128xf32>
    %c1 = arith.constant 1 : index
    %c0_4 = arith.constant 0 : index
    %c0_5 = arith.constant 0 : index
    %4 = vector.load %arg1[%c1, %c0_4, %c0_5] : memref<4x128x75xbf16, #tpu.memory_space<vmem>>, vector<1x128x75xbf16>
    %5 = vector.shape_cast %4 : vector<1x128x75xbf16> to vector<128x75xbf16>
    %cst_6 = arith.constant dense<0.000000e+00> : vector<128x128xf32>
    %6 = tpu.matmul %5, %0, %cst_6 {dimension_numbers = #tpu.dot_dimension_numbers<[1], [0], [0], [1], [0, 0, 1, 1], [], []>} : vector<128x75xbf16>, vector<75x128xbf16>, vector<128x128xf32> -> vector<128x128xf32>
    %7 = arith.maximumf %3, %6 : vector<128x128xf32>
    %c2 = arith.constant 2 : index
    %c0_7 = arith.constant 0 : index
    %c0_8 = arith.constant 0 : index
    %8 = vector.load %arg1[%c2, %c0_7, %c0_8] : memref<4x128x75xbf16, #tpu.memory_space<vmem>>, vector<1x128x75xbf16>
    %9 = vector.shape_cast %8 : vector<1x128x75xbf16> to vector<128x75xbf16>
    %cst_9 = arith.constant dense<0.000000e+00> : vector<128x128xf32>
    %10 = tpu.matmul %9, %0, %cst_9 {dimension_numbers = #tpu.dot_dimension_numbers<[1], [0], [0], [1], [0, 0, 1, 1], [], []>} : vector<128x75xbf16>, vector<75x128xbf16>, vector<128x128xf32> -> vector<128x128xf32>
    %11 = arith.maximumf %7, %10 : vector<128x128xf32>
    %c3 = arith.constant 3 : index
    %c0_10 = arith.constant 0 : index
    %c0_11 = arith.constant 0 : index
    %12 = vector.load %arg1[%c3, %c0_10, %c0_11] : memref<4x128x75xbf16, #tpu.memory_space<vmem>>, vector<1x128x75xbf16>
    %13 = vector.shape_cast %12 : vector<1x128x75xbf16> to vector<128x75xbf16>
    %cst_12 = arith.constant dense<0.000000e+00> : vector<128x128xf32>
    %14 = tpu.matmul %13, %0, %cst_12 {dimension_numbers = #tpu.dot_dimension_numbers<[1], [0], [0], [1], [0, 0, 1, 1], [], []>} : vector<128x75xbf16>, vector<75x128xbf16>, vector<128x128xf32> -> vector<128x128xf32>
    %15 = arith.maximumf %11, %14 : vector<128x128xf32>
    %c0_13 = arith.constant 0 : index
    %c0_14 = arith.constant 0 : index
    %16 = vector.load %arg3[%c0_13, %c0_14] : memref<1x128xf32, #tpu.memory_space<vmem>>, vector<1x128xf32>
    %17 = vector.broadcast %16 : vector<1x128xf32> to vector<128x128xf32>
    %18 = arith.addf %15, %17 : vector<128x128xf32>
    %cst_15 = arith.constant 0.000000e+00 : f32
    %19 = vector.broadcast %cst_15 : f32 to vector<128x128xf32>
    %20 = arith.maximumf %18, %19 : vector<128x128xf32>
    %21 = arith.truncf %20 : vector<128x128xf32> to vector<128x128xbf16>
    %c0_16 = arith.constant 0 : index
    %c0_17 = arith.constant 0 : index
    %22 = vector.load %arg4[%c0_16, %c0_17] : memref<128x128xbf16, #tpu.memory_space<vmem>>, vector<128x128xbf16>
    tpu.vector_store %arg4[%c0_16, %c0_17], %21 {strides = array<i32>} : memref<128x128xbf16, #tpu.memory_space<vmem>>, vector<128x128xbf16>,
    return
  }
  func.func @transform_0(%arg0: i32) -> (i32, i32, i32) {
    %c0_i32 = arith.constant 0 : i32
    %c0_i32_0 = arith.constant 0 : i32
    %c0_i32_1 = arith.constant 0 : i32
    return %c0_i32, %arg0, %c0_i32_0 : i32, i32, i32
  }
  func.func @transform_1(%arg0: i32) -> (i32, i32) {
    %c0_i32 = arith.constant 0 : i32
    %c0_i32_0 = arith.constant 0 : i32
    %c0_i32_1 = arith.constant 0 : i32
    return %c0_i32, %c0_i32_0 : i32, i32
  }
  func.func @transform_2(%arg0: i32) -> (i32, i32) {
    %c0_i32 = arith.constant 0 : i32
    %c0_i32_0 = arith.constant 0 : i32
    %c0_i32_1 = arith.constant 0 : i32
    return %c0_i32, %c0_i32_0 : i32, i32
  }
  func.func @transform_3(%arg0: i32) -> (i32, i32) {
    %c0_i32 = arith.constant 0 : i32
    %c0_i32_0 = arith.constant 0 : i32
    return %arg0, %c0_i32 : i32, i32
  }
}

module attributes {stable_mosaic.version = 11 : i64} {
  func.func @_conv_pool_kernel(%arg0: i32, %arg1: memref<4x64x250xbf16, #tpu.memory_space<vmem>>, %arg2: memref<250x128xbf16, #tpu.memory_space<vmem>>, %arg3: memref<1x128xf32, #tpu.memory_space<vmem>>, %arg4: memref<64x128xbf16, #tpu.memory_space<vmem>>) attributes {dimension_semantics = [#tpu.dimension_semantics<parallel>], iteration_bounds = array<i64: 1>, scalar_prefetch = 0 : i64, scratch_operands = 0 : i64, tpu.core_type = #tpu.core_type<tc>, window_params = [{transform_indices = @transform_0, window_bounds = array<i64: 4, 64, 250>}, {pipeline_mode = #tpu.pipeline_mode<synchronous>, transform_indices = @transform_1, window_bounds = array<i64: 250, 128>}, {pipeline_mode = #tpu.pipeline_mode<synchronous>, transform_indices = @transform_2, window_bounds = array<i64: 1, 128>}, {transform_indices = @transform_3, window_bounds = array<i64: 64, 128>}]} {
    %c0 = arith.constant 0 : index
    %c0_0 = arith.constant 0 : index
    %0 = vector.load %arg2[%c0, %c0_0] : memref<250x128xbf16, #tpu.memory_space<vmem>>, vector<250x128xbf16>
    %c0_1 = arith.constant 0 : index
    %c0_2 = arith.constant 0 : index
    %c0_3 = arith.constant 0 : index
    %1 = vector.load %arg1[%c0_1, %c0_2, %c0_3] : memref<4x64x250xbf16, #tpu.memory_space<vmem>>, vector<1x64x250xbf16>
    %2 = vector.shape_cast %1 : vector<1x64x250xbf16> to vector<64x250xbf16>
    %cst = arith.constant dense<0.000000e+00> : vector<64x128xf32>
    %3 = tpu.matmul %2, %0, %cst {dimension_numbers = #tpu.dot_dimension_numbers<[1], [0], [0], [1], [0, 0, 1, 1], [], []>} : vector<64x250xbf16>, vector<250x128xbf16>, vector<64x128xf32> -> vector<64x128xf32>
    %c1 = arith.constant 1 : index
    %c0_4 = arith.constant 0 : index
    %c0_5 = arith.constant 0 : index
    %4 = vector.load %arg1[%c1, %c0_4, %c0_5] : memref<4x64x250xbf16, #tpu.memory_space<vmem>>, vector<1x64x250xbf16>
    %5 = vector.shape_cast %4 : vector<1x64x250xbf16> to vector<64x250xbf16>
    %cst_6 = arith.constant dense<0.000000e+00> : vector<64x128xf32>
    %6 = tpu.matmul %5, %0, %cst_6 {dimension_numbers = #tpu.dot_dimension_numbers<[1], [0], [0], [1], [0, 0, 1, 1], [], []>} : vector<64x250xbf16>, vector<250x128xbf16>, vector<64x128xf32> -> vector<64x128xf32>
    %7 = arith.maximumf %3, %6 : vector<64x128xf32>
    %c2 = arith.constant 2 : index
    %c0_7 = arith.constant 0 : index
    %c0_8 = arith.constant 0 : index
    %8 = vector.load %arg1[%c2, %c0_7, %c0_8] : memref<4x64x250xbf16, #tpu.memory_space<vmem>>, vector<1x64x250xbf16>
    %9 = vector.shape_cast %8 : vector<1x64x250xbf16> to vector<64x250xbf16>
    %cst_9 = arith.constant dense<0.000000e+00> : vector<64x128xf32>
    %10 = tpu.matmul %9, %0, %cst_9 {dimension_numbers = #tpu.dot_dimension_numbers<[1], [0], [0], [1], [0, 0, 1, 1], [], []>} : vector<64x250xbf16>, vector<250x128xbf16>, vector<64x128xf32> -> vector<64x128xf32>
    %11 = arith.maximumf %7, %10 : vector<64x128xf32>
    %c3 = arith.constant 3 : index
    %c0_10 = arith.constant 0 : index
    %c0_11 = arith.constant 0 : index
    %12 = vector.load %arg1[%c3, %c0_10, %c0_11] : memref<4x64x250xbf16, #tpu.memory_space<vmem>>, vector<1x64x250xbf16>
    %13 = vector.shape_cast %12 : vector<1x64x250xbf16> to vector<64x250xbf16>
    %cst_12 = arith.constant dense<0.000000e+00> : vector<64x128xf32>
    %14 = tpu.matmul %13, %0, %cst_12 {dimension_numbers = #tpu.dot_dimension_numbers<[1], [0], [0], [1], [0, 0, 1, 1], [], []>} : vector<64x250xbf16>, vector<250x128xbf16>, vector<64x128xf32> -> vector<64x128xf32>
    %15 = arith.maximumf %11, %14 : vector<64x128xf32>
    %c0_13 = arith.constant 0 : index
    %c0_14 = arith.constant 0 : index
    %16 = vector.load %arg3[%c0_13, %c0_14] : memref<1x128xf32, #tpu.memory_space<vmem>>, vector<1x128xf32>
    %17 = vector.broadcast %16 : vector<1x128xf32> to vector<64x128xf32>
    %18 = arith.addf %15, %17 : vector<64x128xf32>
    %cst_15 = arith.constant 0.000000e+00 : f32
    %19 = vector.broadcast %cst_15 : f32 to vector<64x128xf32>
    %20 = arith.maximumf %18, %19 : vector<64x128xf32>
    %21 = arith.truncf %20 : vector<64x128xf32> to vector<64x128xbf16>
    %c0_16 = arith.constant 0 : index
    %c0_17 = arith.constant 0 : index
    %22 = vector.load %arg4[%c0_16, %c0_17] : memref<64x128xbf16, #tpu.memory_space<vmem>>, vector<64x128xbf16>
    tpu.vector_store %arg4[%c0_16, %c0_17], %21 {strides = array<i32>} : memref<64x128xbf16, #tpu.memory_space<vmem>>, vector<64x128xbf16>,
    return
  }
  func.func @transform_0(%arg0: i32) -> (i32, i32, i32) {
    %c0_i32 = arith.constant 0 : i32
    %c0_i32_0 = arith.constant 0 : i32
    %c0_i32_1 = arith.constant 0 : i32
    return %c0_i32, %arg0, %c0_i32_0 : i32, i32, i32
  }
  func.func @transform_1(%arg0: i32) -> (i32, i32) {
    %c0_i32 = arith.constant 0 : i32
    %c0_i32_0 = arith.constant 0 : i32
    %c0_i32_1 = arith.constant 0 : i32
    return %c0_i32, %c0_i32_0 : i32, i32
  }
  func.func @transform_2(%arg0: i32) -> (i32, i32) {
    %c0_i32 = arith.constant 0 : i32
    %c0_i32_0 = arith.constant 0 : i32
    %c0_i32_1 = arith.constant 0 : i32
    return %c0_i32, %c0_i32_0 : i32, i32
  }
  func.func @transform_3(%arg0: i32) -> (i32, i32) {
    %c0_i32 = arith.constant 0 : i32
    %c0_i32_0 = arith.constant 0 : i32
    return %arg0, %c0_i32 : i32, i32
  }
}

module attributes {stable_mosaic.version = 11 : i64} {
  func.func @_fc_head_kernel(%arg0: i32, %arg1: memref<2x500xbf16, #tpu.memory_space<vmem>>, %arg2: memref<500x128xbf16, #tpu.memory_space<vmem>>, %arg3: memref<1x128xf32, #tpu.memory_space<vmem>>, %arg4: memref<128x128xbf16, #tpu.memory_space<vmem>>, %arg5: memref<1x128xf32, #tpu.memory_space<vmem>>, %arg6: memref<2x128xf32, #tpu.memory_space<vmem>>) attributes {dimension_semantics = [#tpu.dimension_semantics<parallel>], iteration_bounds = array<i64: 1>, scalar_prefetch = 0 : i64, scratch_operands = 0 : i64, tpu.core_type = #tpu.core_type<tc>, window_params = [{transform_indices = @transform_0, window_bounds = array<i64: 2, 500>}, {pipeline_mode = #tpu.pipeline_mode<synchronous>, transform_indices = @transform_1, window_bounds = array<i64: 500, 128>}, {pipeline_mode = #tpu.pipeline_mode<synchronous>, transform_indices = @transform_2, window_bounds = array<i64: 1, 128>}, {pipeline_mode = #tpu.pipeline_mode<synchronous>, transform_indices = @transform_3, window_bounds = array<i64: 128, 128>}, {pipeline_mode = #tpu.pipeline_mode<synchronous>, transform_indices = @transform_4, window_bounds = array<i64: 1, 128>}, {transform_indices = @transform_5, window_bounds = array<i64: 2, 128>}]} {
    %c0 = arith.constant 0 : index
    %c0_0 = arith.constant 0 : index
    %0 = vector.load %arg1[%c0, %c0_0] : memref<2x500xbf16, #tpu.memory_space<vmem>>, vector<2x500xbf16>
    %c0_1 = arith.constant 0 : index
    %c0_2 = arith.constant 0 : index
    %1 = vector.load %arg2[%c0_1, %c0_2] : memref<500x128xbf16, #tpu.memory_space<vmem>>, vector<500x128xbf16>
    %cst = arith.constant dense<0.000000e+00> : vector<2x128xf32>
    %2 = tpu.matmul %0, %1, %cst {dimension_numbers = #tpu.dot_dimension_numbers<[1], [0], [0], [1], [0, 0, 1, 1], [], []>} : vector<2x500xbf16>, vector<500x128xbf16>, vector<2x128xf32> -> vector<2x128xf32>
    %c0_3 = arith.constant 0 : index
    %c0_4 = arith.constant 0 : index
    %3 = vector.load %arg3[%c0_3, %c0_4] : memref<1x128xf32, #tpu.memory_space<vmem>>, vector<1x128xf32>
    %4 = vector.broadcast %3 : vector<1x128xf32> to vector<2x128xf32>
    %5 = arith.addf %2, %4 : vector<2x128xf32>
    %cst_5 = arith.constant 0.000000e+00 : f32
    %6 = vector.broadcast %cst_5 : f32 to vector<2x128xf32>
    %7 = arith.maximumf %5, %6 : vector<2x128xf32>
    %8 = arith.truncf %7 : vector<2x128xf32> to vector<2x128xbf16>
    %c0_6 = arith.constant 0 : index
    %c0_7 = arith.constant 0 : index
    %9 = vector.load %arg4[%c0_6, %c0_7] : memref<128x128xbf16, #tpu.memory_space<vmem>>, vector<128x128xbf16>
    %cst_8 = arith.constant dense<0.000000e+00> : vector<2x128xf32>
    %10 = tpu.matmul %8, %9, %cst_8 {dimension_numbers = #tpu.dot_dimension_numbers<[1], [0], [0], [1], [0, 0, 1, 1], [], []>} : vector<2x128xbf16>, vector<128x128xbf16>, vector<2x128xf32> -> vector<2x128xf32>
    %c0_9 = arith.constant 0 : index
    %c0_10 = arith.constant 0 : index
    %11 = vector.load %arg5[%c0_9, %c0_10] : memref<1x128xf32, #tpu.memory_space<vmem>>, vector<1x128xf32>
    %12 = vector.broadcast %11 : vector<1x128xf32> to vector<2x128xf32>
    %13 = arith.addf %10, %12 : vector<2x128xf32>
    %cst_11 = arith.constant dense<0xFF800000> : vector<2xf32>
    %14 = vector.multi_reduction <maximumf>, %13, %cst_11 [1] : vector<2x128xf32> to vector<2xf32>
    %15 = vector.shape_cast %14 : vector<2xf32> to vector<2x1xf32>
    %16 = vector.broadcast %15 : vector<2x1xf32> to vector<2x128xf32>
    %17 = arith.subf %13, %16 : vector<2x128xf32>
    %18 = math.exp %17 : vector<2x128xf32>
    %cst_12 = arith.constant dense<0.000000e+00> : vector<2xf32>
    %19 = vector.multi_reduction <add>, %18, %cst_12 [1] : vector<2x128xf32> to vector<2xf32>
    %20 = vector.shape_cast %19 : vector<2xf32> to vector<2x1xf32>
    %21 = math.log %20 : vector<2x1xf32>
    %22 = vector.broadcast %21 : vector<2x1xf32> to vector<2x128xf32>
    %23 = arith.subf %17, %22 : vector<2x128xf32>
    %c0_13 = arith.constant 0 : index
    %c0_14 = arith.constant 0 : index
    %24 = vector.load %arg6[%c0_13, %c0_14] : memref<2x128xf32, #tpu.memory_space<vmem>>, vector<2x128xf32>
    tpu.vector_store %arg6[%c0_13, %c0_14], %23 {strides = array<i32>} : memref<2x128xf32, #tpu.memory_space<vmem>>, vector<2x128xf32>,
    return
  }
  func.func @transform_0(%arg0: i32) -> (i32, i32) {
    %c0_i32 = arith.constant 0 : i32
    %c0_i32_0 = arith.constant 0 : i32
    return %arg0, %c0_i32 : i32, i32
  }
  func.func @transform_1(%arg0: i32) -> (i32, i32) {
    %c0_i32 = arith.constant 0 : i32
    %c0_i32_0 = arith.constant 0 : i32
    %c0_i32_1 = arith.constant 0 : i32
    return %c0_i32, %c0_i32_0 : i32, i32
  }
  func.func @transform_2(%arg0: i32) -> (i32, i32) {
    %c0_i32 = arith.constant 0 : i32
    %c0_i32_0 = arith.constant 0 : i32
    %c0_i32_1 = arith.constant 0 : i32
    return %c0_i32, %c0_i32_0 : i32, i32
  }
  func.func @transform_3(%arg0: i32) -> (i32, i32) {
    %c0_i32 = arith.constant 0 : i32
    %c0_i32_0 = arith.constant 0 : i32
    %c0_i32_1 = arith.constant 0 : i32
    return %c0_i32, %c0_i32_0 : i32, i32
  }
  func.func @transform_4(%arg0: i32) -> (i32, i32) {
    %c0_i32 = arith.constant 0 : i32
    %c0_i32_0 = arith.constant 0 : i32
    %c0_i32_1 = arith.constant 0 : i32
    return %c0_i32, %c0_i32_0 : i32, i32
  }
  func.func @transform_5(%arg0: i32) -> (i32, i32) {
    %c0_i32 = arith.constant 0 : i32
    %c0_i32_0 = arith.constant 0 : i32
    return %arg0, %c0_i32 : i32, i32
  }
}

</mosaic_0001>

<llo_original>
// kernel: cifar_convnet_forward.3
$region0: #{cifar_convnet_forward.3}
  #allocation0 [shape = 'u32[]', space=smem, size = 0x4, offset = 0x4, fixed_abs, tag = 'smem constant byte address 0x4 - core index']
  #allocation1 [shape = 'u32[144,128]{1,0:T(1,128)}', space=vmem, size = 0x12000, scoped, tag = 'internal scratch']
  %s0 = inlined_call_operand.vmem [shape: bf16[4,392,75], index: 0, kind: input, shape index: {}]
  %s1 = inlined_call_operand.vmem [shape: bf16[75,128], index: 1, kind: input, shape index: {}]
  %s2 = inlined_call_operand.vmem [shape: f32[1,128], index: 2, kind: input, shape index: {}]
  %s3 = inlined_call_operand.vmem [shape: bf16[392,128], index: 3, kind: output, shape index: {}]
  %s4 = sld [smem:[#allocation0]]
  $region151: #{cifar_convnet_forward.3} parent=0
    _
  %s6 = ssub.s32 1, %s4
  %s7 = scalar_select 0, %s6, %s4
  $region1: #{cifar_convnet_forward.3} parent=0
    #allocation2 [shape = 'u8[262144]{0}', space=vmem, size = 0x40000, scoped, tag = 'input window, operand 0']
    #allocation3 [shape = 'u8[65536]{0}', space=vmem, size = 0x10000, scoped, tag = 'output window, operand 0']
    loop: start=0, step=1, limit=6
    $region2: #{cifar_convnet_forward.3} parent=1 // loop_pre_header
      _
    $region3: #{cifar_convnet_forward.3} parent=1 // loop_header
      %s9 = sphi 0, %s13
      %p10 = scmp.ge.s32.totalorder %s9, 6
      %s19 = sphi 0, %s21
      %s22 = sphi 0, %s19
      %s23 = sphi 0, %s22
      %s39 = sphi 0, %s23
      %s43 = sphi 0, %s43
      %s45 = sphi 0, %s43
      %s46 = sphi 0, %s45
      %s60 = sphi 0, %s46
      %s64 = sphi 0, %s64
      %s66 = sphi 0, %s64
      %s67 = sphi 0, %s66
      %s81 = sphi 0, %s67
      %s87 = sphi 0, %s89
      %s90 = sphi 0, %s87
      %s91 = sphi 0, %s90
      %s107 = sphi 0, %s91
    $region4: #{cifar_convnet_forward.3} parent=1 // loop_header_branch
      %12 = sbr.rel (%p10) target = $region8
    $region5: #{cifar_convnet_forward.3} parent=1 // loop_body
      %s14 = ssub.s32 %s9, 1
      %s15 = ssub.s32 %s9, 2
      %s16 = sadd.s32 %s9, 1
      %s17 = ssub.s32 %s9, %s16
      %p18 = scmp.eq.s32.totalorder %s17, 0
      %s20 = sadd.s32 %s19, 1
      %s21 = scalar_select %p18, %s19, %s20
      %p24 = pneg %p18
      %p25 = scmp.eq.s32.totalorder %s9, 3
      %p26 = por %p24, %p25
      %p27 = scmp.ne.s32.totalorder %s19, %s22
      %p28 = scmp.eq.s32.totalorder %s9, 0
      %p29 = por %p27, %p28
      %p30 = scmp.ne.s32.totalorder %s19, %s22
      %p31 = scmp.eq.s32.totalorder %s14, 3
      %p32 = por %p30, %p31
      %p33 = scmp.ne.s32.totalorder %s22, %s23
      %p34 = scmp.eq.s32.totalorder %s14, 0
      %p35 = por %p33, %p34
      %p36 = scmp.ne.s32.totalorder %s22, %s23
      %p37 = scmp.eq.s32.totalorder %s15, 3
      %p38 = por %p36, %p37
      %p40 = scmp.ne.s32.totalorder %s23, %s39
      %p41 = scmp.eq.s32.totalorder %s15, 0
      %p42 = por %p40, %p41
      %s44 = sadd.s32 %s43, 1
      %p47 = scmp.eq.s32.totalorder %s9, 3
      %p48 = scmp.ne.s32.totalorder %s43, %s45
      %p49 = scmp.eq.s32.totalorder %s9, 0
      %p50 = por %p48, %p49
      %p51 = scmp.ne.s32.totalorder %s43, %s45
      %p52 = scmp.eq.s32.totalorder %s14, 3
      %p53 = por %p51, %p52
      %p54 = scmp.ne.s32.totalorder %s45, %s46
      %p55 = scmp.eq.s32.totalorder %s14, 0
      %p56 = por %p54, %p55
      %p57 = scmp.ne.s32.totalorder %s45, %s46
      %p58 = scmp.eq.s32.totalorder %s15, 3
      %p59 = por %p57, %p58
      %p61 = scmp.ne.s32.totalorder %s46, %s60
      %p62 = scmp.eq.s32.totalorder %s15, 0
      %p63 = por %p61, %p62
      %s65 = sadd.s32 %s64, 1
      %p68 = scmp.eq.s32.totalorder %s9, 3
      %p69 = scmp.ne.s32.totalorder %s64, %s66
      %p70 = scmp.eq.s32.totalorder %s9, 0
      %p71 = por %p69, %p70
      %p72 = scmp.ne.s32.totalorder %s64, %s66
      %p73 = scmp.eq.s32.totalorder %s14, 3
      %p74 = por %p72, %p73
      %p75 = scmp.ne.s32.totalorder %s66, %s67
      %p76 = scmp.eq.s32.totalorder %s14, 0
      %p77 = por %p75, %p76
      %p78 = scmp.ne.s32.totalorder %s66, %s67
      %p79 = scmp.eq.s32.totalorder %s15, 3
      %p80 = por %p78, %p79
      %p82 = scmp.ne.s32.totalorder %s67, %s81
      %p83 = scmp.eq.s32.totalorder %s15, 0
      %p84 = por %p82, %p83
      %s85 = ssub.s32 %s9, %s16
      %p86 = scmp.eq.s32.totalorder %s85, 0
      %s88 = sadd.s32 %s87, 1
      %s89 = scalar_select %p86, %s87, %s88
      %p92 = pneg %p86
      %p93 = scmp.eq.s32.totalorder %s9, 3
      %p94 = por %p92, %p93
      %p95 = scmp.ne.s32.totalorder %s87, %s90
      %p96 = scmp.eq.s32.totalorder %s9, 0
      %p97 = por %p95, %p96
      %p98 = scmp.ne.s32.totalorder %s87, %s90
      %p99 = scmp.eq.s32.totalorder %s14, 3
      %p100 = por %p98, %p99
      %p101 = scmp.ne.s32.totalorder %s90, %s91
      %p102 = scmp.eq.s32.totalorder %s14, 0
      %p103 = por %p101, %p102
      %p104 = scmp.ne.s32.totalorder %s90, %s91
      %p105 = scmp.eq.s32.totalorder %s15, 3
      %p106 = por %p104, %p105
      %p108 = scmp.ne.s32.totalorder %s91, %s107
      %p109 = scmp.eq.s32.totalorder %s15, 0
      %p110 = por %p108, %p109
      %p111 = scmp.le.s32.totalorder 1, %s9
      %p112 = scmp.lt.s32.totalorder %s9, 5
      %p113 = pnand %p111, %p112
      %p114 = pneg %p113
      // Predicated region
      $region9: #{cifar_convnet_forward.3} parent=5 // pred_check
        _
      $region10: #{cifar_convnet_forward.3} parent=5 // pred_check_branch
        %116 = sbr.rel (%p113) target = $region12
      $region11: #{cifar_convnet_forward.3} parent=5 // pred_region
        %s117 = ssub.s32 %s9, 1
        // Predicated region
        $region13: #{cifar_convnet_forward.3} parent=11 // pred_check
          %p118 = pneg %p56
        $region14: #{cifar_convnet_forward.3} parent=11 // pred_check_branch
          %120 = sbr.rel (%p118) target = $region16
        $region15: #{cifar_convnet_forward.3} parent=11 // pred_region
          _
        $region16: #{cifar_convnet_forward.3} parent=11 // pred_fallthru
          _
        // Predicated region
        $region17: #{cifar_convnet_forward.3} parent=11 // pred_check
          %p121 = pneg %p77
        $region18: #{cifar_convnet_forward.3} parent=11 // pred_check_branch
          %123 = sbr.rel (%p121) target = $region20
        $region19: #{cifar_convnet_forward.3} parent=11 // pred_region
          _
        $region20: #{cifar_convnet_forward.3} parent=11 // pred_fallthru
          _
      $region12: #{cifar_convnet_forward.3} parent=5 // pred_fallthru
        _
      %p124 = scmp.lt.s32.totalorder %s9, 4
      // Predicated region
      $region21: #{cifar_convnet_forward.3} parent=5 // pred_check
        %p125 = pneg %p124
      $region22: #{cifar_convnet_forward.3} parent=5 // pred_check_branch
        %127 = sbr.rel (%p125) target = $region24
      $region23: #{cifar_convnet_forward.3} parent=5 // pred_region
        // Predicated region
        $region25: #{cifar_convnet_forward.3} parent=23 // pred_check
          %p128 = pneg %p29
        $region26: #{cifar_convnet_forward.3} parent=23 // pred_check_branch
          %130 = sbr.rel (%p128) target = $region28
        $region27: #{cifar_convnet_forward.3} parent=23 // pred_region
          %s131 = sand.u32 %s19, 1
          %s132 = sand.u32 %s19, 1
          %s133 = smul.addr %s132, 256
          %s134 = scalar_lea.vmem [#allocation2], %s133
          %s135 = smul.u32 16, %s9
          %s136 = ssub.s32 49, %s135
          %p137 = scmp.lt.s32.totalorder %s136, 16
          %s138 = scalar_select %p137, %s136, 16
          %s139 = smul.u32 256, %s138
          %p140 = scmp.ne.s32.totalorder 0, %s139
          %s141 = smul.addr %s135, 4
          %s142 = scalar_lea.vmem %s0, %s141
          // Predicated region
          $region29: #{cifar_convnet_forward.3} parent=27 // pred_check
            %p143 = pneg %p140
          $region30: #{cifar_convnet_forward.3} parent=27 // pred_check_branch
            %145 = sbr.rel (%p143) target = $region32
          $region31: #{cifar_convnet_forward.3} parent=27 // pred_region
            // Predicated region
            $region33: #{cifar_convnet_forward.3} parent=31 // pred_check
              _
            $region34: #{cifar_convnet_forward.3} parent=31 // pred_check_branch
              %147 = sbr.rel target = $region36
            $region35: #{cifar_convnet_forward.3} parent=31 // pred_region
              // Predicated region
              $region55: #{cifar_convnet_forward.3} parent=35 // pred_check
                _
              $region56: #{cifar_convnet_forward.3} parent=35 // pred_check_branch
                %329 = sbr.rel (0) target = $region58
              $region57: #{cifar_convnet_forward.3} parent=35 // pred_region
                %s330 = sshrl.u32 %s138, 4
                // While loop
                $region59: #{cifar_convnet_forward.3} parent=57 // loop_pre_header
                  _
                $region60: #{cifar_convnet_forward.3} parent=57 // loop_header
                  %s332 = sphi 0, %s334
                  %p333 = scmp.ge.s32.totalorder %s332, %s330
                  %s337 = sphi 0, %s342
                  %s338 = sphi %s142, %s345
                  %s339 = sphi %s134, %s346
                $region61: #{cifar_convnet_forward.3} parent=57 // loop_header_branch
                  %336 = sbr.rel (%p333) target = $region65
                $region62: #{cifar_convnet_forward.3} parent=57 // loop_body
                  %s340 = sadd.s32 1, %s337
                  %p341 = scmp.ge.s32.totalorder %s340, %s330
                  %s342 = scalar_select %p341, 0, %s340
                  %s343 = smul.u32 %s342, 64
                  %s344 = smul.u32 %s342, 64
                  %s345 = scalar_lea.vmem %s142, %s343
                  %s346 = scalar_lea.vmem %s134, %s344 [#allocation2]
                $region63: #{cifar_convnet_forward.3} parent=57 // loop_footer
                  %s334 = sadd.s32 %s332, 1
                $region64: #{cifar_convnet_forward.3} parent=57 // loop_footer_branch
                  %331 = sbr.rel target = $region60
                $region65: #{cifar_convnet_forward.3} parent=57 // loop_exit
                  _
                %s347 = sshrl.u32 %s138, 4
                %s348 = sand.u32 %s138, 15
                %s349 = smul.u32 %s347, 16
                %s350 = smul.u32 4, %s349
                %s351 = scalar_lea.vmem %s142, %s350
                %s352 = smul.u32 4, %s349
                %s353 = scalar_lea.vmem %s134, %s352 [#allocation2]
                // While loop
                $region66: #{cifar_convnet_forward.3} parent=57 // loop_pre_header
                  _
                $region67: #{cifar_convnet_forward.3} parent=57 // loop_header
                  %s355 = sphi 0, %s357
                  %p356 = scmp.ge.s32.totalorder %s355, %s348
                  %s360 = sphi 0, %s365
                  %s361 = sphi %s351, %s368
                  %s362 = sphi %s353, %s369
                $region68: #{cifar_convnet_forward.3} parent=57 // loop_header_branch
                  %359 = sbr.rel (%p356) target = $region72
                $region69: #{cifar_convnet_forward.3} parent=57 // loop_body
                  %s363 = sadd.s32 1, %s360
                  %p364 = scmp.ge.s32.totalorder %s363, %s348
                  %s365 = scalar_select %p364, 0, %s363
                  %s366 = smul.u32 %s365, 4
                  %s367 = smul.u32 %s365, 4
                  %s368 = scalar_lea.vmem %s351, %s366
                  %s369 = scalar_lea.vmem %s353, %s367 [#allocation2]
                $region70: #{cifar_convnet_forward.3} parent=57 // loop_footer
                  %s357 = sadd.s32 %s355, 1
                $region71: #{cifar_convnet_forward.3} parent=57 // loop_footer_branch
                  %354 = sbr.rel target = $region67
                $region72: #{cifar_convnet_forward.3} parent=57 // loop_exit
                  _
                %s371 = ssub.s32 16, 1
                %s372 = sshrl.u32 %s138, 4
                // While loop
                $region73: #{cifar_convnet_forward.3} parent=57 // loop_pre_header
                  _
                $region74: #{cifar_convnet_forward.3} parent=57 // loop_header
                  %s374 = sphi 0, %s376
                  %p375 = scmp.ge.s32.totalorder %s374, %s372
                  %s379 = sphi 0, %s512
                  %s380 = sphi %s142, %s515
                  %s381 = sphi %s134, %s516
                $region75: #{cifar_convnet_forward.3} parent=57 // loop_header_branch
                  %378 = sbr.rel (%p375) target = $region79
                $region76: #{cifar_convnet_forward.3} parent=57 // loop_body
                  %v382 = vld [vmem:[%s380] sm:%s371]
                  %383 = vst [vmem:[%s381] sm:%s371] %v382
                  %v384 = vld [vmem:[%s380 + $0x4] sm:%s371]
                  %385 = vst [vmem:[%s381 + $0x4] sm:%s371] %v384
                  %v386 = vld [vmem:[%s380 + $0x8] sm:%s371]
                  %387 = vst [vmem:[%s381 + $0x8] sm:%s371] %v386
                  %v388 = vld [vmem:[%s380 + $0xc] sm:%s371]
                  %389 = vst [vmem:[%s381 + $0xc] sm:%s371] %v388
                  %v390 = vld [vmem:[%s380 + $0x10] sm:%s371]
                  %391 = vst [vmem:[%s381 + $0x10] sm:%s371] %v390
                  %v392 = vld [vmem:[%s380 + $0x14] sm:%s371]
                  %393 = vst [vmem:[%s381 + $0x14] sm:%s371] %v392
                  %v394 = vld [vmem:[%s380 + $0x18] sm:%s371]
                  %395 = vst [vmem:[%s381 + $0x18] sm:%s371] %v394
                  %v396 = vld [vmem:[%s380 + $0x1c] sm:%s371]
                  %397 = vst [vmem:[%s381 + $0x1c] sm:%s371] %v396
                  %v398 = vld [vmem:[%s380 + $0x20] sm:%s371]
                  %399 = vst [vmem:[%s381 + $0x20] sm:%s371] %v398
                  %v400 = vld [vmem:[%s380 + $0x24] sm:%s371]
                  %401 = vst [vmem:[%s381 + $0x24] sm:%s371] %v400
                  %v402 = vld [vmem:[%s380 + $0x28] sm:%s371]
                  %403 = vst [vmem:[%s381 + $0x28] sm:%s371] %v402
                  %v404 = vld [vmem:[%s380 + $0x2c] sm:%s371]
                  %405 = vst [vmem:[%s381 + $0x2c] sm:%s371] %v404
                  %v406 = vld [vmem:[%s380 + $0x30] sm:%s371]
                  %407 = vst [vmem:[%s381 + $0x30] sm:%s371] %v406
                  %v408 = vld [vmem:[%s380 + $0x34] sm:%s371]
                  %409 = vst [vmem:[%s381 + $0x34] sm:%s371] %v408
                  %v410 = vld [vmem:[%s380 + $0x38] sm:%s371]
                  %411 = vst [vmem:[%s381 + $0x38] sm:%s371] %v410
                  %v412 = vld [vmem:[%s380 + $0x3c] sm:%s371]
                  %413 = vst [vmem:[%s381 + $0x3c] sm:%s371] %v412
                  %v414 = vld [vmem:[%s380 + $0xc4] sm:%s371]
                  %415 = vst [vmem:[%s381 + $0x40] sm:%s371] %v414
                  %v416 = vld [vmem:[%s380 + $0xc8] sm:%s371]
                  %417 = vst [vmem:[%s381 + $0x44] sm:%s371] %v416
                  %v418 = vld [vmem:[%s380 + $0xcc] sm:%s371]
                  %419 = vst [vmem:[%s381 + $0x48] sm:%s371] %v418
                  %v420 = vld [vmem:[%s380 + $0xd0] sm:%s371]
                  %421 = vst [vmem:[%s381 + $0x4c] sm:%s371] %v420
                  %v422 = vld [vmem:[%s380 + $0xd4] sm:%s371]
                  %423 = vst [vmem:[%s381 + $0x50] sm:%s371] %v422
                  %v424 = vld [vmem:[%s380 + $0xd8] sm:%s371]
                  %425 = vst [vmem:[%s381 + $0x54] sm:%s371] %v424
                  %v426 = vld [vmem:[%s380 + $0xdc] sm:%s371]
                  %427 = vst [vmem:[%s381 + $0x58] sm:%s371] %v426
                  %v428 = vld [vmem:[%s380 + $0xe0] sm:%s371]
                  %429 = vst [vmem:[%s381 + $0x5c] sm:%s371] %v428
                  %v430 = vld [vmem:[%s380 + $0xe4] sm:%s371]
                  %431 = vst [vmem:[%s381 + $0x60] sm:%s371] %v430
                  %v432 = vld [vmem:[%s380 + $0xe8] sm:%s371]
                  %433 = vst [vmem:[%s381 + $0x64] sm:%s371] %v432
                  %v434 = vld [vmem:[%s380 + $0xec] sm:%s371]
                  %435 = vst [vmem:[%s381 + $0x68] sm:%s371] %v434
                  %v436 = vld [vmem:[%s380 + $0xf0] sm:%s371]
                  %437 = vst [vmem:[%s381 + $0x6c] sm:%s371] %v436
                  %v438 = vld [vmem:[%s380 + $0xf4] sm:%s371]
                  %439 = vst [vmem:[%s381 + $0x70] sm:%s371] %v438
                  %v440 = vld [vmem:[%s380 + $0xf8] sm:%s371]
                  %441 = vst [vmem:[%s381 + $0x74] sm:%s371] %v440
                  %v442 = vld [vmem:[%s380 + $0xfc] sm:%s371]
                  %443 = vst [vmem:[%s381 + $0x78] sm:%s371] %v442
                  %v444 = vld [vmem:[%s380 + $0x100] sm:%s371]
                  %445 = vst [vmem:[%s381 + $0x7c] sm:%s371] %v444
                  %v446 = vld [vmem:[%s380 + $0x188] sm:%s371]
                  %447 = vst [vmem:[%s381 + $0x80] sm:%s371] %v446
                  %v448 = vld [vmem:[%s380 + $0x18c] sm:%s371]
                  %449 = vst [vmem:[%s381 + $0x84] sm:%s371] %v448
                  %v450 = vld [vmem:[%s380 + $0x190] sm:%s371]
                  %451 = vst [vmem:[%s381 + $0x88] sm:%s371] %v450
                  %v452 = vld [vmem:[%s380 + $0x194] sm:%s371]
                  %453 = vst [vmem:[%s381 + $0x8c] sm:%s371] %v452
                  %v454 = vld [vmem:[%s380 + $0x198] sm:%s371]
                  %455 = vst [vmem:[%s381 + $0x90] sm:%s371] %v454
                  %v456 = vld [vmem:[%s380 + $0x19c] sm:%s371]
                  %457 = vst [vmem:[%s381 + $0x94] sm:%s371] %v456
                  %v458 = vld [vmem:[%s380 + $0x1a0] sm:%s371]
                  %459 = vst [vmem:[%s381 + $0x98] sm:%s371] %v458
                  %v460 = vld [vmem:[%s380 + $0x1a4] sm:%s371]
                  %461 = vst [vmem:[%s381 + $0x9c] sm:%s371] %v460
                  %v462 = vld [vmem:[%s380 + $0x1a8] sm:%s371]
                  %463 = vst [vmem:[%s381 + $0xa0] sm:%s371] %v462
                  %v464 = vld [vmem:[%s380 + $0x1ac] sm:%s371]
                  %465 = vst [vmem:[%s381 + $0xa4] sm:%s371] %v464
                  %v466 = vld [vmem:[%s380 + $0x1b0] sm:%s371]
                  %467 = vst [vmem:[%s381 + $0xa8] sm:%s371] %v466
                  %v468 = vld [vmem:[%s380 + $0x1b4] sm:%s371]
                  %469 = vst [vmem:[%s381 + $0xac] sm:%s371] %v468
                  %v470 = vld [vmem:[%s380 + $0x1b8] sm:%s371]
                  %471 = vst [vmem:[%s381 + $0xb0] sm:%s371] %v470
                  %v472 = vld [vmem:[%s380 + $0x1bc] sm:%s371]
                  %473 = vst [vmem:[%s381 + $0xb4] sm:%s371] %v472
                  %v474 = vld [vmem:[%s380 + $0x1c0] sm:%s371]
                  %475 = vst [vmem:[%s381 + $0xb8] sm:%s371] %v474
                  %v476 = vld [vmem:[%s380 + $0x1c4] sm:%s371]
                  %477 = vst [vmem:[%s381 + $0xbc] sm:%s371] %v476
                  %v478 = vld [vmem:[%s380 + $0x24c] sm:%s371]
                  %479 = vst [vmem:[%s381 + $0xc0] sm:%s371] %v478
                  %v480 = vld [vmem:[%s380 + $0x250] sm:%s371]
                  %481 = vst [vmem:[%s381 + $0xc4] sm:%s371] %v480
                  %v482 = vld [vmem:[%s380 + $0x254] sm:%s371]
                  %483 = vst [vmem:[%s381 + $0xc8] sm:%s371] %v482
                  %v484 = vld [vmem:[%s380 + $0x258] sm:%s371]
                  %485 = vst [vmem:[%s381 + $0xcc] sm:%s371] %v484
                  %v486 = vld [vmem:[%s380 + $0x25c] sm:%s371]
                  %487 = vst [vmem:[%s381 + $0xd0] sm:%s371] %v486
                  %v488 = vld [vmem:[%s380 + $0x260] sm:%s371]
                  %489 = vst [vmem:[%s381 + $0xd4] sm:%s371] %v488
                  %v490 = vld [vmem:[%s380 + $0x264] sm:%s371]
                  %491 = vst [vmem:[%s381 + $0xd8] sm:%s371] %v490
                  %v492 = vld [vmem:[%s380 + $0x268] sm:%s371]
                  %493 = vst [vmem:[%s381 + $0xdc] sm:%s371] %v492
                  %v494 = vld [vmem:[%s380 + $0x26c] sm:%s371]
                  %495 = vst [vmem:[%s381 + $0xe0] sm:%s371] %v494
                  %v496 = vld [vmem:[%s380 + $0x270] sm:%s371]
                  %497 = vst [vmem:[%s381 + $0xe4] sm:%s371] %v496
                  %v498 = vld [vmem:[%s380 + $0x274] sm:%s371]
                  %499 = vst [vmem:[%s381 + $0xe8] sm:%s371] %v498
                  %v500 = vld [vmem:[%s380 + $0x278] sm:%s371]
                  %501 = vst [vmem:[%s381 + $0xec] sm:%s371] %v500
                  %v502 = vld [vmem:[%s380 + $0x27c] sm:%s371]
                  %503 = vst [vmem:[%s381 + $0xf0] sm:%s371] %v502
                  %v504 = vld [vmem:[%s380 + $0x280] sm:%s371]
                  %505 = vst [vmem:[%s381 + $0xf4] sm:%s371] %v504
                  %v506 = vld [vmem:[%s380 + $0x284] sm:%s371]
                  %507 = vst [vmem:[%s381 + $0xf8] sm:%s371] %v506
                  %v508 = vld [vmem:[%s380 + $0x288] sm:%s371]
                  %509 = vst [vmem:[%s381 + $0xfc] sm:%s371] %v508
                  %s510 = sadd.s32 1, %s379
                  %p511 = scmp.ge.s32.totalorder %s510, %s372
                  %s512 = scalar_select %p511, 0, %s510
                  %s513 = smul.u32 %s512, 64
                  %s514 = smul.u32 %s512, 64
                  %s515 = scalar_lea.vmem %s142, %s513
                  %s516 = scalar_lea.vmem %s134, %s514 [#allocation2]
                $region77: #{cifar_convnet_forward.3} parent=57 // loop_footer
                  %s376 = sadd.s32 %s374, 1
                $region78: #{cifar_convnet_forward.3} parent=57 // loop_footer_branch
                  %373 = sbr.rel target = $region74
                $region79: #{cifar_convnet_forward.3} parent=57 // loop_exit
                  _
                %s517 = sshrl.u32 %s138, 4
                %s518 = sand.u32 %s138, 15
                %s519 = smul.u32 %s517, 16
                %s520 = smul.u32 4, %s519
                %s521 = scalar_lea.vmem %s142, %s520
                %s522 = smul.u32 4, %s519
                %s523 = scalar_lea.vmem %s134, %s522 [#allocation2]
                // While loop
                $region80: #{cifar_convnet_forward.3} parent=57 // loop_pre_header
                  _
                $region81: #{cifar_convnet_forward.3} parent=57 // loop_header
                  %s525 = sphi 0, %s527
                  %p526 = scmp.ge.s32.totalorder %s525, %s518
                  %s530 = sphi 0, %s543
                  %s531 = sphi %s521, %s546
                  %s532 = sphi %s523, %s547
                $region82: #{cifar_convnet_forward.3} parent=57 // loop_header_branch
                  %529 = sbr.rel (%p526) target = $region86
                $region83: #{cifar_convnet_forward.3} parent=57 // loop_body
                  %v533 = vld [vmem:[%s531] sm:%s371]
                  %534 = vst [vmem:[%s532] sm:%s371] %v533
                  %v535 = vld [vmem:[%s531 + $0xc4] sm:%s371]
                  %536 = vst [vmem:[%s532 + $0x40] sm:%s371] %v535
                  %v537 = vld [vmem:[%s531 + $0x188] sm:%s371]
                  %538 = vst [vmem:[%s532 + $0x80] sm:%s371] %v537
                  %v539 = vld [vmem:[%s531 + $0x24c] sm:%s371]
                  %540 = vst [vmem:[%s532 + $0xc0] sm:%s371] %v539
                  %s541 = sadd.s32 1, %s530
                  %p542 = scmp.ge.s32.totalorder %s541, %s518
                  %s543 = scalar_select %p542, 0, %s541
                  %s544 = smul.u32 %s543, 4
                  %s545 = smul.u32 %s543, 4
                  %s546 = scalar_lea.vmem %s521, %s544
                  %s547 = scalar_lea.vmem %s523, %s545 [#allocation2]
                $region84: #{cifar_convnet_forward.3} parent=57 // loop_footer
                  %s527 = sadd.s32 %s525, 1
                $region85: #{cifar_convnet_forward.3} parent=57 // loop_footer_branch
                  %524 = sbr.rel target = $region81
                $region86: #{cifar_convnet_forward.3} parent=57 // loop_exit
                  _
              $region58: #{cifar_convnet_forward.3} parent=35 // pred_fallthru
                _
            $region36: #{cifar_convnet_forward.3} parent=31 // pred_fallthru
              _
            // Predicated region
            $region37: #{cifar_convnet_forward.3} parent=31 // pred_check
              _
            $region38: #{cifar_convnet_forward.3} parent=31 // pred_check_branch
              %149 = sbr.rel (0) target = $region40
            $region39: #{cifar_convnet_forward.3} parent=31 // pred_region
              %s151 = ssub.s32 16, 1
              %s152 = sshrl.u32 %s138, 4
              // While loop
              $region41: #{cifar_convnet_forward.3} parent=39 // loop_pre_header
                _
              $region42: #{cifar_convnet_forward.3} parent=39 // loop_header
                %s154 = sphi 0, %s156
                %p155 = scmp.ge.s32.totalorder %s154, %s152
                %s159 = sphi 0, %s292
                %s160 = sphi %s142, %s295
                %s161 = sphi %s134, %s296
              $region43: #{cifar_convnet_forward.3} parent=39 // loop_header_branch
                %158 = sbr.rel (%p155) target = $region47
              $region44: #{cifar_convnet_forward.3} parent=39 // loop_body
                %v162 = vld [vmem:[%s160] sm:%s151]
                %163 = vst [vmem:[%s161] sm:%s151] %v162
                %v164 = vld [vmem:[%s160 + $0x4] sm:%s151]
                %165 = vst [vmem:[%s161 + $0x4] sm:%s151] %v164
                %v166 = vld [vmem:[%s160 + $0x8] sm:%s151]
                %167 = vst [vmem:[%s161 + $0x8] sm:%s151] %v166
                %v168 = vld [vmem:[%s160 + $0xc] sm:%s151]
                %169 = vst [vmem:[%s161 + $0xc] sm:%s151] %v168
                %v170 = vld [vmem:[%s160 + $0x10] sm:%s151]
                %171 = vst [vmem:[%s161 + $0x10] sm:%s151] %v170
                %v172 = vld [vmem:[%s160 + $0x14] sm:%s151]
                %173 = vst [vmem:[%s161 + $0x14] sm:%s151] %v172
                %v174 = vld [vmem:[%s160 + $0x18] sm:%s151]
                %175 = vst [vmem:[%s161 + $0x18] sm:%s151] %v174
                %v176 = vld [vmem:[%s160 + $0x1c] sm:%s151]
                %177 = vst [vmem:[%s161 + $0x1c] sm:%s151] %v176
                %v178 = vld [vmem:[%s160 + $0x20] sm:%s151]
                %179 = vst [vmem:[%s161 + $0x20] sm:%s151] %v178
                %v180 = vld [vmem:[%s160 + $0x24] sm:%s151]
                %181 = vst [vmem:[%s161 + $0x24] sm:%s151] %v180
                %v182 = vld [vmem:[%s160 + $0x28] sm:%s151]
                %183 = vst [vmem:[%s161 + $0x28] sm:%s151] %v182
                %v184 = vld [vmem:[%s160 + $0x2c] sm:%s151]
                %185 = vst [vmem:[%s161 + $0x2c] sm:%s151] %v184
                %v186 = vld [vmem:[%s160 + $0x30] sm:%s151]
                %187 = vst [vmem:[%s161 + $0x30] sm:%s151] %v186
                %v188 = vld [vmem:[%s160 + $0x34] sm:%s151]
                %189 = vst [vmem:[%s161 + $0x34] sm:%s151] %v188
                %v190 = vld [vmem:[%s160 + $0x38] sm:%s151]
                %191 = vst [vmem:[%s161 + $0x38] sm:%s151] %v190
                %v192 = vld [vmem:[%s160 + $0x3c] sm:%s151]
                %193 = vst [vmem:[%s161 + $0x3c] sm:%s151] %v192
                %v194 = vld [vmem:[%s160 + $0xc4] sm:%s151]
                %195 = vst [vmem:[%s161 + $0x40] sm:%s151] %v194
                %v196 = vld [vmem:[%s160 + $0xc8] sm:%s151]
                %197 = vst [vmem:[%s161 + $0x44] sm:%s151] %v196
                %v198 = vld [vmem:[%s160 + $0xcc] sm:%s151]
                %199 = vst [vmem:[%s161 + $0x48] sm:%s151] %v198
                %v200 = vld [vmem:[%s160 + $0xd0] sm:%s151]
                %201 = vst [vmem:[%s161 + $0x4c] sm:%s151] %v200
                %v202 = vld [vmem:[%s160 + $0xd4] sm:%s151]
                %203 = vst [vmem:[%s161 + $0x50] sm:%s151] %v202
                %v204 = vld [vmem:[%s160 + $0xd8] sm:%s151]
                %205 = vst [vmem:[%s161 + $0x54] sm:%s151] %v204
                %v206 = vld [vmem:[%s160 + $0xdc] sm:%s151]
                %207 = vst [vmem:[%s161 + $0x58] sm:%s151] %v206
                %v208 = vld [vmem:[%s160 + $0xe0] sm:%s151]
                %209 = vst [vmem:[%s161 + $0x5c] sm:%s151] %v208
                %v210 = vld [vmem:[%s160 + $0xe4] sm:%s151]
                %211 = vst [vmem:[%s161 + $0x60] sm:%s151] %v210
                %v212 = vld [vmem:[%s160 + $0xe8] sm:%s151]
                %213 = vst [vmem:[%s161 + $0x64] sm:%s151] %v212
                %v214 = vld [vmem:[%s160 + $0xec] sm:%s151]
                %215 = vst [vmem:[%s161 + $0x68] sm:%s151] %v214
                %v216 = vld [vmem:[%s160 + $0xf0] sm:%s151]
                %217 = vst [vmem:[%s161 + $0x6c] sm:%s151] %v216
                %v218 = vld [vmem:[%s160 + $0xf4] sm:%s151]
                %219 = vst [vmem:[%s161 + $0x70] sm:%s151] %v218
                %v220 = vld [vmem:[%s160 + $0xf8] sm:%s151]
                %221 = vst [vmem:[%s161 + $0x74] sm:%s151] %v220
                %v222 = vld [vmem:[%s160 + $0xfc] sm:%s151]
                %223 = vst [vmem:[%s161 + $0x78] sm:%s151] %v222
                %v224 = vld [vmem:[%s160 + $0x100] sm:%s151]
                %225 = vst [vmem:[%s161 + $0x7c] sm:%s151] %v224
                %v226 = vld [vmem:[%s160 + $0x188] sm:%s151]
                %227 = vst [vmem:[%s161 + $0x80] sm:%s151] %v226
                %v228 = vld [vmem:[%s160 + $0x18c] sm:%s151]
                %229 = vst [vmem:[%s161 + $0x84] sm:%s151] %v228
                %v230 = vld [vmem:[%s160 + $0x190] sm:%s151]
                %231 = vst [vmem:[%s161 + $0x88] sm:%s151] %v230
                %v232 = vld [vmem:[%s160 + $0x194] sm:%s151]
                %233 = vst [vmem:[%s161 + $0x8c] sm:%s151] %v232
                %v234 = vld [vmem:[%s160 + $0x198] sm:%s151]
                %235 = vst [vmem:[%s161 + $0x90] sm:%s151] %v234
                %v236 = vld [vmem:[%s160 + $0x19c] sm:%s151]
                %237 = vst [vmem:[%s161 + $0x94] sm:%s151] %v236
                %v238 = vld [vmem:[%s160 + $0x1a0] sm:%s151]
                %239 = vst [vmem:[%s161 + $0x98] sm:%s151] %v238
                %v240 = vld [vmem:[%s160 + $0x1a4] sm:%s151]
                %241 = vst [vmem:[%s161 + $0x9c] sm:%s151] %v240
                %v242 = vld [vmem:[%s160 + $0x1a8] sm:%s151]
                %243 = vst [vmem:[%s161 + $0xa0] sm:%s151] %v242
                %v244 = vld [vmem:[%s160 + $0x1ac] sm:%s151]
                %245 = vst [vmem:[%s161 + $0xa4] sm:%s151] %v244
                %v246 = vld [vmem:[%s160 + $0x1b0] sm:%s151]
                %247 = vst [vmem:[%s161 + $0xa8] sm:%s151] %v246
                %v248 = vld [vmem:[%s160 + $0x1b4] sm:%s151]
                %249 = vst [vmem:[%s161 + $0xac] sm:%s151] %v248
                %v250 = vld [vmem:[%s160 + $0x1b8] sm:%s151]
                %251 = vst [vmem:[%s161 + $0xb0] sm:%s151] %v250
                %v252 = vld [vmem:[%s160 + $0x1bc] sm:%s151]
                %253 = vst [vmem:[%s161 + $0xb4] sm:%s151] %v252
                %v254 = vld [vmem:[%s160 + $0x1c0] sm:%s151]
                %255 = vst [vmem:[%s161 + $0xb8] sm:%s151] %v254
                %v256 = vld [vmem:[%s160 + $0x1c4] sm:%s151]
                %257 = vst [vmem:[%s161 + $0xbc] sm:%s151] %v256
                %v258 = vld [vmem:[%s160 + $0x24c] sm:%s151]
                %259 = vst [vmem:[%s161 + $0xc0] sm:%s151] %v258
                %v260 = vld [vmem:[%s160 + $0x250] sm:%s151]
                %261 = vst [vmem:[%s161 + $0xc4] sm:%s151] %v260
                %v262 = vld [vmem:[%s160 + $0x254] sm:%s151]
                %263 = vst [vmem:[%s161 + $0xc8] sm:%s151] %v262
                %v264 = vld [vmem:[%s160 + $0x258] sm:%s151]
                %265 = vst [vmem:[%s161 + $0xcc] sm:%s151] %v264
                %v266 = vld [vmem:[%s160 + $0x25c] sm:%s151]
                %267 = vst [vmem:[%s161 + $0xd0] sm:%s151] %v266
                %v268 = vld [vmem:[%s160 + $0x260] sm:%s151]
                %269 = vst [vmem:[%s161 + $0xd4] sm:%s151] %v268
                %v270 = vld [vmem:[%s160 + $0x264] sm:%s151]
                %271 = vst [vmem:[%s161 + $0xd8] sm:%s151] %v270
                %v272 = vld [vmem:[%s160 + $0x268] sm:%s151]
                %273 = vst [vmem:[%s161 + $0xdc] sm:%s151] %v272
                %v274 = vld [vmem:[%s160 + $0x26c] sm:%s151]
                %275 = vst [vmem:[%s161 + $0xe0] sm:%s151] %v274
                %v276 = vld [vmem:[%s160 + $0x270] sm:%s151]
                %277 = vst [vmem:[%s161 + $0xe4] sm:%s151] %v276
                %v278 = vld [vmem:[%s160 + $0x274] sm:%s151]
                %279 = vst [vmem:[%s161 + $0xe8] sm:%s151] %v278
                %v280 = vld [vmem:[%s160 + $0x278] sm:%s151]
                %281 = vst [vmem:[%s161 + $0xec] sm:%s151] %v280
                %v282 = vld [vmem:[%s160 + $0x27c] sm:%s151]
                %283 = vst [vmem:[%s161 + $0xf0] sm:%s151] %v282
                %v284 = vld [vmem:[%s160 + $0x280] sm:%s151]
                %285 = vst [vmem:[%s161 + $0xf4] sm:%s151] %v284
                %v286 = vld [vmem:[%s160 + $0x284] sm:%s151]
                %287 = vst [vmem:[%s161 + $0xf8] sm:%s151] %v286
                %v288 = vld [vmem:[%s160 + $0x288] sm:%s151]
                %289 = vst [vmem:[%s161 + $0xfc] sm:%s151] %v288
                %s290 = sadd.s32 1, %s159
                %p291 = scmp.ge.s32.totalorder %s290, %s152
                %s292 = scalar_select %p291, 0, %s290
                %s293 = smul.u32 %s292, 64
                %s294 = smul.u32 %s292, 64
                %s295 = scalar_lea.vmem %s142, %s293
                %s296 = scalar_lea.vmem %s134, %s294 [#allocation2]
              $region45: #{cifar_convnet_forward.3} parent=39 // loop_footer
                %s156 = sadd.s32 %s154, 1
              $region46: #{cifar_convnet_forward.3} parent=39 // loop_footer_branch
                %153 = sbr.rel target = $region42
              $region47: #{cifar_convnet_forward.3} parent=39 // loop_exit
                _
              %s297 = sshrl.u32 %s138, 4
              %s298 = sand.u32 %s138, 15
              %s299 = smul.u32 %s297, 16
              %s300 = smul.u32 4, %s299
              %s301 = scalar_lea.vmem %s142, %s300
              %s302 = smul.u32 4, %s299
              %s303 = scalar_lea.vmem %s134, %s302 [#allocation2]
              // While loop
              $region48: #{cifar_convnet_forward.3} parent=39 // loop_pre_header
                _
              $region49: #{cifar_convnet_forward.3} parent=39 // loop_header
                %s305 = sphi 0, %s307
                %p306 = scmp.ge.s32.totalorder %s305, %s298
                %s310 = sphi 0, %s323
                %s311 = sphi %s301, %s326
                %s312 = sphi %s303, %s327
              $region50: #{cifar_convnet_forward.3} parent=39 // loop_header_branch
                %309 = sbr.rel (%p306) target = $region54
              $region51: #{cifar_convnet_forward.3} parent=39 // loop_body
                %v313 = vld [vmem:[%s311] sm:%s151]
                %314 = vst [vmem:[%s312] sm:%s151] %v313
                %v315 = vld [vmem:[%s311 + $0xc4] sm:%s151]
                %316 = vst [vmem:[%s312 + $0x40] sm:%s151] %v315
                %v317 = vld [vmem:[%s311 + $0x188] sm:%s151]
                %318 = vst [vmem:[%s312 + $0x80] sm:%s151] %v317
                %v319 = vld [vmem:[%s311 + $0x24c] sm:%s151]
                %320 = vst [vmem:[%s312 + $0xc0] sm:%s151] %v319
                %s321 = sadd.s32 1, %s310
                %p322 = scmp.ge.s32.totalorder %s321, %s298
                %s323 = scalar_select %p322, 0, %s321
                %s324 = smul.u32 %s323, 4
                %s325 = smul.u32 %s323, 4
                %s326 = scalar_lea.vmem %s301, %s324
                %s327 = scalar_lea.vmem %s303, %s325 [#allocation2]
              $region52: #{cifar_convnet_forward.3} parent=39 // loop_footer
                %s307 = sadd.s32 %s305, 1
              $region53: #{cifar_convnet_forward.3} parent=39 // loop_footer_branch
                %304 = sbr.rel target = $region49
              $region54: #{cifar_convnet_forward.3} parent=39 // loop_exit
                _
            $region40: #{cifar_convnet_forward.3} parent=31 // pred_fallthru
              _
          $region32: #{cifar_convnet_forward.3} parent=27 // pred_fallthru
            _
          %548 = vnop
        $region28: #{cifar_convnet_forward.3} parent=23 // pred_fallthru
          _
      $region24: #{cifar_convnet_forward.3} parent=5 // pred_fallthru
        _
      %p549 = scmp.le.s32.totalorder 1, %s9
      %p550 = scmp.lt.s32.totalorder %s9, 5
      %p551 = pnand %p549, %p550
      %p552 = pneg %p551
      // Predicated region
      $region87: #{cifar_convnet_forward.3} parent=5 // pred_check
        _
      $region88: #{cifar_convnet_forward.3} parent=5 // pred_check_branch
        %554 = sbr.rel (%p551) target = $region90
      $region89: #{cifar_convnet_forward.3} parent=5 // pred_region
        %s555 = ssub.s32 %s9, 1
        %s556 = sand.u32 %s22, 1
        %s557 = sand.u32 %s22, 1
        %s558 = smul.addr %s557, 256
        %s559 = scalar_lea.vmem [#allocation2], %s558
        // Predicated region
        $region91: #{cifar_convnet_forward.3} parent=89 // pred_check
          %p560 = pneg %p35
        $region92: #{cifar_convnet_forward.3} parent=89 // pred_check_branch
          %562 = sbr.rel (%p560) target = $region94
        $region93: #{cifar_convnet_forward.3} parent=89 // pred_region
          _
        $region94: #{cifar_convnet_forward.3} parent=89 // pred_fallthru
          _
        %s563 = sand.u32 %s22, 1
        %s564 = sand.u32 %s22, 1
        %s565 = smul.addr %s564, 256
        %s566 = scalar_lea.vmem [#allocation2], %s565
        %p567 = pneg %p35
        %p568 = pneg %p32
        %p569 = pneg %p56
        %p570 = pneg %p53
        %p571 = pneg %p77
        %p572 = pneg %p74
        %p573 = pneg %p103
        %p574 = pneg %p100
        %s575 = sand.u32 %s90, 1
        %s576 = sand.u32 %s90, 1
        %s577 = smul.addr %s576, 64
        %s578 = scalar_lea.vmem [#allocation3], %s577
        %s579 = smul.u32 16, %s14
        %s580 = ssub.s32 49, %s579
        %p581 = scmp.lt.s32.totalorder %s580, 16
        %s582 = scalar_select %p581, %s580, 16
        %s583 = smul.u32 256, %s582
        %s584 = smul.u32 16, %s14
        %s585 = ssub.s32 49, %s584
        %p586 = scmp.lt.s32.totalorder %s585, 16
        %s587 = scalar_select %p586, %s585, 16
        %s588 = smul.u32 64, %s587
        %v590 = vld [vmem:[%s1] sm:$0xf]
        %v591 = vld [vmem:[%s1 + $0x4] sm:$0xf]
        %v592 = vld [vmem:[%s1 + $0x8] sm:$0xf]
        %v593 = vld [vmem:[%s1 + $0xc] sm:$0xf]
        %v594 = vld [vmem:[%s1 + $0x10] sm:$0xf]
        %v595 = vld [vmem:[%s1 + $0x14] sm:$0xf]
        %v596 = vld [vmem:[%s1 + $0x18] sm:$0xf]
        %v597 = vld [vmem:[%s1 + $0x1c] sm:$0xf]
        %v598 = vld [vmem:[%s1 + $0x20] sm:$0xf]
        %v599 = vld [vmem:[%s1 + $0x24] sm:$0x3]
        %v600 = vld [vmem:[%s559] sm:$0xf]
        %v601 = vld [vmem:[%s559 + $0x4] sm:$0xf]
        %v602 = vld [vmem:[%s559 + $0x8] sm:$0xf]
        %v603 = vld [vmem:[%s559 + $0xc] sm:$0xf]
        %v604 = vld [vmem:[%s559 + $0x10] sm:$0xf]
        %v605 = vld [vmem:[%s559 + $0x14] sm:$0xf]
        %v606 = vld [vmem:[%s559 + $0x18] sm:$0xf]
        %v607 = vld [vmem:[%s559 + $0x1c] sm:$0xf]
        %v608 = vld [vmem:[%s559 + $0x20] sm:$0xf]
        %v609 = vld [vmem:[%s559 + $0x24] sm:$0xf]
        %v610 = vld [vmem:[%s559 + $0x28] sm:$0xf]
        %v611 = vld [vmem:[%s559 + $0x2c] sm:$0xf]
        %v612 = vld [vmem:[%s559 + $0x30] sm:$0xf]
        %v613 = vld [vmem:[%s559 + $0x34] sm:$0xf]
        %v614 = vld [vmem:[%s559 + $0x38] sm:$0xf]
        %v615 = vld [vmem:[%s559 + $0x3c] sm:$0xf]
        %v632 = vunpack.c.l.b16 %v600
        %v633 = vunpack.c.l.b16 %v601
        %v634 = vunpack.c.l.b16 %v602
        %v635 = vunpack.c.l.b16 %v603
        %v636 = vunpack.c.l.b16 %v604
        %v637 = vunpack.c.l.b16 %v605
        %v638 = vunpack.c.l.b16 %v606
        %v639 = vunpack.c.l.b16 %v607
        %v640 = vunpack.c.l.b16 %v608
        %v641 = vunpack.c.l.b16 %v609
        %v642 = vunpack.c.l.b16 %v610
        %v643 = vunpack.c.l.b16 %v611
        %v644 = vunpack.c.l.b16 %v612
        %v645 = vunpack.c.l.b16 %v613
        %v646 = vunpack.c.l.b16 %v614
        %v647 = vunpack.c.l.b16 %v615
        %v648 = vpack.c.b16 %v633, %v632
        %v649 = vpack.c.b16 %v635, %v634
        %v650 = vpack.c.b16 %v637, %v636
        %v651 = vpack.c.b16 %v639, %v638
        %v652 = vpack.c.b16 %v641, %v640
        %v653 = vpack.c.b16 %v643, %v642
        %v654 = vpack.c.b16 %v645, %v644
        %v655 = vpack.c.b16 %v647, %v646
        %v666 = vunpack.c.l.b16 %v590
        %v667 = vunpack.c.l.b16 %v591
        %v668 = vunpack.c.l.b16 %v592
        %v669 = vunpack.c.l.b16 %v593
        %v670 = vunpack.c.l.b16 %v594
        %v671 = vunpack.c.l.b16 %v595
        %v672 = vunpack.c.l.b16 %v596
        %v673 = vunpack.c.l.b16 %v597
        %v674 = vunpack.c.l.b16 %v598
        %v675 = vunpack.c.l.b16 %v599
        %v676 = vpack.c.b16 %v667, %v666
        %v677 = vpack.c.b16 %v669, %v668
        %v678 = vpack.c.b16 %v671, %v670
        %v679 = vpack.c.b16 %v673, %v672
        %v680 = vpack.c.b16 %v675, %v674
        %vm685 = vcmask 613376
        %v687 = vsel %vm685, %v648, 0
        %v690 = vsel %vm685, %v649, 0
        %v693 = vsel %vm685, %v650, 0
        %v696 = vsel %vm685, %v651, 0
        %v699 = vsel %vm685, %v652, 0
        %v702 = vsel %vm685, %v653, 0
        %v705 = vsel %vm685, %v654, 0
        %v708 = vsel %vm685, %v655, 0
        %vm710 = vcmask 1044480
        %vm711 = vcmask 1045504
        %v712 = vsel %vm710, 4294967295, 65535
        %v713 = vsel %vm711, %v712, 0
        %v715 = vand.u32 %v680, %v713
        %717 = vmatprep.subr.bf16.mxu0 0
        %718 = vmatpush1.bf16.msra.mxu0 0
        %719 = vmatprep.subr.bf16.mxu0 0
        %720 = vmatpush1.bf16.msra.mxu0 0
        %721 = vmatprep.subr.bf16.mxu0 0
        %722 = vmatpush1.bf16.msra.mxu0 0
        %723 = vmatprep.subr.bf16.mxu0 0
        %724 = vmatpush1.bf16.msra.mxu0 %v715
        %725 = vmatprep.subr.bf16.mxu0 0
        %726 = vmatpush1.bf16.msra.mxu0 %v679
        %727 = vmatprep.subr.bf16.mxu0 0
        %728 = vmatpush1.bf16.msra.mxu0 %v678
        %729 = vmatprep.subr.bf16.mxu0 0
        %730 = vmatpush1.bf16.msra.mxu0 %v677
        %731 = vmatprep.subr.bf16.mxu0 0
        %732 = vmatpush1.bf16.msra.mxu0 %v676
        %733 = vmatprep.subr.bf16.mxu0 0
        %734 = vmatpush2.bf16.msra.mxu0 0
        %735 = vmatprep.subr.bf16.mxu0 0
        %736 = vmatpush2.bf16.msra.mxu0 0
        %737 = vmatprep.subr.bf16.mxu0 0
        %738 = vmatpush2.bf16.msra.mxu0 0
        %739 = vmatprep.subr.bf16.mxu0 0
        %740 = vmatpush2.bf16.msra.mxu0 0
        %741 = vmatprep.subr.bf16.mxu0 0
        %742 = vmatpush2.bf16.msra.mxu0 0
        %743 = vmatprep.subr.bf16.mxu0 0
        %744 = vmatpush2.bf16.msra.mxu0 0
        %745 = vmatprep.subr.bf16.mxu0 0
        %746 = vmatpush2.bf16.msra.mxu0 0
        %747 = vmatprep.subr.bf16.mxu0 0
        %748 = vmatpush2.bf16.msra.mxu0 0
        %749 = vmatprep.mubr.bf16.mxu0 0
        %750 = vmatmul.mubr.bf16.gmra.mxu0 %v687
        %v751 = vpop.f32.mrf.mxu0
        %v752 = vadd.f32 0.0, %v751
        %v753 = vpop.f32.mrf.mxu0
        %v754 = vpop.f32.mrf.mxu0
        %v755 = vadd.f32 0.0, %v754
        %v756 = vpop.f32.mrf.mxu0
        %757 = vmatprep.mubr.bf16.mxu0 0
        %758 = vmatmul.mubr.bf16.gmra.mxu0 %v690
        %v759 = vpop.f32.mrf.mxu0
        %v760 = vadd.f32 0.0, %v759
        %v761 = vpop.f32.mrf.mxu0
        %v762 = vpop.f32.mrf.mxu0
        %v763 = vadd.f32 0.0, %v762
        %v764 = vpop.f32.mrf.mxu0
        %765 = vmatprep.mubr.bf16.mxu0 0
        %766 = vmatmul.mubr.bf16.gmra.mxu0 %v693
        %v767 = vpop.f32.mrf.mxu0
        %v768 = vadd.f32 0.0, %v767
        %v769 = vpop.f32.mrf.mxu0
        %v770 = vpop.f32.mrf.mxu0
        %v771 = vadd.f32 0.0, %v770
        %v772 = vpop.f32.mrf.mxu0
        %773 = vmatprep.mubr.bf16.mxu0 0
        %774 = vmatmul.mubr.bf16.gmra.mxu0 %v696
        %v775 = vpop.f32.mrf.mxu0
        %v776 = vadd.f32 0.0, %v775
        %v777 = vpop.f32.mrf.mxu0
        %v778 = vpop.f32.mrf.mxu0
        %v779 = vadd.f32 0.0, %v778
        %v780 = vpop.f32.mrf.mxu0
        %781 = vmatprep.mubr.bf16.mxu0 0
        %782 = vmatmul.mubr.bf16.gmra.mxu0 %v699
        %v783 = vpop.f32.mrf.mxu0
        %v784 = vadd.f32 0.0, %v783
        %v785 = vpop.f32.mrf.mxu0
        %v786 = vpop.f32.mrf.mxu0
        %v787 = vadd.f32 0.0, %v786
        %v788 = vpop.f32.mrf.mxu0
        %789 = vmatprep.mubr.bf16.mxu0 0
        %790 = vmatmul.mubr.bf16.gmra.mxu0 %v702
        %v791 = vpop.f32.mrf.mxu0
        %v792 = vadd.f32 0.0, %v791
        %v793 = vpop.f32.mrf.mxu0
        %v794 = vpop.f32.mrf.mxu0
        %v795 = vadd.f32 0.0, %v794
        %v796 = vpop.f32.mrf.mxu0
        %797 = vmatprep.mubr.bf16.mxu0 0
        %798 = vmatmul.mubr.bf16.gmra.mxu0 %v705
        %v799 = vpop.f32.mrf.mxu0
        %v800 = vadd.f32 0.0, %v799
        %v801 = vpop.f32.mrf.mxu0
        %v802 = vpop.f32.mrf.mxu0
        %v803 = vadd.f32 0.0, %v802
        %v804 = vpop.f32.mrf.mxu0
        %805 = vmatprep.mubr.bf16.mxu0 0
        %806 = vmatmul.mubr.bf16.gmra.mxu0 %v708
        %v807 = vpop.f32.mrf.mxu0
        %v808 = vadd.f32 0.0, %v807
        %v809 = vpop.f32.mrf.mxu0
        %v810 = vpop.f32.mrf.mxu0
        %v811 = vadd.f32 0.0, %v810
        %v812 = vpop.f32.mrf.mxu0
        %813 = vdwg.mxu0
        %s814 = scalar_lea.vmem %s559, 64 [#allocation2]
        %v815 = vld [vmem:[%s814] sm:$0xf]
        %v816 = vld [vmem:[%s814 + $0x4] sm:$0xf]
        %v817 = vld [vmem:[%s814 + $0x8] sm:$0xf]
        %v818 = vld [vmem:[%s814 + $0xc] sm:$0xf]
        %v819 = vld [vmem:[%s814 + $0x10] sm:$0xf]
        %v820 = vld [vmem:[%s814 + $0x14] sm:$0xf]
        %v821 = vld [vmem:[%s814 + $0x18] sm:$0xf]
        %v822 = vld [vmem:[%s814 + $0x1c] sm:$0xf]
        %v823 = vld [vmem:[%s814 + $0x20] sm:$0xf]
        %v824 = vld [vmem:[%s814 + $0x24] sm:$0xf]
        %v825 = vld [vmem:[%s814 + $0x28] sm:$0xf]
        %v826 = vld [vmem:[%s814 + $0x2c] sm:$0xf]
        %v827 = vld [vmem:[%s814 + $0x30] sm:$0xf]
        %v828 = vld [vmem:[%s814 + $0x34] sm:$0xf]
        %v829 = vld [vmem:[%s814 + $0x38] sm:$0xf]
        %v830 = vld [vmem:[%s814 + $0x3c] sm:$0xf]
        %v847 = vunpack.c.l.b16 %v815
        %v848 = vunpack.c.l.b16 %v816
        %v849 = vunpack.c.l.b16 %v817
        %v850 = vunpack.c.l.b16 %v818
        %v851 = vunpack.c.l.b16 %v819
        %v852 = vunpack.c.l.b16 %v820
        %v853 = vunpack.c.l.b16 %v821
        %v854 = vunpack.c.l.b16 %v822
        %v855 = vunpack.c.l.b16 %v823
        %v856 = vunpack.c.l.b16 %v824
        %v857 = vunpack.c.l.b16 %v825
        %v858 = vunpack.c.l.b16 %v826
        %v859 = vunpack.c.l.b16 %v827
        %v860 = vunpack.c.l.b16 %v828
        %v861 = vunpack.c.l.b16 %v829
        %v862 = vunpack.c.l.b16 %v830
        %v863 = vpack.c.b16 %v848, %v847
        %v864 = vpack.c.b16 %v850, %v849
        %v865 = vpack.c.b16 %v852, %v851
        %v866 = vpack.c.b16 %v854, %v853
        %v867 = vpack.c.b16 %v856, %v855
        %v868 = vpack.c.b16 %v858, %v857
        %v869 = vpack.c.b16 %v860, %v859
        %v870 = vpack.c.b16 %v862, %v861
        %v872 = vsel %vm685, %v863, 0
        %v875 = vsel %vm685, %v864, 0
        %v878 = vsel %vm685, %v865, 0
        %v881 = vsel %vm685, %v866, 0
        %v884 = vsel %vm685, %v867, 0
        %v887 = vsel %vm685, %v868, 0
        %v890 = vsel %vm685, %v869, 0
        %v893 = vsel %vm685, %v870, 0
        %895 = vmatprep.subr.bf16.mxu0 0
        %896 = vmatpush1.bf16.msra.mxu0 0
        %897 = vmatprep.subr.bf16.mxu0 0
        %898 = vmatpush1.bf16.msra.mxu0 0
        %899 = vmatprep.subr.bf16.mxu0 0
        %900 = vmatpush1.bf16.msra.mxu0 0
        %901 = vmatprep.subr.bf16.mxu0 0
        %902 = vmatpush1.bf16.msra.mxu0 %v715
        %903 = vmatprep.subr.bf16.mxu0 0
        %904 = vmatpush1.bf16.msra.mxu0 %v679
        %905 = vmatprep.subr.bf16.mxu0 0
        %906 = vmatpush1.bf16.msra.mxu0 %v678
        %907 = vmatprep.subr.bf16.mxu0 0
        %908 = vmatpush1.bf16.msra.mxu0 %v677
        %909 = vmatprep.subr.bf16.mxu0 0
        %910 = vmatpush1.bf16.msra.mxu0 %v676
        %911 = vmatprep.subr.bf16.mxu0 0
        %912 = vmatpush2.bf16.msra.mxu0 0
        %913 = vmatprep.subr.bf16.mxu0 0
        %914 = vmatpush2.bf16.msra.mxu0 0
        %915 = vmatprep.subr.bf16.mxu0 0
        %916 = vmatpush2.bf16.msra.mxu0 0
        %917 = vmatprep.subr.bf16.mxu0 0
        %918 = vmatpush2.bf16.msra.mxu0 0
        %919 = vmatprep.subr.bf16.mxu0 0
        %920 = vmatpush2.bf16.msra.mxu0 0
        %921 = vmatprep.subr.bf16.mxu0 0
        %922 = vmatpush2.bf16.msra.mxu0 0
        %923 = vmatprep.subr.bf16.mxu0 0
        %924 = vmatpush2.bf16.msra.mxu0 0
        %925 = vmatprep.subr.bf16.mxu0 0
        %926 = vmatpush2.bf16.msra.mxu0 0
        %927 = vmatprep.mubr.bf16.mxu0 0
        %928 = vmatmul.mubr.bf16.gmra.mxu0 %v872
        %v929 = vpop.f32.mrf.mxu0
        %v930 = vadd.f32 0.0, %v929
        %v931 = vpop.f32.mrf.mxu0
        %v932 = vpop.f32.mrf.mxu0
        %v933 = vadd.f32 0.0, %v932
        %v934 = vpop.f32.mrf.mxu0
        %935 = vmatprep.mubr.bf16.mxu0 0
        %936 = vmatmul.mubr.bf16.gmra.mxu0 %v875
        %v937 = vpop.f32.mrf.mxu0
        %v938 = vadd.f32 0.0, %v937
        %v939 = vpop.f32.mrf.mxu0
        %v940 = vpop.f32.mrf.mxu0
        %v941 = vadd.f32 0.0, %v940
        %v942 = vpop.f32.mrf.mxu0
        %943 = vmatprep.mubr.bf16.mxu0 0
        %944 = vmatmul.mubr.bf16.gmra.mxu0 %v878
        %v945 = vpop.f32.mrf.mxu0
        %v946 = vadd.f32 0.0, %v945
        %v947 = vpop.f32.mrf.mxu0
        %v948 = vpop.f32.mrf.mxu0
        %v949 = vadd.f32 0.0, %v948
        %v950 = vpop.f32.mrf.mxu0
        %951 = vmatprep.mubr.bf16.mxu0 0
        %952 = vmatmul.mubr.bf16.gmra.mxu0 %v881
        %v953 = vpop.f32.mrf.mxu0
        %v954 = vadd.f32 0.0, %v953
        %v955 = vpop.f32.mrf.mxu0
        %v956 = vpop.f32.mrf.mxu0
        %v957 = vadd.f32 0.0, %v956
        %v958 = vpop.f32.mrf.mxu0
        %959 = vmatprep.mubr.bf16.mxu0 0
        %960 = vmatmul.mubr.bf16.gmra.mxu0 %v884
        %v961 = vpop.f32.mrf.mxu0
        %v962 = vadd.f32 0.0, %v961
        %v963 = vpop.f32.mrf.mxu0
        %v964 = vpop.f32.mrf.mxu0
        %v965 = vadd.f32 0.0, %v964
        %v966 = vpop.f32.mrf.mxu0
        %967 = vmatprep.mubr.bf16.mxu0 0
        %968 = vmatmul.mubr.bf16.gmra.mxu0 %v887
        %v969 = vpop.f32.mrf.mxu0
        %v970 = vadd.f32 0.0, %v969
        %v971 = vpop.f32.mrf.mxu0
        %v972 = vpop.f32.mrf.mxu0
        %v973 = vadd.f32 0.0, %v972
        %v974 = vpop.f32.mrf.mxu0
        %975 = vmatprep.mubr.bf16.mxu0 0
        %976 = vmatmul.mubr.bf16.gmra.mxu0 %v890
        %v977 = vpop.f32.mrf.mxu0
        %v978 = vadd.f32 0.0, %v977
        %v979 = vpop.f32.mrf.mxu0
        %v980 = vpop.f32.mrf.mxu0
        %v981 = vadd.f32 0.0, %v980
        %v982 = vpop.f32.mrf.mxu0
        %983 = vmatprep.mubr.bf16.mxu0 0
        %984 = vmatmul.mubr.bf16.gmra.mxu0 %v893
        %v985 = vpop.f32.mrf.mxu0
        %v986 = vadd.f32 0.0, %v985
        %v987 = vpop.f32.mrf.mxu0
        %v988 = vpop.f32.mrf.mxu0
        %v989 = vadd.f32 0.0, %v988
        %v990 = vpop.f32.mrf.mxu0
        %991 = vdwg.mxu0
        %v992 = vmax.f32 %v752, %v930
        %v993 = vmax.f32 %v755, %v933
        %v994 = vmax.f32 %v760, %v938
        %v995 = vmax.f32 %v763, %v941
        %v996 = vmax.f32 %v768, %v946
        %v997 = vmax.f32 %v771, %v949
        %v998 = vmax.f32 %v776, %v954
        %v999 = vmax.f32 %v779, %v957
        %v1000 = vmax.f32 %v784, %v962
        %v1001 = vmax.f32 %v787, %v965
        %v1002 = vmax.f32 %v792, %v970
        %v1003 = vmax.f32 %v795, %v973
        %v1004 = vmax.f32 %v800, %v978
        %v1005 = vmax.f32 %v803, %v981
        %v1006 = vmax.f32 %v808, %v986
        %v1007 = vmax.f32 %v811, %v989
        %s1008 = scalar_lea.vmem %s559, 128 [#allocation2]
        %v1009 = vld [vmem:[%s1008] sm:$0xf]
        %v1010 = vld [vmem:[%s1008 + $0x4] sm:$0xf]
        %v1011 = vld [vmem:[%s1008 + $0x8] sm:$0xf]
        %v1012 = vld [vmem:[%s1008 + $0xc] sm:$0xf]
        %v1013 = vld [vmem:[%s1008 + $0x10] sm:$0xf]
        %v1014 = vld [vmem:[%s1008 + $0x14] sm:$0xf]
        %v1015 = vld [vmem:[%s1008 + $0x18] sm:$0xf]
        %v1016 = vld [vmem:[%s1008 + $0x1c] sm:$0xf]
        %v1017 = vld [vmem:[%s1008 + $0x20] sm:$0xf]
        %v1018 = vld [vmem:[%s1008 + $0x24] sm:$0xf]
        %v1019 = vld [vmem:[%s1008 + $0x28] sm:$0xf]
        %v1020 = vld [vmem:[%s1008 + $0x2c] sm:$0xf]
        %v1021 = vld [vmem:[%s1008 + $0x30] sm:$0xf]
        %v1022 = vld [vmem:[%s1008 + $0x34] sm:$0xf]
        %v1023 = vld [vmem:[%s1008 + $0x38] sm:$0xf]
        %v1024 = vld [vmem:[%s1008 + $0x3c] sm:$0xf]
        %v1041 = vunpack.c.l.b16 %v1009
        %v1042 = vunpack.c.l.b16 %v1010
        %v1043 = vunpack.c.l.b16 %v1011
        %v1044 = vunpack.c.l.b16 %v1012
        %v1045 = vunpack.c.l.b16 %v1013
        %v1046 = vunpack.c.l.b16 %v1014
        %v1047 = vunpack.c.l.b16 %v1015
        %v1048 = vunpack.c.l.b16 %v1016
        %v1049 = vunpack.c.l.b16 %v1017
        %v1050 = vunpack.c.l.b16 %v1018
        %v1051 = vunpack.c.l.b16 %v1019
        %v1052 = vunpack.c.l.b16 %v1020
        %v1053 = vunpack.c.l.b16 %v1021
        %v1054 = vunpack.c.l.b16 %v1022
        %v1055 = vunpack.c.l.b16 %v1023
        %v1056 = vunpack.c.l.b16 %v1024
        %v1057 = vpack.c.b16 %v1042, %v1041
        %v1058 = vpack.c.b16 %v1044, %v1043
        %v1059 = vpack.c.b16 %v1046, %v1045
        %v1060 = vpack.c.b16 %v1048, %v1047
        %v1061 = vpack.c.b16 %v1050, %v1049
        %v1062 = vpack.c.b16 %v1052, %v1051
        %v1063 = vpack.c.b16 %v1054, %v1053
        %v1064 = vpack.c.b16 %v1056, %v1055
        %v1066 = vsel %vm685, %v1057, 0
        %v1069 = vsel %vm685, %v1058, 0
        %v1072 = vsel %vm685, %v1059, 0
        %v1075 = vsel %vm685, %v1060, 0
        %v1078 = vsel %vm685, %v1061, 0
        %v1081 = vsel %vm685, %v1062, 0
        %v1084 = vsel %vm685, %v1063, 0
        %v1087 = vsel %vm685, %v1064, 0
        %1089 = vmatprep.subr.bf16.mxu0 0
        %1090 = vmatpush1.bf16.msra.mxu0 0
        %1091 = vmatprep.subr.bf16.mxu0 0
        %1092 = vmatpush1.bf16.msra.mxu0 0
        %1093 = vmatprep.subr.bf16.mxu0 0
        %1094 = vmatpush1.bf16.msra.mxu0 0
        %1095 = vmatprep.subr.bf16.mxu0 0
        %1096 = vmatpush1.bf16.msra.mxu0 %v715
        %1097 = vmatprep.subr.bf16.mxu0 0
        %1098 = vmatpush1.bf16.msra.mxu0 %v679
        %1099 = vmatprep.subr.bf16.mxu0 0
        %1100 = vmatpush1.bf16.msra.mxu0 %v678
        %1101 = vmatprep.subr.bf16.mxu0 0
        %1102 = vmatpush1.bf16.msra.mxu0 %v677
        %1103 = vmatprep.subr.bf16.mxu0 0
        %1104 = vmatpush1.bf16.msra.mxu0 %v676
        %1105 = vmatprep.subr.bf16.mxu0 0
        %1106 = vmatpush2.bf16.msra.mxu0 0
        %1107 = vmatprep.subr.bf16.mxu0 0
        %1108 = vmatpush2.bf16.msra.mxu0 0
        %1109 = vmatprep.subr.bf16.mxu0 0
        %1110 = vmatpush2.bf16.msra.mxu0 0
        %1111 = vmatprep.subr.bf16.mxu0 0
        %1112 = vmatpush2.bf16.msra.mxu0 0
        %1113 = vmatprep.subr.bf16.mxu0 0
        %1114 = vmatpush2.bf16.msra.mxu0 0
        %1115 = vmatprep.subr.bf16.mxu0 0
        %1116 = vmatpush2.bf16.msra.mxu0 0
        %1117 = vmatprep.subr.bf16.mxu0 0
        %1118 = vmatpush2.bf16.msra.mxu0 0
        %1119 = vmatprep.subr.bf16.mxu0 0
        %1120 = vmatpush2.bf16.msra.mxu0 0
        %1121 = vmatprep.mubr.bf16.mxu0 0
        %1122 = vmatmul.mubr.bf16.gmra.mxu0 %v1066
        %v1123 = vpop.f32.mrf.mxu0
        %v1124 = vadd.f32 0.0, %v1123
        %v1125 = vpop.f32.mrf.mxu0
        %v1126 = vpop.f32.mrf.mxu0
        %v1127 = vadd.f32 0.0, %v1126
        %v1128 = vpop.f32.mrf.mxu0
        %1129 = vmatprep.mubr.bf16.mxu0 0
        %1130 = vmatmul.mubr.bf16.gmra.mxu0 %v1069
        %v1131 = vpop.f32.mrf.mxu0
        %v1132 = vadd.f32 0.0, %v1131
        %v1133 = vpop.f32.mrf.mxu0
        %v1134 = vpop.f32.mrf.mxu0
        %v1135 = vadd.f32 0.0, %v1134
        %v1136 = vpop.f32.mrf.mxu0
        %1137 = vmatprep.mubr.bf16.mxu0 0
        %1138 = vmatmul.mubr.bf16.gmra.mxu0 %v1072
        %v1139 = vpop.f32.mrf.mxu0
        %v1140 = vadd.f32 0.0, %v1139
        %v1141 = vpop.f32.mrf.mxu0
        %v1142 = vpop.f32.mrf.mxu0
        %v1143 = vadd.f32 0.0, %v1142
        %v1144 = vpop.f32.mrf.mxu0
        %1145 = vmatprep.mubr.bf16.mxu0 0
        %1146 = vmatmul.mubr.bf16.gmra.mxu0 %v1075
        %v1147 = vpop.f32.mrf.mxu0
        %v1148 = vadd.f32 0.0, %v1147
        %v1149 = vpop.f32.mrf.mxu0
        %v1150 = vpop.f32.mrf.mxu0
        %v1151 = vadd.f32 0.0, %v1150
        %v1152 = vpop.f32.mrf.mxu0
        %1153 = vmatprep.mubr.bf16.mxu0 0
        %1154 = vmatmul.mubr.bf16.gmra.mxu0 %v1078
        %v1155 = vpop.f32.mrf.mxu0
        %v1156 = vadd.f32 0.0, %v1155
        %v1157 = vpop.f32.mrf.mxu0
        %v1158 = vpop.f32.mrf.mxu0
        %v1159 = vadd.f32 0.0, %v1158
        %v1160 = vpop.f32.mrf.mxu0
        %1161 = vmatprep.mubr.bf16.mxu0 0
        %1162 = vmatmul.mubr.bf16.gmra.mxu0 %v1081
        %v1163 = vpop.f32.mrf.mxu0
        %v1164 = vadd.f32 0.0, %v1163
        %v1165 = vpop.f32.mrf.mxu0
        %v1166 = vpop.f32.mrf.mxu0
        %v1167 = vadd.f32 0.0, %v1166
        %v1168 = vpop.f32.mrf.mxu0
        %1169 = vmatprep.mubr.bf16.mxu0 0
        %1170 = vmatmul.mubr.bf16.gmra.mxu0 %v1084
        %v1171 = vpop.f32.mrf.mxu0
        %v1172 = vadd.f32 0.0, %v1171
        %v1173 = vpop.f32.mrf.mxu0
        %v1174 = vpop.f32.mrf.mxu0
        %v1175 = vadd.f32 0.0, %v1174
        %v1176 = vpop.f32.mrf.mxu0
        %1177 = vmatprep.mubr.bf16.mxu0 0
        %1178 = vmatmul.mubr.bf16.gmra.mxu0 %v1087
        %v1179 = vpop.f32.mrf.mxu0
        %v1180 = vadd.f32 0.0, %v1179
        %v1181 = vpop.f32.mrf.mxu0
        %v1182 = vpop.f32.mrf.mxu0
        %v1183 = vadd.f32 0.0, %v1182
        %v1184 = vpop.f32.mrf.mxu0
        %1185 = vdwg.mxu0
        %v1186 = vmax.f32 %v992, %v1124
        %v1187 = vmax.f32 %v993, %v1127
        %v1188 = vmax.f32 %v994, %v1132
        %v1189 = vmax.f32 %v995, %v1135
        %v1190 = vmax.f32 %v996, %v1140
        %v1191 = vmax.f32 %v997, %v1143
        %v1192 = vmax.f32 %v998, %v1148
        %v1193 = vmax.f32 %v999, %v1151
        %v1194 = vmax.f32 %v1000, %v1156
        %v1195 = vmax.f32 %v1001, %v1159
        %v1196 = vmax.f32 %v1002, %v1164
        %v1197 = vmax.f32 %v1003, %v1167
        %v1198 = vmax.f32 %v1004, %v1172
        %v1199 = vmax.f32 %v1005, %v1175
        %v1200 = vmax.f32 %v1006, %v1180
        %v1201 = vmax.f32 %v1007, %v1183
        %s1202 = scalar_lea.vmem %s559, 192 [#allocation2]
        %v1203 = vld [vmem:[%s1202] sm:$0xf]
        %v1204 = vld [vmem:[%s1202 + $0x4] sm:$0xf]
        %v1205 = vld [vmem:[%s1202 + $0x8] sm:$0xf]
        %v1206 = vld [vmem:[%s1202 + $0xc] sm:$0xf]
        %v1207 = vld [vmem:[%s1202 + $0x10] sm:$0xf]
        %v1208 = vld [vmem:[%s1202 + $0x14] sm:$0xf]
        %v1209 = vld [vmem:[%s1202 + $0x18] sm:$0xf]
        %v1210 = vld [vmem:[%s1202 + $0x1c] sm:$0xf]
        %v1211 = vld [vmem:[%s1202 + $0x20] sm:$0xf]
        %v1212 = vld [vmem:[%s1202 + $0x24] sm:$0xf]
        %v1213 = vld [vmem:[%s1202 + $0x28] sm:$0xf]
        %v1214 = vld [vmem:[%s1202 + $0x2c] sm:$0xf]
        %v1215 = vld [vmem:[%s1202 + $0x30] sm:$0xf]
        %v1216 = vld [vmem:[%s1202 + $0x34] sm:$0xf]
        %v1217 = vld [vmem:[%s1202 + $0x38] sm:$0xf]
        %v1218 = vld [vmem:[%s1202 + $0x3c] sm:$0xf]
        %v1235 = vunpack.c.l.b16 %v1203
        %v1236 = vunpack.c.l.b16 %v1204
        %v1237 = vunpack.c.l.b16 %v1205
        %v1238 = vunpack.c.l.b16 %v1206
        %v1239 = vunpack.c.l.b16 %v1207
        %v1240 = vunpack.c.l.b16 %v1208
        %v1241 = vunpack.c.l.b16 %v1209
        %v1242 = vunpack.c.l.b16 %v1210
        %v1243 = vunpack.c.l.b16 %v1211
        %v1244 = vunpack.c.l.b16 %v1212
        %v1245 = vunpack.c.l.b16 %v1213
        %v1246 = vunpack.c.l.b16 %v1214
        %v1247 = vunpack.c.l.b16 %v1215
        %v1248 = vunpack.c.l.b16 %v1216
        %v1249 = vunpack.c.l.b16 %v1217
        %v1250 = vunpack.c.l.b16 %v1218
        %v1251 = vpack.c.b16 %v1236, %v1235
        %v1252 = vpack.c.b16 %v1238, %v1237
        %v1253 = vpack.c.b16 %v1240, %v1239
        %v1254 = vpack.c.b16 %v1242, %v1241
        %v1255 = vpack.c.b16 %v1244, %v1243
        %v1256 = vpack.c.b16 %v1246, %v1245
        %v1257 = vpack.c.b16 %v1248, %v1247
        %v1258 = vpack.c.b16 %v1250, %v1249
        %v1260 = vsel %vm685, %v1251, 0
        %v1263 = vsel %vm685, %v1252, 0
        %v1266 = vsel %vm685, %v1253, 0
        %v1269 = vsel %vm685, %v1254, 0
        %v1272 = vsel %vm685, %v1255, 0
        %v1275 = vsel %vm685, %v1256, 0
        %v1278 = vsel %vm685, %v1257, 0
        %v1281 = vsel %vm685, %v1258, 0
        %1283 = vmatprep.subr.bf16.mxu0 0
        %1284 = vmatpush1.bf16.msra.mxu0 0
        %1285 = vmatprep.subr.bf16.mxu0 0
        %1286 = vmatpush1.bf16.msra.mxu0 0
        %1287 = vmatprep.subr.bf16.mxu0 0
        %1288 = vmatpush1.bf16.msra.mxu0 0
        %1289 = vmatprep.subr.bf16.mxu0 0
        %1290 = vmatpush1.bf16.msra.mxu0 %v715
        %1291 = vmatprep.subr.bf16.mxu0 0
        %1292 = vmatpush1.bf16.msra.mxu0 %v679
        %1293 = vmatprep.subr.bf16.mxu0 0
        %1294 = vmatpush1.bf16.msra.mxu0 %v678
        %1295 = vmatprep.subr.bf16.mxu0 0
        %1296 = vmatpush1.bf16.msra.mxu0 %v677
        %1297 = vmatprep.subr.bf16.mxu0 0
        %1298 = vmatpush1.bf16.msra.mxu0 %v676
        %1299 = vmatprep.subr.bf16.mxu0 0
        %1300 = vmatpush2.bf16.msra.mxu0 0
        %1301 = vmatprep.subr.bf16.mxu0 0
        %1302 = vmatpush2.bf16.msra.mxu0 0
        %1303 = vmatprep.subr.bf16.mxu0 0
        %1304 = vmatpush2.bf16.msra.mxu0 0
        %1305 = vmatprep.subr.bf16.mxu0 0
        %1306 = vmatpush2.bf16.msra.mxu0 0
        %1307 = vmatprep.subr.bf16.mxu0 0
        %1308 = vmatpush2.bf16.msra.mxu0 0
        %1309 = vmatprep.subr.bf16.mxu0 0
        %1310 = vmatpush2.bf16.msra.mxu0 0
        %1311 = vmatprep.subr.bf16.mxu0 0
        %1312 = vmatpush2.bf16.msra.mxu0 0
        %1313 = vmatprep.subr.bf16.mxu0 0
        %1314 = vmatpush2.bf16.msra.mxu0 0
        %1315 = vmatprep.mubr.bf16.mxu0 0
        %1316 = vmatmul.mubr.bf16.gmra.mxu0 %v1260
        %v1317 = vpop.f32.mrf.mxu0
        %v1318 = vadd.f32 0.0, %v1317
        %v1319 = vpop.f32.mrf.mxu0
        %v1320 = vpop.f32.mrf.mxu0
        %v1321 = vadd.f32 0.0, %v1320
        %v1322 = vpop.f32.mrf.mxu0
        %1323 = vmatprep.mubr.bf16.mxu0 0
        %1324 = vmatmul.mubr.bf16.gmra.mxu0 %v1263
        %v1325 = vpop.f32.mrf.mxu0
        %v1326 = vadd.f32 0.0, %v1325
        %v1327 = vpop.f32.mrf.mxu0
        %v1328 = vpop.f32.mrf.mxu0
        %v1329 = vadd.f32 0.0, %v1328
        %v1330 = vpop.f32.mrf.mxu0
        %1331 = vmatprep.mubr.bf16.mxu0 0
        %1332 = vmatmul.mubr.bf16.gmra.mxu0 %v1266
        %v1333 = vpop.f32.mrf.mxu0
        %v1334 = vadd.f32 0.0, %v1333
        %v1335 = vpop.f32.mrf.mxu0
        %v1336 = vpop.f32.mrf.mxu0
        %v1337 = vadd.f32 0.0, %v1336
        %v1338 = vpop.f32.mrf.mxu0
        %1339 = vmatprep.mubr.bf16.mxu0 0
        %1340 = vmatmul.mubr.bf16.gmra.mxu0 %v1269
        %v1341 = vpop.f32.mrf.mxu0
        %v1342 = vadd.f32 0.0, %v1341
        %v1343 = vpop.f32.mrf.mxu0
        %v1344 = vpop.f32.mrf.mxu0
        %v1345 = vadd.f32 0.0, %v1344
        %v1346 = vpop.f32.mrf.mxu0
        %1347 = vmatprep.mubr.bf16.mxu0 0
        %1348 = vmatmul.mubr.bf16.gmra.mxu0 %v1272
        %v1349 = vpop.f32.mrf.mxu0
        %v1350 = vadd.f32 0.0, %v1349
        %v1351 = vpop.f32.mrf.mxu0
        %v1352 = vpop.f32.mrf.mxu0
        %v1353 = vadd.f32 0.0, %v1352
        %v1354 = vpop.f32.mrf.mxu0
        %1355 = vmatprep.mubr.bf16.mxu0 0
        %1356 = vmatmul.mubr.bf16.gmra.mxu0 %v1275
        %v1357 = vpop.f32.mrf.mxu0
        %v1358 = vadd.f32 0.0, %v1357
        %v1359 = vpop.f32.mrf.mxu0
        %v1360 = vpop.f32.mrf.mxu0
        %v1361 = vadd.f32 0.0, %v1360
        %v1362 = vpop.f32.mrf.mxu0
        %1363 = vmatprep.mubr.bf16.mxu0 0
        %1364 = vmatmul.mubr.bf16.gmra.mxu0 %v1278
        %v1365 = vpop.f32.mrf.mxu0
        %v1366 = vadd.f32 0.0, %v1365
        %v1367 = vpop.f32.mrf.mxu0
        %v1368 = vpop.f32.mrf.mxu0
        %v1369 = vadd.f32 0.0, %v1368
        %v1370 = vpop.f32.mrf.mxu0
        %1371 = vmatprep.mubr.bf16.mxu0 0
        %1372 = vmatmul.mubr.bf16.gmra.mxu0 %v1281
        %v1373 = vpop.f32.mrf.mxu0
        %v1374 = vadd.f32 0.0, %v1373
        %v1375 = vpop.f32.mrf.mxu0
        %v1376 = vpop.f32.mrf.mxu0
        %v1377 = vadd.f32 0.0, %v1376
        %v1378 = vpop.f32.mrf.mxu0
        %1379 = vdwg.mxu0
        %v1380 = vmax.f32 %v1186, %v1318
        %v1381 = vmax.f32 %v1187, %v1321
        %v1382 = vmax.f32 %v1188, %v1326
        %v1383 = vmax.f32 %v1189, %v1329
        %v1384 = vmax.f32 %v1190, %v1334
        %v1385 = vmax.f32 %v1191, %v1337
        %v1386 = vmax.f32 %v1192, %v1342
        %v1387 = vmax.f32 %v1193, %v1345
        %v1388 = vmax.f32 %v1194, %v1350
        %v1389 = vmax.f32 %v1195, %v1353
        %v1390 = vmax.f32 %v1196, %v1358
        %v1391 = vmax.f32 %v1197, %v1361
        %v1392 = vmax.f32 %v1198, %v1366
        %v1393 = vmax.f32 %v1199, %v1369
        %v1394 = vmax.f32 %v1200, %v1374
        %v1395 = vmax.f32 %v1201, %v1377
        %v1396 = vld [vmem:[%s2] sm:$0x1]
        %v1398 = vlaneseq
        %v1399 = vshrl.u32 %v1398, 7
        %v1400 = vsub.s32 0, %v1399
        %v1401 = vrot.slane %v1396, %v1400
        %v1403 = vadd.f32 %v1380, %v1401
        %v1404 = vadd.f32 %v1381, %v1401
        %v1405 = vadd.f32 %v1382, %v1401
        %v1406 = vadd.f32 %v1383, %v1401
        %v1407 = vadd.f32 %v1384, %v1401
        %v1408 = vadd.f32 %v1385, %v1401
        %v1409 = vadd.f32 %v1386, %v1401
        %v1410 = vadd.f32 %v1387, %v1401
        %v1411 = vadd.f32 %v1388, %v1401
        %v1412 = vadd.f32 %v1389, %v1401
        %v1413 = vadd.f32 %v1390, %v1401
        %v1414 = vadd.f32 %v1391, %v1401
        %v1415 = vadd.f32 %v1392, %v1401
        %v1416 = vadd.f32 %v1393, %v1401
        %v1417 = vadd.f32 %v1394, %v1401
        %v1418 = vadd.f32 %v1395, %v1401
        %v1419 = vmax.f32 %v1403, 0.0
        %v1420 = vmax.f32 %v1404, 0.0
        %v1421 = vmax.f32 %v1405, 0.0
        %v1422 = vmax.f32 %v1406, 0.0
        %v1423 = vmax.f32 %v1407, 0.0
        %v1424 = vmax.f32 %v1408, 0.0
        %v1425 = vmax.f32 %v1409, 0.0
        %v1426 = vmax.f32 %v1410, 0.0
        %v1427 = vmax.f32 %v1411, 0.0
        %v1428 = vmax.f32 %v1412, 0.0
        %v1429 = vmax.f32 %v1413, 0.0
        %v1430 = vmax.f32 %v1414, 0.0
        %v1431 = vmax.f32 %v1415, 0.0
        %v1432 = vmax.f32 %v1416, 0.0
        %v1433 = vmax.f32 %v1417, 0.0
        %v1434 = vmax.f32 %v1418, 0.0
        %v1435 = vpack.c.bf16 %v1420, %v1419
        %v1436 = vpack.c.bf16 %v1422, %v1421
        %v1437 = vpack.c.bf16 %v1424, %v1423
        %v1438 = vpack.c.bf16 %v1426, %v1425
        %v1439 = vpack.c.bf16 %v1428, %v1427
        %v1440 = vpack.c.bf16 %v1430, %v1429
        %v1441 = vpack.c.bf16 %v1432, %v1431
        %v1442 = vpack.c.bf16 %v1434, %v1433
        %v1451 = vunpack.c.l.b16 %v1435
        %v1452 = vunpack.c.h.b16 %v1435
        %v1453 = vunpack.c.l.b16 %v1436
        %v1454 = vunpack.c.h.b16 %v1436
        %v1455 = vunpack.c.l.b16 %v1437
        %v1456 = vunpack.c.h.b16 %v1437
        %v1457 = vunpack.c.l.b16 %v1438
        %v1458 = vunpack.c.h.b16 %v1438
        %v1459 = vunpack.c.l.b16 %v1439
        %v1460 = vunpack.c.h.b16 %v1439
        %v1461 = vunpack.c.l.b16 %v1440
        %v1462 = vunpack.c.h.b16 %v1440
        %v1463 = vunpack.c.l.b16 %v1441
        %v1464 = vunpack.c.h.b16 %v1441
        %v1465 = vunpack.c.l.b16 %v1442
        %v1466 = vunpack.c.h.b16 %v1442
        %v1467 = vpack.c.b16 %v1451, %v1451
        %v1468 = vpack.c.b16 %v1452, %v1452
        %v1469 = vpack.c.b16 %v1453, %v1453
        %v1470 = vpack.c.b16 %v1454, %v1454
        %v1471 = vpack.c.b16 %v1455, %v1455
        %v1472 = vpack.c.b16 %v1456, %v1456
        %v1473 = vpack.c.b16 %v1457, %v1457
        %v1474 = vpack.c.b16 %v1458, %v1458
        %v1475 = vpack.c.b16 %v1459, %v1459
        %v1476 = vpack.c.b16 %v1460, %v1460
        %v1477 = vpack.c.b16 %v1461, %v1461
        %v1478 = vpack.c.b16 %v1462, %v1462
        %v1479 = vpack.c.b16 %v1463, %v1463
        %v1480 = vpack.c.b16 %v1464, %v1464
        %v1481 = vpack.c.b16 %v1465, %v1465
        %v1482 = vpack.c.b16 %v1466, %v1466
        %1499 = vst [vmem:[%s578] sm:$0xf] %v1467
        %1500 = vst [vmem:[%s578 + $0x4] sm:$0xf] %v1468
        %1501 = vst [vmem:[%s578 + $0x8] sm:$0xf] %v1469
        %1502 = vst [vmem:[%s578 + $0xc] sm:$0xf] %v1470
        %1503 = vst [vmem:[%s578 + $0x10] sm:$0xf] %v1471
        %1504 = vst [vmem:[%s578 + $0x14] sm:$0xf] %v1472
        %1505 = vst [vmem:[%s578 + $0x18] sm:$0xf] %v1473
        %1506 = vst [vmem:[%s578 + $0x1c] sm:$0xf] %v1474
        %1507 = vst [vmem:[%s578 + $0x20] sm:$0xf] %v1475
        %1508 = vst [vmem:[%s578 + $0x24] sm:$0xf] %v1476
        %1509 = vst [vmem:[%s578 + $0x28] sm:$0xf] %v1477
        %1510 = vst [vmem:[%s578 + $0x2c] sm:$0xf] %v1478
        %1511 = vst [vmem:[%s578 + $0x30] sm:$0xf] %v1479
        %1512 = vst [vmem:[%s578 + $0x34] sm:$0xf] %v1480
        %1513 = vst [vmem:[%s578 + $0x38] sm:$0xf] %v1481
        %1514 = vst [vmem:[%s578 + $0x3c] sm:$0xf] %v1482
        %s1515 = sand.u32 %s90, 1
        %s1516 = sand.u32 %s90, 1
        %s1517 = smul.addr %s1516, 64
        %s1518 = scalar_lea.vmem [#allocation3], %s1517
        // Predicated region
        $region95: #{cifar_convnet_forward.3} parent=89 // pred_check
          %p1519 = pneg %p100
        $region96: #{cifar_convnet_forward.3} parent=89 // pred_check_branch
          %1521 = sbr.rel (%p1519) target = $region98
        $region97: #{cifar_convnet_forward.3} parent=89 // pred_region
          %s1522 = smul.u32 16, %s14
          %s1523 = ssub.s32 49, %s1522
          %p1524 = scmp.lt.s32.totalorder %s1523, 16
          %s1525 = scalar_select %p1524, %s1523, 16
          %s1526 = smul.u32 64, %s1525
          %p1527 = scmp.ne.s32.totalorder 0, %s1526
          %s1528 = smul.addr %s1522, 4
          %s1529 = scalar_lea.vmem %s3, %s1528
          // Predicated region
          $region99: #{cifar_convnet_forward.3} parent=97 // pred_check
            %p1530 = pneg %p1527
          $region100: #{cifar_convnet_forward.3} parent=97 // pred_check_branch
            %1532 = sbr.rel (%p1530) target = $region102
          $region101: #{cifar_convnet_forward.3} parent=97 // pred_region
            // Predicated region
            $region103: #{cifar_convnet_forward.3} parent=101 // pred_check
              _
            $region104: #{cifar_convnet_forward.3} parent=101 // pred_check_branch
              %1534 = sbr.rel target = $region106
            $region105: #{cifar_convnet_forward.3} parent=101 // pred_region
              // Predicated region
              $region125: #{cifar_convnet_forward.3} parent=105 // pred_check
                _
              $region126: #{cifar_convnet_forward.3} parent=105 // pred_check_branch
                %1614 = sbr.rel (0) target = $region128
              $region127: #{cifar_convnet_forward.3} parent=105 // pred_region
                %s1616 = ssub.s32 16, 1
                %s1617 = sshrl.u32 %s1525, 4
                // While loop
                $region129: #{cifar_convnet_forward.3} parent=127 // loop_pre_header
                  _
                $region130: #{cifar_convnet_forward.3} parent=127 // loop_header
                  %s1619 = sphi 0, %s1621
                  %p1620 = scmp.ge.s32.totalorder %s1619, %s1617
                  %s1624 = sphi 0, %s1661
                  %s1625 = sphi %s1518, %s1664
                  %s1626 = sphi %s1529, %s1665
                $region131: #{cifar_convnet_forward.3} parent=127 // loop_header_branch
                  %1623 = sbr.rel (%p1620) target = $region135
                $region132: #{cifar_convnet_forward.3} parent=127 // loop_body
                  %v1627 = vld [vmem:[%s1625] sm:%s1616]
                  %1628 = vst [vmem:[%s1626] sm:%s1616] %v1627
                  %v1629 = vld [vmem:[%s1625 + $0x4] sm:%s1616]
                  %1630 = vst [vmem:[%s1626 + $0x4] sm:%s1616] %v1629
                  %v1631 = vld [vmem:[%s1625 + $0x8] sm:%s1616]
                  %1632 = vst [vmem:[%s1626 + $0x8] sm:%s1616] %v1631
                  %v1633 = vld [vmem:[%s1625 + $0xc] sm:%s1616]
                  %1634 = vst [vmem:[%s1626 + $0xc] sm:%s1616] %v1633
                  %v1635 = vld [vmem:[%s1625 + $0x10] sm:%s1616]
                  %1636 = vst [vmem:[%s1626 + $0x10] sm:%s1616] %v1635
                  %v1637 = vld [vmem:[%s1625 + $0x14] sm:%s1616]
                  %1638 = vst [vmem:[%s1626 + $0x14] sm:%s1616] %v1637
                  %v1639 = vld [vmem:[%s1625 + $0x18] sm:%s1616]
                  %1640 = vst [vmem:[%s1626 + $0x18] sm:%s1616] %v1639
                  %v1641 = vld [vmem:[%s1625 + $0x1c] sm:%s1616]
                  %1642 = vst [vmem:[%s1626 + $0x1c] sm:%s1616] %v1641
                  %v1643 = vld [vmem:[%s1625 + $0x20] sm:%s1616]
                  %1644 = vst [vmem:[%s1626 + $0x20] sm:%s1616] %v1643
                  %v1645 = vld [vmem:[%s1625 + $0x24] sm:%s1616]
                  %1646 = vst [vmem:[%s1626 + $0x24] sm:%s1616] %v1645
                  %v1647 = vld [vmem:[%s1625 + $0x28] sm:%s1616]
                  %1648 = vst [vmem:[%s1626 + $0x28] sm:%s1616] %v1647
                  %v1649 = vld [vmem:[%s1625 + $0x2c] sm:%s1616]
                  %1650 = vst [vmem:[%s1626 + $0x2c] sm:%s1616] %v1649
                  %v1651 = vld [vmem:[%s1625 + $0x30] sm:%s1616]
                  %1652 = vst [vmem:[%s1626 + $0x30] sm:%s1616] %v1651
                  %v1653 = vld [vmem:[%s1625 + $0x34] sm:%s1616]
                  %1654 = vst [vmem:[%s1626 + $0x34] sm:%s1616] %v1653
                  %v1655 = vld [vmem:[%s1625 + $0x38] sm:%s1616]
                  %1656 = vst [vmem:[%s1626 + $0x38] sm:%s1616] %v1655
                  %v1657 = vld [vmem:[%s1625 + $0x3c] sm:%s1616]
                  %1658 = vst [vmem:[%s1626 + $0x3c] sm:%s1616] %v1657
                  %s1659 = sadd.s32 1, %s1624
                  %p1660 = scmp.ge.s32.totalorder %s1659, %s1617
                  %s1661 = scalar_select %p1660, 0, %s1659
                  %s1662 = smul.u32 %s1661, 64
                  %s1663 = smul.u32 %s1661, 64
                  %s1664 = scalar_lea.vmem %s1518, %s1662 [#allocation3]
                  %s1665 = scalar_lea.vmem %s1529, %s1663
                $region133: #{cifar_convnet_forward.3} parent=127 // loop_footer
                  %s1621 = sadd.s32 %s1619, 1
                $region134: #{cifar_convnet_forward.3} parent=127 // loop_footer_branch
                  %1618 = sbr.rel target = $region130
                $region135: #{cifar_convnet_forward.3} parent=127 // loop_exit
                  _
                %s1666 = sshrl.u32 %s1525, 4
                %s1667 = sand.u32 %s1525, 15
                %s1668 = smul.u32 %s1666, 16
                %s1669 = smul.u32 4, %s1668
                %s1670 = scalar_lea.vmem %s1518, %s1669 [#allocation3]
                %s1671 = smul.u32 4, %s1668
                %s1672 = scalar_lea.vmem %s1529, %s1671
                // While loop
                $region136: #{cifar_convnet_forward.3} parent=127 // loop_pre_header
                  _
                $region137: #{cifar_convnet_forward.3} parent=127 // loop_header
                  %s1674 = sphi 0, %s1676
                  %p1675 = scmp.ge.s32.totalorder %s1674, %s1667
                  %s1679 = sphi 0, %s1686
                  %s1680 = sphi %s1670, %s1689
                  %s1681 = sphi %s1672, %s1690
                $region138: #{cifar_convnet_forward.3} parent=127 // loop_header_branch
                  %1678 = sbr.rel (%p1675) target = $region142
                $region139: #{cifar_convnet_forward.3} parent=127 // loop_body
                  %v1682 = vld [vmem:[%s1680] sm:%s1616]
                  %1683 = vst [vmem:[%s1681] sm:%s1616] %v1682
                  %s1684 = sadd.s32 1, %s1679
                  %p1685 = scmp.ge.s32.totalorder %s1684, %s1667
                  %s1686 = scalar_select %p1685, 0, %s1684
                  %s1687 = smul.u32 %s1686, 4
                  %s1688 = smul.u32 %s1686, 4
                  %s1689 = scalar_lea.vmem %s1670, %s1687 [#allocation3]
                  %s1690 = scalar_lea.vmem %s1672, %s1688
                $region140: #{cifar_convnet_forward.3} parent=127 // loop_footer
                  %s1676 = sadd.s32 %s1674, 1
                $region141: #{cifar_convnet_forward.3} parent=127 // loop_footer_branch
                  %1673 = sbr.rel target = $region137
                $region142: #{cifar_convnet_forward.3} parent=127 // loop_exit
                  _
              $region128: #{cifar_convnet_forward.3} parent=105 // pred_fallthru
                _
            $region106: #{cifar_convnet_forward.3} parent=101 // pred_fallthru
              _
            // Predicated region
            $region107: #{cifar_convnet_forward.3} parent=101 // pred_check
              _
            $region108: #{cifar_convnet_forward.3} parent=101 // pred_check_branch
              %1536 = sbr.rel (0) target = $region110
            $region109: #{cifar_convnet_forward.3} parent=101 // pred_region
              %s1538 = ssub.s32 16, 1
              %s1539 = sshrl.u32 %s1525, 4
              // While loop
              $region111: #{cifar_convnet_forward.3} parent=109 // loop_pre_header
                _
              $region112: #{cifar_convnet_forward.3} parent=109 // loop_header
                %s1541 = sphi 0, %s1543
                %p1542 = scmp.ge.s32.totalorder %s1541, %s1539
                %s1546 = sphi 0, %s1583
                %s1547 = sphi %s1518, %s1586
                %s1548 = sphi %s1529, %s1587
              $region113: #{cifar_convnet_forward.3} parent=109 // loop_header_branch
                %1545 = sbr.rel (%p1542) target = $region117
              $region114: #{cifar_convnet_forward.3} parent=109 // loop_body
                %v1549 = vld [vmem:[%s1547] sm:%s1538]
                %1550 = vst [vmem:[%s1548] sm:%s1538] %v1549
                %v1551 = vld [vmem:[%s1547 + $0x4] sm:%s1538]
                %1552 = vst [vmem:[%s1548 + $0x4] sm:%s1538] %v1551
                %v1553 = vld [vmem:[%s1547 + $0x8] sm:%s1538]
                %1554 = vst [vmem:[%s1548 + $0x8] sm:%s1538] %v1553
                %v1555 = vld [vmem:[%s1547 + $0xc] sm:%s1538]
                %1556 = vst [vmem:[%s1548 + $0xc] sm:%s1538] %v1555
                %v1557 = vld [vmem:[%s1547 + $0x10] sm:%s1538]
                %1558 = vst [vmem:[%s1548 + $0x10] sm:%s1538] %v1557
                %v1559 = vld [vmem:[%s1547 + $0x14] sm:%s1538]
                %1560 = vst [vmem:[%s1548 + $0x14] sm:%s1538] %v1559
                %v1561 = vld [vmem:[%s1547 + $0x18] sm:%s1538]
                %1562 = vst [vmem:[%s1548 + $0x18] sm:%s1538] %v1561
                %v1563 = vld [vmem:[%s1547 + $0x1c] sm:%s1538]
                %1564 = vst [vmem:[%s1548 + $0x1c] sm:%s1538] %v1563
                %v1565 = vld [vmem:[%s1547 + $0x20] sm:%s1538]
                %1566 = vst [vmem:[%s1548 + $0x20] sm:%s1538] %v1565
                %v1567 = vld [vmem:[%s1547 + $0x24] sm:%s1538]
                %1568 = vst [vmem:[%s1548 + $0x24] sm:%s1538] %v1567
                %v1569 = vld [vmem:[%s1547 + $0x28] sm:%s1538]
                %1570 = vst [vmem:[%s1548 + $0x28] sm:%s1538] %v1569
                %v1571 = vld [vmem:[%s1547 + $0x2c] sm:%s1538]
                %1572 = vst [vmem:[%s1548 + $0x2c] sm:%s1538] %v1571
                %v1573 = vld [vmem:[%s1547 + $0x30] sm:%s1538]
                %1574 = vst [vmem:[%s1548 + $0x30] sm:%s1538] %v1573
                %v1575 = vld [vmem:[%s1547 + $0x34] sm:%s1538]
                %1576 = vst [vmem:[%s1548 + $0x34] sm:%s1538] %v1575
                %v1577 = vld [vmem:[%s1547 + $0x38] sm:%s1538]
                %1578 = vst [vmem:[%s1548 + $0x38] sm:%s1538] %v1577
                %v1579 = vld [vmem:[%s1547 + $0x3c] sm:%s1538]
                %1580 = vst [vmem:[%s1548 + $0x3c] sm:%s1538] %v1579
                %s1581 = sadd.s32 1, %s1546
                %p1582 = scmp.ge.s32.totalorder %s1581, %s1539
                %s1583 = scalar_select %p1582, 0, %s1581
                %s1584 = smul.u32 %s1583, 64
                %s1585 = smul.u32 %s1583, 64
                %s1586 = scalar_lea.vmem %s1518, %s1584 [#allocation3]
                %s1587 = scalar_lea.vmem %s1529, %s1585
              $region115: #{cifar_convnet_forward.3} parent=109 // loop_footer
                %s1543 = sadd.s32 %s1541, 1
              $region116: #{cifar_convnet_forward.3} parent=109 // loop_footer_branch
                %1540 = sbr.rel target = $region112
              $region117: #{cifar_convnet_forward.3} parent=109 // loop_exit
                _
              %s1588 = sshrl.u32 %s1525, 4
              %s1589 = sand.u32 %s1525, 15
              %s1590 = smul.u32 %s1588, 16
              %s1591 = smul.u32 4, %s1590
              %s1592 = scalar_lea.vmem %s1518, %s1591 [#allocation3]
              %s1593 = smul.u32 4, %s1590
              %s1594 = scalar_lea.vmem %s1529, %s1593
              // While loop
              $region118: #{cifar_convnet_forward.3} parent=109 // loop_pre_header
                _
              $region119: #{cifar_convnet_forward.3} parent=109 // loop_header
                %s1596 = sphi 0, %s1598
                %p1597 = scmp.ge.s32.totalorder %s1596, %s1589
                %s1601 = sphi 0, %s1608
                %s1602 = sphi %s1592, %s1611
                %s1603 = sphi %s1594, %s1612
              $region120: #{cifar_convnet_forward.3} parent=109 // loop_header_branch
                %1600 = sbr.rel (%p1597) target = $region124
              $region121: #{cifar_convnet_forward.3} parent=109 // loop_body
                %v1604 = vld [vmem:[%s1602] sm:%s1538]
                %1605 = vst [vmem:[%s1603] sm:%s1538] %v1604
                %s1606 = sadd.s32 1, %s1601
                %p1607 = scmp.ge.s32.totalorder %s1606, %s1589
                %s1608 = scalar_select %p1607, 0, %s1606
                %s1609 = smul.u32 %s1608, 4
                %s1610 = smul.u32 %s1608, 4
                %s1611 = scalar_lea.vmem %s1592, %s1609 [#allocation3]
                %s1612 = scalar_lea.vmem %s1594, %s1610
              $region122: #{cifar_convnet_forward.3} parent=109 // loop_footer
                %s1598 = sadd.s32 %s1596, 1
              $region123: #{cifar_convnet_forward.3} parent=109 // loop_footer_branch
                %1595 = sbr.rel target = $region119
              $region124: #{cifar_convnet_forward.3} parent=109 // loop_exit
                _
            $region110: #{cifar_convnet_forward.3} parent=101 // pred_fallthru
              _
          $region102: #{cifar_convnet_forward.3} parent=97 // pred_fallthru
            _
          %1691 = vnop
        $region98: #{cifar_convnet_forward.3} parent=89 // pred_fallthru
          _
      $region90: #{cifar_convnet_forward.3} parent=5 // pred_fallthru
        _
      %p1692 = scmp.le.s32.totalorder 2, %s9
      // Predicated region
      $region143: #{cifar_convnet_forward.3} parent=5 // pred_check
        %p1693 = pneg %p1692
      $region144: #{cifar_convnet_forward.3} parent=5 // pred_check_branch
        %1695 = sbr.rel (%p1693) target = $region146
      $region145: #{cifar_convnet_forward.3} parent=5 // pred_region
        %s1696 = ssub.s32 %s9, 2
        // Predicated region
        $region147: #{cifar_convnet_forward.3} parent=145 // pred_check
          %p1697 = pneg %p106
        $region148: #{cifar_convnet_forward.3} parent=145 // pred_check_branch
          %1699 = sbr.rel (%p1697) target = $region150
        $region149: #{cifar_convnet_forward.3} parent=145 // pred_region
          %s1700 = sand.u32 %s91, 1
          %s1701 = sand.u32 %s91, 1
          %s1702 = smul.addr %s1701, 64
          %s1703 = scalar_lea.vmem [#allocation3], %s1702
        $region150: #{cifar_convnet_forward.3} parent=145 // pred_fallthru
          _
      $region146: #{cifar_convnet_forward.3} parent=5 // pred_fallthru
        _
    $region6: #{cifar_convnet_forward.3} parent=1 // loop_footer
      %s13 = sadd.s32 1, %s9
    $region7: #{cifar_convnet_forward.3} parent=1 // loop_footer_branch
      %8 = sbr.rel target = $region3
    $region8: #{cifar_convnet_forward.3} parent=1 // loop_exit
      _

// kernel: cifar_convnet_forward.4
$region0: #{cifar_convnet_forward.4}
  #allocation0 [shape = 'u32[]', space=smem, size = 0x4, offset = 0x4, fixed_abs, tag = 'smem constant byte address 0x4 - core index']
  #allocation1 [shape = 'u32[144,128]{1,0:T(1,128)}', space=vmem, size = 0x12000, scoped, tag = 'internal scratch']
  %s0 = inlined_call_operand.vmem [shape: bf16[4,50,250], index: 0, kind: input, shape index: {}]
  %s1 = inlined_call_operand.vmem [shape: bf16[250,128], index: 1, kind: input, shape index: {}]
  %s2 = inlined_call_operand.vmem [shape: f32[1,128], index: 2, kind: input, shape index: {}]
  %s3 = inlined_call_operand.vmem [shape: bf16[50,128], index: 3, kind: output, shape index: {}]
  %s4 = sld [smem:[#allocation0]]
  $region97: #{cifar_convnet_forward.4} parent=0
    _
  %s6 = ssub.s32 1, %s4
  %s7 = scalar_select 0, %s6, %s4
  $region1: #{cifar_convnet_forward.4} parent=0
    #allocation2 [shape = 'u8[131072]{0}', space=vmem, size = 0x20000, scoped, tag = 'input window, operand 0, single buffered']
    #allocation3 [shape = 'u8[16384]{0}', space=vmem, size = 0x4000, scoped, tag = 'output window, operand 0, single buffered']
    // Predicated region
    $region2: #{cifar_convnet_forward.4} parent=1 // pred_check
      _
    $region3: #{cifar_convnet_forward.4} parent=1 // pred_check_branch
      %9 = sbr.rel (0) target = $region5
    $region4: #{cifar_convnet_forward.4} parent=1 // pred_region
      // Predicated region
      $region6: #{cifar_convnet_forward.4} parent=4 // pred_check
        _
      $region7: #{cifar_convnet_forward.4} parent=4 // pred_check_branch
        %11 = sbr.rel (0) target = $region9
      $region8: #{cifar_convnet_forward.4} parent=4 // pred_region
        // Predicated region
        $region10: #{cifar_convnet_forward.4} parent=8 // pred_check
          _
        $region11: #{cifar_convnet_forward.4} parent=8 // pred_check_branch
          %13 = sbr.rel (0) target = $region13
        $region12: #{cifar_convnet_forward.4} parent=8 // pred_region
          // Predicated region
          $region25: #{cifar_convnet_forward.4} parent=12 // pred_check
            _
          $region26: #{cifar_convnet_forward.4} parent=12 // pred_check_branch
            %83 = sbr.rel (0) target = $region28
          $region27: #{cifar_convnet_forward.4} parent=12 // pred_region
            loop: start=0, step=1, limit=1
            $region29: #{cifar_convnet_forward.4} parent=27 // loop_pre_header
              _
            $region30: #{cifar_convnet_forward.4} parent=27 // loop_header
              %s85 = sphi 0, %s89
              %p86 = scmp.ge.s32.totalorder %s85, 1
              %s90 = sphi %s0, %s0
              %s91 = sphi [#allocation2], [#allocation2]
            $region31: #{cifar_convnet_forward.4} parent=27 // loop_header_branch
              %88 = sbr.rel (%p86) target = $region35
            $region32: #{cifar_convnet_forward.4} parent=27 // loop_body
              %v92 = vld [vmem:[%s90] sm:$0xff]
              %93 = vst [vmem:[%s91] sm:$0xff] %v92
              %v94 = vld [vmem:[%s90 + $0x8] sm:$0xff]
              %95 = vst [vmem:[%s91 + $0x8] sm:$0xff] %v94
              %v96 = vld [vmem:[%s90 + $0x10] sm:$0xff]
              %97 = vst [vmem:[%s91 + $0x10] sm:$0xff] %v96
              %v98 = vld [vmem:[%s90 + $0x18] sm:$0xff]
              %99 = vst [vmem:[%s91 + $0x18] sm:$0xff] %v98
              %v100 = vld [vmem:[%s90 + $0x20] sm:$0xff]
              %101 = vst [vmem:[%s91 + $0x20] sm:$0xff] %v100
              %v102 = vld [vmem:[%s90 + $0x28] sm:$0xff]
              %103 = vst [vmem:[%s91 + $0x28] sm:$0xff] %v102
              %v104 = vld [vmem:[%s90 + $0x30] sm:$0xff]
              %105 = vst [vmem:[%s91 + $0x30] sm:$0xff] %v104
              %v106 = vld [vmem:[%s90 + $0x38] sm:$0xff]
              %107 = vst [vmem:[%s91 + $0x40] sm:$0xff] %v106
              %v108 = vld [vmem:[%s90 + $0x40] sm:$0xff]
              %109 = vst [vmem:[%s91 + $0x48] sm:$0xff] %v108
              %v110 = vld [vmem:[%s90 + $0x48] sm:$0xff]
              %111 = vst [vmem:[%s91 + $0x50] sm:$0xff] %v110
              %v112 = vld [vmem:[%s90 + $0x50] sm:$0xff]
              %113 = vst [vmem:[%s91 + $0x58] sm:$0xff] %v112
              %v114 = vld [vmem:[%s90 + $0x58] sm:$0xff]
              %115 = vst [vmem:[%s91 + $0x60] sm:$0xff] %v114
              %v116 = vld [vmem:[%s90 + $0x60] sm:$0xff]
              %117 = vst [vmem:[%s91 + $0x68] sm:$0xff] %v116
              %v118 = vld [vmem:[%s90 + $0x68] sm:$0xff]
              %119 = vst [vmem:[%s91 + $0x70] sm:$0xff] %v118
              %v120 = vld [vmem:[%s90 + $0x70] sm:$0xff]
              %121 = vst [vmem:[%s91 + $0x80] sm:$0xff] %v120
              %v122 = vld [vmem:[%s90 + $0x78] sm:$0xff]
              %123 = vst [vmem:[%s91 + $0x88] sm:$0xff] %v122
              %v124 = vld [vmem:[%s90 + $0x80] sm:$0xff]
              %125 = vst [vmem:[%s91 + $0x90] sm:$0xff] %v124
              %v126 = vld [vmem:[%s90 + $0x88] sm:$0xff]
              %127 = vst [vmem:[%s91 + $0x98] sm:$0xff] %v126
              %v128 = vld [vmem:[%s90 + $0x90] sm:$0xff]
              %129 = vst [vmem:[%s91 + $0xa0] sm:$0xff] %v128
              %v130 = vld [vmem:[%s90 + $0x98] sm:$0xff]
              %131 = vst [vmem:[%s91 + $0xa8] sm:$0xff] %v130
              %v132 = vld [vmem:[%s90 + $0xa0] sm:$0xff]
              %133 = vst [vmem:[%s91 + $0xb0] sm:$0xff] %v132
              %v134 = vld [vmem:[%s90 + $0xa8] sm:$0xff]
              %135 = vst [vmem:[%s91 + $0xc0] sm:$0xff] %v134
              %v136 = vld [vmem:[%s90 + $0xb0] sm:$0xff]
              %137 = vst [vmem:[%s91 + $0xc8] sm:$0xff] %v136
              %v138 = vld [vmem:[%s90 + $0xb8] sm:$0xff]
              %139 = vst [vmem:[%s91 + $0xd0] sm:$0xff] %v138
              %v140 = vld [vmem:[%s90 + $0xc0] sm:$0xff]
              %141 = vst [vmem:[%s91 + $0xd8] sm:$0xff] %v140
              %v142 = vld [vmem:[%s90 + $0xc8] sm:$0xff]
              %143 = vst [vmem:[%s91 + $0xe0] sm:$0xff] %v142
              %v144 = vld [vmem:[%s90 + $0xd0] sm:$0xff]
              %145 = vst [vmem:[%s91 + $0xe8] sm:$0xff] %v144
              %v146 = vld [vmem:[%s90 + $0xd8] sm:$0xff]
              %147 = vst [vmem:[%s91 + $0xf0] sm:$0xff] %v146
            $region33: #{cifar_convnet_forward.4} parent=27 // loop_footer
              %s89 = sadd.s32 1, %s85
            $region34: #{cifar_convnet_forward.4} parent=27 // loop_footer_branch
              %84 = sbr.rel target = $region30
            $region35: #{cifar_convnet_forward.4} parent=27 // loop_exit
              _
          $region28: #{cifar_convnet_forward.4} parent=12 // pred_fallthru
            _
          // Predicated region
          $region36: #{cifar_convnet_forward.4} parent=12 // pred_check
            _
          $region37: #{cifar_convnet_forward.4} parent=12 // pred_check_branch
            %149 = sbr.rel target = $region39
          $region38: #{cifar_convnet_forward.4} parent=12 // pred_region
            _
          $region39: #{cifar_convnet_forward.4} parent=12 // pred_fallthru
            _
        $region13: #{cifar_convnet_forward.4} parent=8 // pred_fallthru
          _
        // Predicated region
        $region14: #{cifar_convnet_forward.4} parent=8 // pred_check
          _
        $region15: #{cifar_convnet_forward.4} parent=8 // pred_check_branch
          %15 = sbr.rel target = $region17
        $region16: #{cifar_convnet_forward.4} parent=8 // pred_region
          %s17 = ssub.s32 256, 1
          loop: start=0, step=1, limit=1
          $region18: #{cifar_convnet_forward.4} parent=16 // loop_pre_header
            _
          $region19: #{cifar_convnet_forward.4} parent=16 // loop_header
            %s19 = sphi 0, %s23
            %p20 = scmp.ge.s32.totalorder %s19, 1
            %s24 = sphi %s0, %s0
            %s25 = sphi [#allocation2], [#allocation2]
          $region20: #{cifar_convnet_forward.4} parent=16 // loop_header_branch
            %22 = sbr.rel (%p20) target = $region24
          $region21: #{cifar_convnet_forward.4} parent=16 // loop_body
            %v26 = vld [vmem:[%s24] sm:%s17]
            %27 = vst [vmem:[%s25] sm:%s17] %v26
            %v28 = vld [vmem:[%s24 + $0x8] sm:%s17]
            %29 = vst [vmem:[%s25 + $0x8] sm:%s17] %v28
            %v30 = vld [vmem:[%s24 + $0x10] sm:%s17]
            %31 = vst [vmem:[%s25 + $0x10] sm:%s17] %v30
            %v32 = vld [vmem:[%s24 + $0x18] sm:%s17]
            %33 = vst [vmem:[%s25 + $0x18] sm:%s17] %v32
            %v34 = vld [vmem:[%s24 + $0x20] sm:%s17]
            %35 = vst [vmem:[%s25 + $0x20] sm:%s17] %v34
            %v36 = vld [vmem:[%s24 + $0x28] sm:%s17]
            %37 = vst [vmem:[%s25 + $0x28] sm:%s17] %v36
            %v38 = vld [vmem:[%s24 + $0x30] sm:%s17]
            %39 = vst [vmem:[%s25 + $0x30] sm:%s17] %v38
            %v40 = vld [vmem:[%s24 + $0x38] sm:%s17]
            %41 = vst [vmem:[%s25 + $0x40] sm:%s17] %v40
            %v42 = vld [vmem:[%s24 + $0x40] sm:%s17]
            %43 = vst [vmem:[%s25 + $0x48] sm:%s17] %v42
            %v44 = vld [vmem:[%s24 + $0x48] sm:%s17]
            %45 = vst [vmem:[%s25 + $0x50] sm:%s17] %v44
            %v46 = vld [vmem:[%s24 + $0x50] sm:%s17]
            %47 = vst [vmem:[%s25 + $0x58] sm:%s17] %v46
            %v48 = vld [vmem:[%s24 + $0x58] sm:%s17]
            %49 = vst [vmem:[%s25 + $0x60] sm:%s17] %v48
            %v50 = vld [vmem:[%s24 + $0x60] sm:%s17]
            %51 = vst [vmem:[%s25 + $0x68] sm:%s17] %v50
            %v52 = vld [vmem:[%s24 + $0x68] sm:%s17]
            %53 = vst [vmem:[%s25 + $0x70] sm:%s17] %v52
            %v54 = vld [vmem:[%s24 + $0x70] sm:%s17]
            %55 = vst [vmem:[%s25 + $0x80] sm:%s17] %v54
            %v56 = vld [vmem:[%s24 + $0x78] sm:%s17]
            %57 = vst [vmem:[%s25 + $0x88] sm:%s17] %v56
            %v58 = vld [vmem:[%s24 + $0x80] sm:%s17]
            %59 = vst [vmem:[%s25 + $0x90] sm:%s17] %v58
            %v60 = vld [vmem:[%s24 + $0x88] sm:%s17]
            %61 = vst [vmem:[%s25 + $0x98] sm:%s17] %v60
            %v62 = vld [vmem:[%s24 + $0x90] sm:%s17]
            %63 = vst [vmem:[%s25 + $0xa0] sm:%s17] %v62
            %v64 = vld [vmem:[%s24 + $0x98] sm:%s17]
            %65 = vst [vmem:[%s25 + $0xa8] sm:%s17] %v64
            %v66 = vld [vmem:[%s24 + $0xa0] sm:%s17]
            %67 = vst [vmem:[%s25 + $0xb0] sm:%s17] %v66
            %v68 = vld [vmem:[%s24 + $0xa8] sm:%s17]
            %69 = vst [vmem:[%s25 + $0xc0] sm:%s17] %v68
            %v70 = vld [vmem:[%s24 + $0xb0] sm:%s17]
            %71 = vst [vmem:[%s25 + $0xc8] sm:%s17] %v70
            %v72 = vld [vmem:[%s24 + $0xb8] sm:%s17]
            %73 = vst [vmem:[%s25 + $0xd0] sm:%s17] %v72
            %v74 = vld [vmem:[%s24 + $0xc0] sm:%s17]
            %75 = vst [vmem:[%s25 + $0xd8] sm:%s17] %v74
            %v76 = vld [vmem:[%s24 + $0xc8] sm:%s17]
            %77 = vst [vmem:[%s25 + $0xe0] sm:%s17] %v76
            %v78 = vld [vmem:[%s24 + $0xd0] sm:%s17]
            %79 = vst [vmem:[%s25 + $0xe8] sm:%s17] %v78
            %v80 = vld [vmem:[%s24 + $0xd8] sm:%s17]
            %81 = vst [vmem:[%s25 + $0xf0] sm:%s17] %v80
          $region22: #{cifar_convnet_forward.4} parent=16 // loop_footer
            %s23 = sadd.s32 1, %s19
          $region23: #{cifar_convnet_forward.4} parent=16 // loop_footer_branch
            %18 = sbr.rel target = $region19
          $region24: #{cifar_convnet_forward.4} parent=16 // loop_exit
            _
        $region17: #{cifar_convnet_forward.4} parent=8 // pred_fallthru
          _
      $region9: #{cifar_convnet_forward.4} parent=4 // pred_fallthru
        _
      %150 = vnop
    $region5: #{cifar_convnet_forward.4} parent=1 // pred_fallthru
      _
    // Predicated region
    $region40: #{cifar_convnet_forward.4} parent=1 // pred_check
      _
    $region41: #{cifar_convnet_forward.4} parent=1 // pred_check_branch
      %152 = sbr.rel (0) target = $region43
    $region42: #{cifar_convnet_forward.4} parent=1 // pred_region
      _
    $region43: #{cifar_convnet_forward.4} parent=1 // pred_fallthru
      _
    // Predicated region
    $region44: #{cifar_convnet_forward.4} parent=1 // pred_check
      _
    $region45: #{cifar_convnet_forward.4} parent=1 // pred_check_branch
      %154 = sbr.rel (0) target = $region47
    $region46: #{cifar_convnet_forward.4} parent=1 // pred_region
      _
    $region47: #{cifar_convnet_forward.4} parent=1 // pred_fallthru
      _
    // Predicated region
    $region48: #{cifar_convnet_forward.4} parent=1 // pred_check
      _
    $region49: #{cifar_convnet_forward.4} parent=1 // pred_check_branch
      %156 = sbr.rel (0) target = $region51
    $region50: #{cifar_convnet_forward.4} parent=1 // pred_region
      _
    $region51: #{cifar_convnet_forward.4} parent=1 // pred_fallthru
      _
    %v158 = vld [vmem:[%s1] sm:$0xf]
    %v159 = vld [vmem:[%s1 + $0x4] sm:$0xf]
    %v160 = vld [vmem:[%s1 + $0x8] sm:$0xf]
    %v161 = vld [vmem:[%s1 + $0xc] sm:$0xf]
    %v162 = vld [vmem:[%s1 + $0x10] sm:$0xf]
    %v163 = vld [vmem:[%s1 + $0x14] sm:$0xf]
    %v164 = vld [vmem:[%s1 + $0x18] sm:$0xf]
    %v165 = vld [vmem:[%s1 + $0x1c] sm:$0xf]
    %v166 = vld [vmem:[%s1 + $0x20] sm:$0xf]
    %v167 = vld [vmem:[%s1 + $0x24] sm:$0xf]
    %v168 = vld [vmem:[%s1 + $0x28] sm:$0xf]
    %v169 = vld [vmem:[%s1 + $0x2c] sm:$0xf]
    %v170 = vld [vmem:[%s1 + $0x30] sm:$0xf]
    %v171 = vld [vmem:[%s1 + $0x34] sm:$0xf]
    %v172 = vld [vmem:[%s1 + $0x38] sm:$0xf]
    %v173 = vld [vmem:[%s1 + $0x3c] sm:$0xf]
    %v174 = vld [vmem:[%s1 + $0x40] sm:$0xf]
    %v175 = vld [vmem:[%s1 + $0x44] sm:$0xf]
    %v176 = vld [vmem:[%s1 + $0x48] sm:$0xf]
    %v177 = vld [vmem:[%s1 + $0x4c] sm:$0xf]
    %v178 = vld [vmem:[%s1 + $0x50] sm:$0xf]
    %v179 = vld [vmem:[%s1 + $0x54] sm:$0xf]
    %v180 = vld [vmem:[%s1 + $0x58] sm:$0xf]
    %v181 = vld [vmem:[%s1 + $0x5c] sm:$0xf]
    %v182 = vld [vmem:[%s1 + $0x60] sm:$0xf]
    %v183 = vld [vmem:[%s1 + $0x64] sm:$0xf]
    %v184 = vld [vmem:[%s1 + $0x68] sm:$0xf]
    %v185 = vld [vmem:[%s1 + $0x6c] sm:$0xf]
    %v186 = vld [vmem:[%s1 + $0x70] sm:$0xf]
    %v187 = vld [vmem:[%s1 + $0x74] sm:$0xf]
    %v188 = vld [vmem:[%s1 + $0x78] sm:$0xf]
    %v189 = vld [vmem:[%s1 + $0x7c] sm:$0x1]
    %v190 = vld [vmem:[#allocation2] sm:$0xff]
    %v191 = vld [vmem:[#allocation2 + $0x8] sm:$0xff]
    %v192 = vld [vmem:[#allocation2 + $0x10] sm:$0xff]
    %v193 = vld [vmem:[#allocation2 + $0x18] sm:$0xff]
    %v194 = vld [vmem:[#allocation2 + $0x20] sm:$0xff]
    %v195 = vld [vmem:[#allocation2 + $0x28] sm:$0xff]
    %v196 = vld [vmem:[#allocation2 + $0x30] sm:$0xff]
    %v197 = vld [vmem:[#allocation2 + $0x38] sm:$0xff]
    %v206 = vunpack.c.l.b16 %v190
    %v207 = vunpack.c.h.b16 %v190
    %v208 = vunpack.c.l.b16 %v191
    %v209 = vunpack.c.h.b16 %v191
    %v210 = vunpack.c.l.b16 %v192
    %v211 = vunpack.c.h.b16 %v192
    %v212 = vunpack.c.l.b16 %v193
    %v213 = vunpack.c.h.b16 %v193
    %v214 = vunpack.c.l.b16 %v194
    %v215 = vunpack.c.h.b16 %v194
    %v216 = vunpack.c.l.b16 %v195
    %v217 = vunpack.c.h.b16 %v195
    %v218 = vunpack.c.l.b16 %v196
    %v219 = vunpack.c.h.b16 %v196
    %v220 = vunpack.c.l.b16 %v197
    %v221 = vunpack.c.h.b16 %v197
    %v222 = vpack.c.b16 %v208, %v206
    %v223 = vpack.c.b16 %v209, %v207
    %v224 = vpack.c.b16 %v212, %v210
    %v225 = vpack.c.b16 %v213, %v211
    %v226 = vpack.c.b16 %v216, %v214
    %v227 = vpack.c.b16 %v217, %v215
    %v228 = vpack.c.b16 %v220, %v218
    %v229 = vpack.c.b16 %v221, %v219
    %v266 = vunpack.c.l.b16 %v158
    %v267 = vunpack.c.l.b16 %v159
    %v268 = vunpack.c.l.b16 %v160
    %v269 = vunpack.c.l.b16 %v161
    %v270 = vunpack.c.l.b16 %v162
    %v271 = vunpack.c.l.b16 %v163
    %v272 = vunpack.c.l.b16 %v164
    %v273 = vunpack.c.l.b16 %v165
    %v274 = vunpack.c.l.b16 %v166
    %v275 = vunpack.c.l.b16 %v167
    %v276 = vunpack.c.l.b16 %v168
    %v277 = vunpack.c.l.b16 %v169
    %v278 = vunpack.c.l.b16 %v170
    %v279 = vunpack.c.l.b16 %v171
    %v280 = vunpack.c.l.b16 %v172
    %v281 = vunpack.c.l.b16 %v173
    %v282 = vunpack.c.l.b16 %v174
    %v283 = vunpack.c.l.b16 %v175
    %v284 = vunpack.c.l.b16 %v176
    %v285 = vunpack.c.l.b16 %v177
    %v286 = vunpack.c.l.b16 %v178
    %v287 = vunpack.c.l.b16 %v179
    %v288 = vunpack.c.l.b16 %v180
    %v289 = vunpack.c.l.b16 %v181
    %v290 = vunpack.c.l.b16 %v182
    %v291 = vunpack.c.l.b16 %v183
    %v292 = vunpack.c.l.b16 %v184
    %v293 = vunpack.c.l.b16 %v185
    %v294 = vunpack.c.l.b16 %v186
    %v295 = vunpack.c.l.b16 %v187
    %v296 = vunpack.c.l.b16 %v188
    %v297 = vunpack.c.l.b16 %v189
    %v298 = vpack.c.b16 %v267, %v266
    %v299 = vpack.c.b16 %v269, %v268
    %v300 = vpack.c.b16 %v271, %v270
    %v301 = vpack.c.b16 %v273, %v272
    %v302 = vpack.c.b16 %v275, %v274
    %v303 = vpack.c.b16 %v277, %v276
    %v304 = vpack.c.b16 %v279, %v278
    %v305 = vpack.c.b16 %v281, %v280
    %v306 = vpack.c.b16 %v283, %v282
    %v307 = vpack.c.b16 %v285, %v284
    %v308 = vpack.c.b16 %v287, %v286
    %v309 = vpack.c.b16 %v289, %v288
    %v310 = vpack.c.b16 %v291, %v290
    %v311 = vpack.c.b16 %v293, %v292
    %v312 = vpack.c.b16 %v295, %v294
    %v313 = vpack.c.b16 %v297, %v296
    %vm329 = vcmask 998400
    %v331 = vsel %vm329, %v223, 0
    %v334 = vsel %vm329, %v225, 0
    %v337 = vsel %vm329, %v227, 0
    %v340 = vsel %vm329, %v229, 0
    %vm342 = vcmask 1044480
    %v344 = vsel %vm342, %v313, 0
    %346 = vmatprep.subr.bf16.mxu0 0
    %347 = vmatpush1.bf16.msra.mxu0 %v305
    %348 = vmatprep.subr.bf16.mxu0 0
    %349 = vmatpush1.bf16.msra.mxu0 %v304
    %350 = vmatprep.subr.bf16.mxu0 0
    %351 = vmatpush1.bf16.msra.mxu0 %v303
    %352 = vmatprep.subr.bf16.mxu0 0
    %353 = vmatpush1.bf16.msra.mxu0 %v302
    %354 = vmatprep.subr.bf16.mxu0 0
    %355 = vmatpush1.bf16.msra.mxu0 %v301
    %356 = vmatprep.subr.bf16.mxu0 0
    %357 = vmatpush1.bf16.msra.mxu0 %v300
    %358 = vmatprep.subr.bf16.mxu0 0
    %359 = vmatpush1.bf16.msra.mxu0 %v299
    %360 = vmatprep.subr.bf16.mxu0 0
    %361 = vmatpush1.bf16.msra.mxu0 %v298
    %362 = vmatprep.subr.bf16.mxu0 0
    %363 = vmatpush2.bf16.msra.mxu0 %v344
    %364 = vmatprep.subr.bf16.mxu0 0
    %365 = vmatpush2.bf16.msra.mxu0 %v312
    %366 = vmatprep.subr.bf16.mxu0 0
    %367 = vmatpush2.bf16.msra.mxu0 %v311
    %368 = vmatprep.subr.bf16.mxu0 0
    %369 = vmatpush2.bf16.msra.mxu0 %v310
    %370 = vmatprep.subr.bf16.mxu0 0
    %371 = vmatpush2.bf16.msra.mxu0 %v309
    %372 = vmatprep.subr.bf16.mxu0 0
    %373 = vmatpush2.bf16.msra.mxu0 %v308
    %374 = vmatprep.subr.bf16.mxu0 0
    %375 = vmatpush2.bf16.msra.mxu0 %v307
    %376 = vmatprep.subr.bf16.mxu0 0
    %377 = vmatpush2.bf16.msra.mxu0 %v306
    %378 = vmatprep.mubr.bf16.mxu0 %v331
    %379 = vmatmul.mubr.bf16.gmra.mxu0 %v222
    %v380 = vpop.f32.mrf.mxu0
    %v381 = vadd.f32 0.0, %v380
    %v382 = vpop.f32.mrf.mxu0
    %v383 = vpop.f32.mrf.mxu0
    %v384 = vadd.f32 0.0, %v383
    %v385 = vpop.f32.mrf.mxu0
    %386 = vmatprep.mubr.bf16.mxu0 %v334
    %387 = vmatmul.mubr.bf16.gmra.mxu0 %v224
    %v388 = vpop.f32.mrf.mxu0
    %v389 = vadd.f32 0.0, %v388
    %v390 = vpop.f32.mrf.mxu0
    %v391 = vpop.f32.mrf.mxu0
    %v392 = vadd.f32 0.0, %v391
    %v393 = vpop.f32.mrf.mxu0
    %394 = vmatprep.mubr.bf16.mxu0 %v337
    %395 = vmatmul.mubr.bf16.gmra.mxu0 %v226
    %v396 = vpop.f32.mrf.mxu0
    %v397 = vadd.f32 0.0, %v396
    %v398 = vpop.f32.mrf.mxu0
    %v399 = vpop.f32.mrf.mxu0
    %v400 = vadd.f32 0.0, %v399
    %v401 = vpop.f32.mrf.mxu0
    %402 = vmatprep.mubr.bf16.mxu0 %v340
    %403 = vmatmul.mubr.bf16.gmra.mxu0 %v228
    %v404 = vpop.f32.mrf.mxu0
    %v405 = vadd.f32 0.0, %v404
    %v406 = vpop.f32.mrf.mxu0
    %v407 = vpop.f32.mrf.mxu0
    %v408 = vadd.f32 0.0, %v407
    %v409 = vpop.f32.mrf.mxu0
    %410 = vdwg.mxu0
    %s411 = scalar_lea.vmem [#allocation2], 64
    %v412 = vld [vmem:[%s411] sm:$0xff]
    %v413 = vld [vmem:[%s411 + $0x8] sm:$0xff]
    %v414 = vld [vmem:[%s411 + $0x10] sm:$0xff]
    %v415 = vld [vmem:[%s411 + $0x18] sm:$0xff]
    %v416 = vld [vmem:[%s411 + $0x20] sm:$0xff]
    %v417 = vld [vmem:[%s411 + $0x28] sm:$0xff]
    %v418 = vld [vmem:[%s411 + $0x30] sm:$0xff]
    %v419 = vld [vmem:[%s411 + $0x38] sm:$0xff]
    %v428 = vunpack.c.l.b16 %v412
    %v429 = vunpack.c.h.b16 %v412
    %v430 = vunpack.c.l.b16 %v413
    %v431 = vunpack.c.h.b16 %v413
    %v432 = vunpack.c.l.b16 %v414
    %v433 = vunpack.c.h.b16 %v414
    %v434 = vunpack.c.l.b16 %v415
    %v435 = vunpack.c.h.b16 %v415
    %v436 = vunpack.c.l.b16 %v416
    %v437 = vunpack.c.h.b16 %v416
    %v438 = vunpack.c.l.b16 %v417
    %v439 = vunpack.c.h.b16 %v417
    %v440 = vunpack.c.l.b16 %v418
    %v441 = vunpack.c.h.b16 %v418
    %v442 = vunpack.c.l.b16 %v419
    %v443 = vunpack.c.h.b16 %v419
    %v444 = vpack.c.b16 %v430, %v428
    %v445 = vpack.c.b16 %v431, %v429
    %v446 = vpack.c.b16 %v434, %v432
    %v447 = vpack.c.b16 %v435, %v433
    %v448 = vpack.c.b16 %v438, %v436
    %v449 = vpack.c.b16 %v439, %v437
    %v450 = vpack.c.b16 %v442, %v440
    %v451 = vpack.c.b16 %v443, %v441
    %v457 = vsel %vm329, %v445, 0
    %v460 = vsel %vm329, %v447, 0
    %v463 = vsel %vm329, %v449, 0
    %v466 = vsel %vm329, %v451, 0
    %468 = vmatprep.subr.bf16.mxu0 0
    %469 = vmatpush1.bf16.msra.mxu0 %v305
    %470 = vmatprep.subr.bf16.mxu0 0
    %471 = vmatpush1.bf16.msra.mxu0 %v304
    %472 = vmatprep.subr.bf16.mxu0 0
    %473 = vmatpush1.bf16.msra.mxu0 %v303
    %474 = vmatprep.subr.bf16.mxu0 0
    %475 = vmatpush1.bf16.msra.mxu0 %v302
    %476 = vmatprep.subr.bf16.mxu0 0
    %477 = vmatpush1.bf16.msra.mxu0 %v301
    %478 = vmatprep.subr.bf16.mxu0 0
    %479 = vmatpush1.bf16.msra.mxu0 %v300
    %480 = vmatprep.subr.bf16.mxu0 0
    %481 = vmatpush1.bf16.msra.mxu0 %v299
    %482 = vmatprep.subr.bf16.mxu0 0
    %483 = vmatpush1.bf16.msra.mxu0 %v298
    %484 = vmatprep.subr.bf16.mxu0 0
    %485 = vmatpush2.bf16.msra.mxu0 %v344
    %486 = vmatprep.subr.bf16.mxu0 0
    %487 = vmatpush2.bf16.msra.mxu0 %v312
    %488 = vmatprep.subr.bf16.mxu0 0
    %489 = vmatpush2.bf16.msra.mxu0 %v311
    %490 = vmatprep.subr.bf16.mxu0 0
    %491 = vmatpush2.bf16.msra.mxu0 %v310
    %492 = vmatprep.subr.bf16.mxu0 0
    %493 = vmatpush2.bf16.msra.mxu0 %v309
    %494 = vmatprep.subr.bf16.mxu0 0
    %495 = vmatpush2.bf16.msra.mxu0 %v308
    %496 = vmatprep.subr.bf16.mxu0 0
    %497 = vmatpush2.bf16.msra.mxu0 %v307
    %498 = vmatprep.subr.bf16.mxu0 0
    %499 = vmatpush2.bf16.msra.mxu0 %v306
    %500 = vmatprep.mubr.bf16.mxu0 %v457
    %501 = vmatmul.mubr.bf16.gmra.mxu0 %v444
    %v502 = vpop.f32.mrf.mxu0
    %v503 = vadd.f32 0.0, %v502
    %v504 = vpop.f32.mrf.mxu0
    %v505 = vpop.f32.mrf.mxu0
    %v506 = vadd.f32 0.0, %v505
    %v507 = vpop.f32.mrf.mxu0
    %508 = vmatprep.mubr.bf16.mxu0 %v460
    %509 = vmatmul.mubr.bf16.gmra.mxu0 %v446
    %v510 = vpop.f32.mrf.mxu0
    %v511 = vadd.f32 0.0, %v510
    %v512 = vpop.f32.mrf.mxu0
    %v513 = vpop.f32.mrf.mxu0
    %v514 = vadd.f32 0.0, %v513
    %v515 = vpop.f32.mrf.mxu0
    %516 = vmatprep.mubr.bf16.mxu0 %v463
    %517 = vmatmul.mubr.bf16.gmra.mxu0 %v448
    %v518 = vpop.f32.mrf.mxu0
    %v519 = vadd.f32 0.0, %v518
    %v520 = vpop.f32.mrf.mxu0
    %v521 = vpop.f32.mrf.mxu0
    %v522 = vadd.f32 0.0, %v521
    %v523 = vpop.f32.mrf.mxu0
    %524 = vmatprep.mubr.bf16.mxu0 %v466
    %525 = vmatmul.mubr.bf16.gmra.mxu0 %v450
    %v526 = vpop.f32.mrf.mxu0
    %v527 = vadd.f32 0.0, %v526
    %v528 = vpop.f32.mrf.mxu0
    %v529 = vpop.f32.mrf.mxu0
    %v530 = vadd.f32 0.0, %v529
    %v531 = vpop.f32.mrf.mxu0
    %532 = vdwg.mxu0
    %v533 = vmax.f32 %v381, %v503
    %v534 = vmax.f32 %v384, %v506
    %v535 = vmax.f32 %v389, %v511
    %v536 = vmax.f32 %v392, %v514
    %v537 = vmax.f32 %v397, %v519
    %v538 = vmax.f32 %v400, %v522
    %v539 = vmax.f32 %v405, %v527
    %v540 = vmax.f32 %v408, %v530
    %s541 = scalar_lea.vmem [#allocation2], 128
    %v542 = vld [vmem:[%s541] sm:$0xff]
    %v543 = vld [vmem:[%s541 + $0x8] sm:$0xff]
    %v544 = vld [vmem:[%s541 + $0x10] sm:$0xff]
    %v545 = vld [vmem:[%s541 + $0x18] sm:$0xff]
    %v546 = vld [vmem:[%s541 + $0x20] sm:$0xff]
    %v547 = vld [vmem:[%s541 + $0x28] sm:$0xff]
    %v548 = vld [vmem:[%s541 + $0x30] sm:$0xff]
    %v549 = vld [vmem:[%s541 + $0x38] sm:$0xff]
    %v558 = vunpack.c.l.b16 %v542
    %v559 = vunpack.c.h.b16 %v542
    %v560 = vunpack.c.l.b16 %v543
    %v561 = vunpack.c.h.b16 %v543
    %v562 = vunpack.c.l.b16 %v544
    %v563 = vunpack.c.h.b16 %v544
    %v564 = vunpack.c.l.b16 %v545
    %v565 = vunpack.c.h.b16 %v545
    %v566 = vunpack.c.l.b16 %v546
    %v567 = vunpack.c.h.b16 %v546
    %v568 = vunpack.c.l.b16 %v547
    %v569 = vunpack.c.h.b16 %v547
    %v570 = vunpack.c.l.b16 %v548
    %v571 = vunpack.c.h.b16 %v548
    %v572 = vunpack.c.l.b16 %v549
    %v573 = vunpack.c.h.b16 %v549
    %v574 = vpack.c.b16 %v560, %v558
    %v575 = vpack.c.b16 %v561, %v559
    %v576 = vpack.c.b16 %v564, %v562
    %v577 = vpack.c.b16 %v565, %v563
    %v578 = vpack.c.b16 %v568, %v566
    %v579 = vpack.c.b16 %v569, %v567
    %v580 = vpack.c.b16 %v572, %v570
    %v581 = vpack.c.b16 %v573, %v571
    %v587 = vsel %vm329, %v575, 0
    %v590 = vsel %vm329, %v577, 0
    %v593 = vsel %vm329, %v579, 0
    %v596 = vsel %vm329, %v581, 0
    %598 = vmatprep.subr.bf16.mxu0 0
    %599 = vmatpush1.bf16.msra.mxu0 %v305
    %600 = vmatprep.subr.bf16.mxu0 0
    %601 = vmatpush1.bf16.msra.mxu0 %v304
    %602 = vmatprep.subr.bf16.mxu0 0
    %603 = vmatpush1.bf16.msra.mxu0 %v303
    %604 = vmatprep.subr.bf16.mxu0 0
    %605 = vmatpush1.bf16.msra.mxu0 %v302
    %606 = vmatprep.subr.bf16.mxu0 0
    %607 = vmatpush1.bf16.msra.mxu0 %v301
    %608 = vmatprep.subr.bf16.mxu0 0
    %609 = vmatpush1.bf16.msra.mxu0 %v300
    %610 = vmatprep.subr.bf16.mxu0 0
    %611 = vmatpush1.bf16.msra.mxu0 %v299
    %612 = vmatprep.subr.bf16.mxu0 0
    %613 = vmatpush1.bf16.msra.mxu0 %v298
    %614 = vmatprep.subr.bf16.mxu0 0
    %615 = vmatpush2.bf16.msra.mxu0 %v344
    %616 = vmatprep.subr.bf16.mxu0 0
    %617 = vmatpush2.bf16.msra.mxu0 %v312
    %618 = vmatprep.subr.bf16.mxu0 0
    %619 = vmatpush2.bf16.msra.mxu0 %v311
    %620 = vmatprep.subr.bf16.mxu0 0
    %621 = vmatpush2.bf16.msra.mxu0 %v310
    %622 = vmatprep.subr.bf16.mxu0 0
    %623 = vmatpush2.bf16.msra.mxu0 %v309
    %624 = vmatprep.subr.bf16.mxu0 0
    %625 = vmatpush2.bf16.msra.mxu0 %v308
    %626 = vmatprep.subr.bf16.mxu0 0
    %627 = vmatpush2.bf16.msra.mxu0 %v307
    %628 = vmatprep.subr.bf16.mxu0 0
    %629 = vmatpush2.bf16.msra.mxu0 %v306
    %630 = vmatprep.mubr.bf16.mxu0 %v587
    %631 = vmatmul.mubr.bf16.gmra.mxu0 %v574
    %v632 = vpop.f32.mrf.mxu0
    %v633 = vadd.f32 0.0, %v632
    %v634 = vpop.f32.mrf.mxu0
    %v635 = vpop.f32.mrf.mxu0
    %v636 = vadd.f32 0.0, %v635
    %v637 = vpop.f32.mrf.mxu0
    %638 = vmatprep.mubr.bf16.mxu0 %v590
    %639 = vmatmul.mubr.bf16.gmra.mxu0 %v576
    %v640 = vpop.f32.mrf.mxu0
    %v641 = vadd.f32 0.0, %v640
    %v642 = vpop.f32.mrf.mxu0
    %v643 = vpop.f32.mrf.mxu0
    %v644 = vadd.f32 0.0, %v643
    %v645 = vpop.f32.mrf.mxu0
    %646 = vmatprep.mubr.bf16.mxu0 %v593
    %647 = vmatmul.mubr.bf16.gmra.mxu0 %v578
    %v648 = vpop.f32.mrf.mxu0
    %v649 = vadd.f32 0.0, %v648
    %v650 = vpop.f32.mrf.mxu0
    %v651 = vpop.f32.mrf.mxu0
    %v652 = vadd.f32 0.0, %v651
    %v653 = vpop.f32.mrf.mxu0
    %654 = vmatprep.mubr.bf16.mxu0 %v596
    %655 = vmatmul.mubr.bf16.gmra.mxu0 %v580
    %v656 = vpop.f32.mrf.mxu0
    %v657 = vadd.f32 0.0, %v656
    %v658 = vpop.f32.mrf.mxu0
    %v659 = vpop.f32.mrf.mxu0
    %v660 = vadd.f32 0.0, %v659
    %v661 = vpop.f32.mrf.mxu0
    %662 = vdwg.mxu0
    %v663 = vmax.f32 %v533, %v633
    %v664 = vmax.f32 %v534, %v636
    %v665 = vmax.f32 %v535, %v641
    %v666 = vmax.f32 %v536, %v644
    %v667 = vmax.f32 %v537, %v649
    %v668 = vmax.f32 %v538, %v652
    %v669 = vmax.f32 %v539, %v657
    %v670 = vmax.f32 %v540, %v660
    %s671 = scalar_lea.vmem [#allocation2], 192
    %v672 = vld [vmem:[%s671] sm:$0xff]
    %v673 = vld [vmem:[%s671 + $0x8] sm:$0xff]
    %v674 = vld [vmem:[%s671 + $0x10] sm:$0xff]
    %v675 = vld [vmem:[%s671 + $0x18] sm:$0xff]
    %v676 = vld [vmem:[%s671 + $0x20] sm:$0xff]
    %v677 = vld [vmem:[%s671 + $0x28] sm:$0xff]
    %v678 = vld [vmem:[%s671 + $0x30] sm:$0xff]
    %v679 = vld [vmem:[%s671 + $0x38] sm:$0xff]
    %v688 = vunpack.c.l.b16 %v672
    %v689 = vunpack.c.h.b16 %v672
    %v690 = vunpack.c.l.b16 %v673
    %v691 = vunpack.c.h.b16 %v673
    %v692 = vunpack.c.l.b16 %v674
    %v693 = vunpack.c.h.b16 %v674
    %v694 = vunpack.c.l.b16 %v675
    %v695 = vunpack.c.h.b16 %v675
    %v696 = vunpack.c.l.b16 %v676
    %v697 = vunpack.c.h.b16 %v676
    %v698 = vunpack.c.l.b16 %v677
    %v699 = vunpack.c.h.b16 %v677
    %v700 = vunpack.c.l.b16 %v678
    %v701 = vunpack.c.h.b16 %v678
    %v702 = vunpack.c.l.b16 %v679
    %v703 = vunpack.c.h.b16 %v679
    %v704 = vpack.c.b16 %v690, %v688
    %v705 = vpack.c.b16 %v691, %v689
    %v706 = vpack.c.b16 %v694, %v692
    %v707 = vpack.c.b16 %v695, %v693
    %v708 = vpack.c.b16 %v698, %v696
    %v709 = vpack.c.b16 %v699, %v697
    %v710 = vpack.c.b16 %v702, %v700
    %v711 = vpack.c.b16 %v703, %v701
    %v717 = vsel %vm329, %v705, 0
    %v720 = vsel %vm329, %v707, 0
    %v723 = vsel %vm329, %v709, 0
    %v726 = vsel %vm329, %v711, 0
    %728 = vmatprep.subr.bf16.mxu0 0
    %729 = vmatpush1.bf16.msra.mxu0 %v305
    %730 = vmatprep.subr.bf16.mxu0 0
    %731 = vmatpush1.bf16.msra.mxu0 %v304
    %732 = vmatprep.subr.bf16.mxu0 0
    %733 = vmatpush1.bf16.msra.mxu0 %v303
    %734 = vmatprep.subr.bf16.mxu0 0
    %735 = vmatpush1.bf16.msra.mxu0 %v302
    %736 = vmatprep.subr.bf16.mxu0 0
    %737 = vmatpush1.bf16.msra.mxu0 %v301
    %738 = vmatprep.subr.bf16.mxu0 0
    %739 = vmatpush1.bf16.msra.mxu0 %v300
    %740 = vmatprep.subr.bf16.mxu0 0
    %741 = vmatpush1.bf16.msra.mxu0 %v299
    %742 = vmatprep.subr.bf16.mxu0 0
    %743 = vmatpush1.bf16.msra.mxu0 %v298
    %744 = vmatprep.subr.bf16.mxu0 0
    %745 = vmatpush2.bf16.msra.mxu0 %v344
    %746 = vmatprep.subr.bf16.mxu0 0
    %747 = vmatpush2.bf16.msra.mxu0 %v312
    %748 = vmatprep.subr.bf16.mxu0 0
    %749 = vmatpush2.bf16.msra.mxu0 %v311
    %750 = vmatprep.subr.bf16.mxu0 0
    %751 = vmatpush2.bf16.msra.mxu0 %v310
    %752 = vmatprep.subr.bf16.mxu0 0
    %753 = vmatpush2.bf16.msra.mxu0 %v309
    %754 = vmatprep.subr.bf16.mxu0 0
    %755 = vmatpush2.bf16.msra.mxu0 %v308
    %756 = vmatprep.subr.bf16.mxu0 0
    %757 = vmatpush2.bf16.msra.mxu0 %v307
    %758 = vmatprep.subr.bf16.mxu0 0
    %759 = vmatpush2.bf16.msra.mxu0 %v306
    %760 = vmatprep.mubr.bf16.mxu0 %v717
    %761 = vmatmul.mubr.bf16.gmra.mxu0 %v704
    %v762 = vpop.f32.mrf.mxu0
    %v763 = vadd.f32 0.0, %v762
    %v764 = vpop.f32.mrf.mxu0
    %v765 = vpop.f32.mrf.mxu0
    %v766 = vadd.f32 0.0, %v765
    %v767 = vpop.f32.mrf.mxu0
    %768 = vmatprep.mubr.bf16.mxu0 %v720
    %769 = vmatmul.mubr.bf16.gmra.mxu0 %v706
    %v770 = vpop.f32.mrf.mxu0
    %v771 = vadd.f32 0.0, %v770
    %v772 = vpop.f32.mrf.mxu0
    %v773 = vpop.f32.mrf.mxu0
    %v774 = vadd.f32 0.0, %v773
    %v775 = vpop.f32.mrf.mxu0
    %776 = vmatprep.mubr.bf16.mxu0 %v723
    %777 = vmatmul.mubr.bf16.gmra.mxu0 %v708
    %v778 = vpop.f32.mrf.mxu0
    %v779 = vadd.f32 0.0, %v778
    %v780 = vpop.f32.mrf.mxu0
    %v781 = vpop.f32.mrf.mxu0
    %v782 = vadd.f32 0.0, %v781
    %v783 = vpop.f32.mrf.mxu0
    %784 = vmatprep.mubr.bf16.mxu0 %v726
    %785 = vmatmul.mubr.bf16.gmra.mxu0 %v710
    %v786 = vpop.f32.mrf.mxu0
    %v787 = vadd.f32 0.0, %v786
    %v788 = vpop.f32.mrf.mxu0
    %v789 = vpop.f32.mrf.mxu0
    %v790 = vadd.f32 0.0, %v789
    %v791 = vpop.f32.mrf.mxu0
    %792 = vdwg.mxu0
    %v793 = vmax.f32 %v663, %v763
    %v794 = vmax.f32 %v664, %v766
    %v795 = vmax.f32 %v665, %v771
    %v796 = vmax.f32 %v666, %v774
    %v797 = vmax.f32 %v667, %v779
    %v798 = vmax.f32 %v668, %v782
    %v799 = vmax.f32 %v669, %v787
    %v800 = vmax.f32 %v670, %v790
    %v801 = vld [vmem:[%s2] sm:$0x1]
    %v803 = vlaneseq
    %v804 = vshrl.u32 %v803, 7
    %v805 = vsub.s32 0, %v804
    %v806 = vrot.slane %v801, %v805
    %v808 = vadd.f32 %v793, %v806
    %v809 = vadd.f32 %v794, %v806
    %v810 = vadd.f32 %v795, %v806
    %v811 = vadd.f32 %v796, %v806
    %v812 = vadd.f32 %v797, %v806
    %v813 = vadd.f32 %v798, %v806
    %v814 = vadd.f32 %v799, %v806
    %v815 = vadd.f32 %v800, %v806
    %v816 = vmax.f32 %v808, 0.0
    %v817 = vmax.f32 %v809, 0.0
    %v818 = vmax.f32 %v810, 0.0
    %v819 = vmax.f32 %v811, 0.0
    %v820 = vmax.f32 %v812, 0.0
    %v821 = vmax.f32 %v813, 0.0
    %v822 = vmax.f32 %v814, 0.0
    %v823 = vmax.f32 %v815, 0.0
    %v824 = vpack.c.bf16 %v817, %v816
    %v825 = vpack.c.bf16 %v819, %v818
    %v826 = vpack.c.bf16 %v821, %v820
    %v827 = vpack.c.bf16 %v823, %v822
    %v832 = vunpack.c.l.b16 %v824
    %v833 = vunpack.c.h.b16 %v824
    %v834 = vunpack.c.l.b16 %v825
    %v835 = vunpack.c.h.b16 %v825
    %v836 = vunpack.c.l.b16 %v826
    %v837 = vunpack.c.h.b16 %v826
    %v838 = vunpack.c.l.b16 %v827
    %v839 = vunpack.c.h.b16 %v827
    %v840 = vpack.c.b16 %v832, %v832
    %v841 = vpack.c.b16 %v833, %v833
    %v842 = vpack.c.b16 %v834, %v834
    %v843 = vpack.c.b16 %v835, %v835
    %v844 = vpack.c.b16 %v836, %v836
    %v845 = vpack.c.b16 %v837, %v837
    %v846 = vpack.c.b16 %v838, %v838
    %v847 = vpack.c.b16 %v839, %v839
    %856 = vst [vmem:[#allocation3] sm:$0xf] %v840
    %857 = vst [vmem:[#allocation3 + $0x4] sm:$0xf] %v841
    %858 = vst [vmem:[#allocation3 + $0x8] sm:$0xf] %v842
    %859 = vst [vmem:[#allocation3 + $0xc] sm:$0xf] %v843
    %860 = vst [vmem:[#allocation3 + $0x10] sm:$0xf] %v844
    %861 = vst [vmem:[#allocation3 + $0x14] sm:$0xf] %v845
    %862 = vst [vmem:[#allocation3 + $0x18] sm:$0xf] %v846
    %863 = vst [vmem:[#allocation3 + $0x1c] sm:$0xf] %v847
    // Predicated region
    $region52: #{cifar_convnet_forward.4} parent=1 // pred_check
      _
    $region53: #{cifar_convnet_forward.4} parent=1 // pred_check_branch
      %865 = sbr.rel (0) target = $region55
    $region54: #{cifar_convnet_forward.4} parent=1 // pred_region
      // Predicated region
      $region56: #{cifar_convnet_forward.4} parent=54 // pred_check
        _
      $region57: #{cifar_convnet_forward.4} parent=54 // pred_check_branch
        %867 = sbr.rel (0) target = $region59
      $region58: #{cifar_convnet_forward.4} parent=54 // pred_region
        // Predicated region
        $region60: #{cifar_convnet_forward.4} parent=58 // pred_check
          _
        $region61: #{cifar_convnet_forward.4} parent=58 // pred_check_branch
          %869 = sbr.rel target = $region63
        $region62: #{cifar_convnet_forward.4} parent=58 // pred_region
          // Predicated region
          $region75: #{cifar_convnet_forward.4} parent=62 // pred_check
            _
          $region76: #{cifar_convnet_forward.4} parent=62 // pred_check_branch
            %897 = sbr.rel (0) target = $region78
          $region77: #{cifar_convnet_forward.4} parent=62 // pred_region
            loop: start=0, step=1, limit=1
            $region79: #{cifar_convnet_forward.4} parent=77 // loop_pre_header
              _
            $region80: #{cifar_convnet_forward.4} parent=77 // loop_header
              %s899 = sphi 0, %s903
              %p900 = scmp.ge.s32.totalorder %s899, 1
              %s904 = sphi [#allocation3], [#allocation3]
              %s905 = sphi %s3, %s3
            $region81: #{cifar_convnet_forward.4} parent=77 // loop_header_branch
              %902 = sbr.rel (%p900) target = $region85
            $region82: #{cifar_convnet_forward.4} parent=77 // loop_body
              _
            $region83: #{cifar_convnet_forward.4} parent=77 // loop_footer
              %s903 = sadd.s32 1, %s899
            $region84: #{cifar_convnet_forward.4} parent=77 // loop_footer_branch
              %898 = sbr.rel target = $region80
            $region85: #{cifar_convnet_forward.4} parent=77 // loop_exit
              _
            %s907 = ssub.s32 16, 1
            loop: start=0, step=1, limit=1
            $region86: #{cifar_convnet_forward.4} parent=77 // loop_pre_header
              _
            $region87: #{cifar_convnet_forward.4} parent=77 // loop_header
              %s909 = sphi 0, %s913
              %p910 = scmp.ge.s32.totalorder %s909, 1
              %s914 = sphi [#allocation3], [#allocation3]
              %s915 = sphi %s3, %s3
            $region88: #{cifar_convnet_forward.4} parent=77 // loop_header_branch
              %912 = sbr.rel (%p910) target = $region92
            $region89: #{cifar_convnet_forward.4} parent=77 // loop_body
              %v916 = vld [vmem:[%s914] sm:%s907]
              %917 = vst [vmem:[%s915] sm:%s907] %v916
              %v918 = vld [vmem:[%s914 + $0x4] sm:%s907]
              %919 = vst [vmem:[%s915 + $0x4] sm:%s907] %v918
              %v920 = vld [vmem:[%s914 + $0x8] sm:%s907]
              %921 = vst [vmem:[%s915 + $0x8] sm:%s907] %v920
              %v922 = vld [vmem:[%s914 + $0xc] sm:%s907]
              %923 = vst [vmem:[%s915 + $0xc] sm:%s907] %v922
              %v924 = vld [vmem:[%s914 + $0x10] sm:%s907]
              %925 = vst [vmem:[%s915 + $0x10] sm:%s907] %v924
              %v926 = vld [vmem:[%s914 + $0x14] sm:%s907]
              %927 = vst [vmem:[%s915 + $0x14] sm:%s907] %v926
              %v928 = vld [vmem:[%s914 + $0x18] sm:%s907]
              %929 = vst [vmem:[%s915 + $0x18] sm:%s907] %v928
            $region90: #{cifar_convnet_forward.4} parent=77 // loop_footer
              %s913 = sadd.s32 1, %s909
            $region91: #{cifar_convnet_forward.4} parent=77 // loop_footer_branch
              %908 = sbr.rel target = $region87
            $region92: #{cifar_convnet_forward.4} parent=77 // loop_exit
              _
          $region78: #{cifar_convnet_forward.4} parent=62 // pred_fallthru
            _
        $region63: #{cifar_convnet_forward.4} parent=58 // pred_fallthru
          _
        // Predicated region
        $region64: #{cifar_convnet_forward.4} parent=58 // pred_check
          _
        $region65: #{cifar_convnet_forward.4} parent=58 // pred_check_branch
          %871 = sbr.rel (0) target = $region67
        $region66: #{cifar_convnet_forward.4} parent=58 // pred_region
          %s873 = ssub.s32 16, 1
          loop: start=0, step=1, limit=1
          $region68: #{cifar_convnet_forward.4} parent=66 // loop_pre_header
            _
          $region69: #{cifar_convnet_forward.4} parent=66 // loop_header
            %s875 = sphi 0, %s879
            %p876 = scmp.ge.s32.totalorder %s875, 1
            %s880 = sphi [#allocation3], [#allocation3]
            %s881 = sphi %s3, %s3
          $region70: #{cifar_convnet_forward.4} parent=66 // loop_header_branch
            %878 = sbr.rel (%p876) target = $region74
          $region71: #{cifar_convnet_forward.4} parent=66 // loop_body
            %v882 = vld [vmem:[%s880] sm:%s873]
            %883 = vst [vmem:[%s881] sm:%s873] %v882
            %v884 = vld [vmem:[%s880 + $0x4] sm:%s873]
            %885 = vst [vmem:[%s881 + $0x4] sm:%s873] %v884
            %v886 = vld [vmem:[%s880 + $0x8] sm:%s873]
            %887 = vst [vmem:[%s881 + $0x8] sm:%s873] %v886
            %v888 = vld [vmem:[%s880 + $0xc] sm:%s873]
            %889 = vst [vmem:[%s881 + $0xc] sm:%s873] %v888
            %v890 = vld [vmem:[%s880 + $0x10] sm:%s873]
            %891 = vst [vmem:[%s881 + $0x10] sm:%s873] %v890
            %v892 = vld [vmem:[%s880 + $0x14] sm:%s873]
            %893 = vst [vmem:[%s881 + $0x14] sm:%s873] %v892
            %v894 = vld [vmem:[%s880 + $0x18] sm:%s873]
            %895 = vst [vmem:[%s881 + $0x18] sm:%s873] %v894
          $region72: #{cifar_convnet_forward.4} parent=66 // loop_footer
            %s879 = sadd.s32 1, %s875
          $region73: #{cifar_convnet_forward.4} parent=66 // loop_footer_branch
            %874 = sbr.rel target = $region69
          $region74: #{cifar_convnet_forward.4} parent=66 // loop_exit
            _
        $region67: #{cifar_convnet_forward.4} parent=58 // pred_fallthru
          _
      $region59: #{cifar_convnet_forward.4} parent=54 // pred_fallthru
        _
      %930 = vnop
    $region55: #{cifar_convnet_forward.4} parent=1 // pred_fallthru
      _
    // Predicated region
    $region93: #{cifar_convnet_forward.4} parent=1 // pred_check
      _
    $region94: #{cifar_convnet_forward.4} parent=1 // pred_check_branch
      %932 = sbr.rel (0) target = $region96
    $region95: #{cifar_convnet_forward.4} parent=1 // pred_region
      _
    $region96: #{cifar_convnet_forward.4} parent=1 // pred_fallthru
      _

// kernel: cifar_convnet_forward.5
$region0: #{cifar_convnet_forward.5}
  #allocation0 [shape = 'u32[]', space=smem, size = 0x4, offset = 0x4, fixed_abs, tag = 'smem constant byte address 0x4 - core index']
  #allocation1 [shape = 'u32[144,128]{1,0:T(1,128)}', space=vmem, size = 0x12000, scoped, tag = 'internal scratch']
  %s0 = inlined_call_operand.vmem [shape: bf16[2,500], index: 0, kind: input, shape index: {}]
  %s1 = inlined_call_operand.vmem [shape: bf16[500,128], index: 1, kind: input, shape index: {}]
  %s2 = inlined_call_operand.vmem [shape: f32[1,128], index: 2, kind: input, shape index: {}]
  %s3 = inlined_call_operand.vmem [shape: bf16[128,128], index: 3, kind: input, shape index: {}]
  %s4 = inlined_call_operand.vmem [shape: f32[1,128], index: 4, kind: input, shape index: {}]
  %s5 = inlined_call_operand.hbm [shape: f32[2,128], index: 5, kind: output, shape index: {}]
  %s6 = sld [smem:[#allocation0]]
  $region30: #{cifar_convnet_forward.5} parent=0
    _
  %s8 = ssub.s32 1, %s6
  %s9 = scalar_select 0, %s8, %s6
  $region1: #{cifar_convnet_forward.5} parent=0
    #allocation2 [shape = 'u8[1024]{0}', space=vmem, size = 0x400, scoped, tag = 'output window, operand 0, single buffered']
    #allocation3 [shape = 's32[1]{0}', space=sflag, size = 0x4, scoped, tag = 'scoped memory for cifar_convnet_forward.5']
    %10 = vsyncpa [#allocation3], 0
    // Predicated region
    $region2: #{cifar_convnet_forward.5} parent=1 // pred_check
      _
    $region3: #{cifar_convnet_forward.5} parent=1 // pred_check_branch
      %12 = sbr.rel (0) target = $region5
    $region4: #{cifar_convnet_forward.5} parent=1 // pred_region
      _
    $region5: #{cifar_convnet_forward.5} parent=1 // pred_fallthru
      _
    // Predicated region
    $region6: #{cifar_convnet_forward.5} parent=1 // pred_check
      _
    $region7: #{cifar_convnet_forward.5} parent=1 // pred_check_branch
      %14 = sbr.rel (0) target = $region9
    $region8: #{cifar_convnet_forward.5} parent=1 // pred_region
      _
    $region9: #{cifar_convnet_forward.5} parent=1 // pred_fallthru
      _
    // Predicated region
    $region10: #{cifar_convnet_forward.5} parent=1 // pred_check
      _
    $region11: #{cifar_convnet_forward.5} parent=1 // pred_check_branch
      %16 = sbr.rel (0) target = $region13
    $region12: #{cifar_convnet_forward.5} parent=1 // pred_region
      _
    $region13: #{cifar_convnet_forward.5} parent=1 // pred_fallthru
      _
    // Predicated region
    $region14: #{cifar_convnet_forward.5} parent=1 // pred_check
      _
    $region15: #{cifar_convnet_forward.5} parent=1 // pred_check_branch
      %18 = sbr.rel (0) target = $region17
    $region16: #{cifar_convnet_forward.5} parent=1 // pred_region
      _
    $region17: #{cifar_convnet_forward.5} parent=1 // pred_fallthru
      _
    // Predicated region
    $region18: #{cifar_convnet_forward.5} parent=1 // pred_check
      _
    $region19: #{cifar_convnet_forward.5} parent=1 // pred_check_branch
      %20 = sbr.rel (0) target = $region21
    $region20: #{cifar_convnet_forward.5} parent=1 // pred_region
      _
    $region21: #{cifar_convnet_forward.5} parent=1 // pred_fallthru
      _
    %v22 = vld [vmem:[%s0] sm:$0xf]
    %v23 = vld [vmem:[%s1] sm:$0xf]
    %v24 = vld [vmem:[%s1 + $0x4] sm:$0xf]
    %v25 = vld [vmem:[%s1 + $0x8] sm:$0xf]
    %v26 = vld [vmem:[%s1 + $0xc] sm:$0xf]
    %v27 = vld [vmem:[%s1 + $0x10] sm:$0xf]
    %v28 = vld [vmem:[%s1 + $0x14] sm:$0xf]
    %v29 = vld [vmem:[%s1 + $0x18] sm:$0xf]
    %v30 = vld [vmem:[%s1 + $0x1c] sm:$0xf]
    %v31 = vld [vmem:[%s1 + $0x20] sm:$0xf]
    %v32 = vld [vmem:[%s1 + $0x24] sm:$0xf]
    %v33 = vld [vmem:[%s1 + $0x28] sm:$0xf]
    %v34 = vld [vmem:[%s1 + $0x2c] sm:$0xf]
    %v35 = vld [vmem:[%s1 + $0x30] sm:$0xf]
    %v36 = vld [vmem:[%s1 + $0x34] sm:$0xf]
    %v37 = vld [vmem:[%s1 + $0x38] sm:$0xf]
    %v38 = vld [vmem:[%s1 + $0x3c] sm:$0xf]
    %v39 = vld [vmem:[%s1 + $0x40] sm:$0xf]
    %v40 = vld [vmem:[%s1 + $0x44] sm:$0xf]
    %v41 = vld [vmem:[%s1 + $0x48] sm:$0xf]
    %v42 = vld [vmem:[%s1 + $0x4c] sm:$0xf]
    %v43 = vld [vmem:[%s1 + $0x50] sm:$0xf]
    %v44 = vld [vmem:[%s1 + $0x54] sm:$0xf]
    %v45 = vld [vmem:[%s1 + $0x58] sm:$0xf]
    %v46 = vld [vmem:[%s1 + $0x5c] sm:$0xf]
    %v47 = vld [vmem:[%s1 + $0x60] sm:$0xf]
    %v48 = vld [vmem:[%s1 + $0x64] sm:$0xf]
    %v49 = vld [vmem:[%s1 + $0x68] sm:$0xf]
    %v50 = vld [vmem:[%s1 + $0x6c] sm:$0xf]
    %v51 = vld [vmem:[%s1 + $0x70] sm:$0xf]
    %v52 = vld [vmem:[%s1 + $0x74] sm:$0xf]
    %v53 = vld [vmem:[%s1 + $0x78] sm:$0xf]
    %v54 = vld [vmem:[%s1 + $0x7c] sm:$0xf]
    %v55 = vld [vmem:[%s1 + $0x80] sm:$0xf]
    %v56 = vld [vmem:[%s1 + $0x84] sm:$0xf]
    %v57 = vld [vmem:[%s1 + $0x88] sm:$0xf]
    %v58 = vld [vmem:[%s1 + $0x8c] sm:$0xf]
    %v59 = vld [vmem:[%s1 + $0x90] sm:$0xf]
    %v60 = vld [vmem:[%s1 + $0x94] sm:$0xf]
    %v61 = vld [vmem:[%s1 + $0x98] sm:$0xf]
    %v62 = vld [vmem:[%s1 + $0x9c] sm:$0xf]
    %v63 = vld [vmem:[%s1 + $0xa0] sm:$0xf]
    %v64 = vld [vmem:[%s1 + $0xa4] sm:$0xf]
    %v65 = vld [vmem:[%s1 + $0xa8] sm:$0xf]
    %v66 = vld [vmem:[%s1 + $0xac] sm:$0xf]
    %v67 = vld [vmem:[%s1 + $0xb0] sm:$0xf]
    %v68 = vld [vmem:[%s1 + $0xb4] sm:$0xf]
    %v69 = vld [vmem:[%s1 + $0xb8] sm:$0xf]
    %v70 = vld [vmem:[%s1 + $0xbc] sm:$0xf]
    %v71 = vld [vmem:[%s1 + $0xc0] sm:$0xf]
    %v72 = vld [vmem:[%s1 + $0xc4] sm:$0xf]
    %v73 = vld [vmem:[%s1 + $0xc8] sm:$0xf]
    %v74 = vld [vmem:[%s1 + $0xcc] sm:$0xf]
    %v75 = vld [vmem:[%s1 + $0xd0] sm:$0xf]
    %v76 = vld [vmem:[%s1 + $0xd4] sm:$0xf]
    %v77 = vld [vmem:[%s1 + $0xd8] sm:$0xf]
    %v78 = vld [vmem:[%s1 + $0xdc] sm:$0xf]
    %v79 = vld [vmem:[%s1 + $0xe0] sm:$0xf]
    %v80 = vld [vmem:[%s1 + $0xe4] sm:$0xf]
    %v81 = vld [vmem:[%s1 + $0xe8] sm:$0xf]
    %v82 = vld [vmem:[%s1 + $0xec] sm:$0xf]
    %v83 = vld [vmem:[%s1 + $0xf0] sm:$0xf]
    %v84 = vld [vmem:[%s1 + $0xf4] sm:$0xf]
    %v85 = vld [vmem:[%s1 + $0xf8] sm:$0x3]
    %v86 = vld [vmem:[%s2] sm:$0x1]
    %v88 = vlaneseq
    %v89 = vshrl.u32 %v88, 7
    %v90 = vsub.s32 0, %v89
    %v91 = vrot.slane %v86, %v90
    %v95 = vunpack.c.l.s4 1966171168
    %v96 = vunpack.c.0.s8 %v95
    %v97 = vlaneseq
    %v98 = vshrl.u32 %v97, 7
    %v99 = vsub.s32 %v96, %v98
    %v100 = vrot.slane %v22, %v99
    %v101 = vcombine.high %v100, %v100
    %v103 = vunpack.c.l.s4 1966171168
    %v104 = vunpack.c.0.s8 %v103
    %v105 = vlaneseq
    %v106 = vshrl.u32 %v105, 7
    %v107 = vsub.s32 %v104, %v106
    %v108 = vrot.slane %v100, %v107
    %v110 = vunpack.c.l.s4 1966171168
    %v111 = vunpack.c.0.s8 %v110
    %v112 = vlaneseq
    %v113 = vshrl.u32 %v112, 7
    %v114 = vsub.s32 %v111, %v113
    %v115 = vrot.slane %v101, %v114
    %v116 = vcombine.high %v108, %v108
    %v117 = vcombine.high %v115, %v115
    %v184 = vunpack.c.l.b16 %v23
    %v185 = vunpack.c.l.b16 %v24
    %v186 = vunpack.c.l.b16 %v25
    %v187 = vunpack.c.l.b16 %v26
    %v188 = vunpack.c.l.b16 %v27
    %v189 = vunpack.c.l.b16 %v28
    %v190 = vunpack.c.l.b16 %v29
    %v191 = vunpack.c.l.b16 %v30
    %v192 = vunpack.c.l.b16 %v31
    %v193 = vunpack.c.l.b16 %v32
    %v194 = vunpack.c.l.b16 %v33
    %v195 = vunpack.c.l.b16 %v34
    %v196 = vunpack.c.l.b16 %v35
    %v197 = vunpack.c.l.b16 %v36
    %v198 = vunpack.c.l.b16 %v37
    %v199 = vunpack.c.l.b16 %v38
    %v200 = vunpack.c.l.b16 %v39
    %v201 = vunpack.c.l.b16 %v40
    %v202 = vunpack.c.l.b16 %v41
    %v203 = vunpack.c.l.b16 %v42
    %v204 = vunpack.c.l.b16 %v43
    %v205 = vunpack.c.l.b16 %v44
    %v206 = vunpack.c.l.b16 %v45
    %v207 = vunpack.c.l.b16 %v46
    %v208 = vunpack.c.l.b16 %v47
    %v209 = vunpack.c.l.b16 %v48
    %v210 = vunpack.c.l.b16 %v49
    %v211 = vunpack.c.l.b16 %v50
    %v212 = vunpack.c.l.b16 %v51
    %v213 = vunpack.c.l.b16 %v52
    %v214 = vunpack.c.l.b16 %v53
    %v215 = vunpack.c.l.b16 %v54
    %v216 = vunpack.c.l.b16 %v55
    %v217 = vunpack.c.l.b16 %v56
    %v218 = vunpack.c.l.b16 %v57
    %v219 = vunpack.c.l.b16 %v58
    %v220 = vunpack.c.l.b16 %v59
    %v221 = vunpack.c.l.b16 %v60
    %v222 = vunpack.c.l.b16 %v61
    %v223 = vunpack.c.l.b16 %v62
    %v224 = vunpack.c.l.b16 %v63
    %v225 = vunpack.c.l.b16 %v64
    %v226 = vunpack.c.l.b16 %v65
    %v227 = vunpack.c.l.b16 %v66
    %v228 = vunpack.c.l.b16 %v67
    %v229 = vunpack.c.l.b16 %v68
    %v230 = vunpack.c.l.b16 %v69
    %v231 = vunpack.c.l.b16 %v70
    %v232 = vunpack.c.l.b16 %v71
    %v233 = vunpack.c.l.b16 %v72
    %v234 = vunpack.c.l.b16 %v73
    %v235 = vunpack.c.l.b16 %v74
    %v236 = vunpack.c.l.b16 %v75
    %v237 = vunpack.c.l.b16 %v76
    %v238 = vunpack.c.l.b16 %v77
    %v239 = vunpack.c.l.b16 %v78
    %v240 = vunpack.c.l.b16 %v79
    %v241 = vunpack.c.l.b16 %v80
    %v242 = vunpack.c.l.b16 %v81
    %v243 = vunpack.c.l.b16 %v82
    %v244 = vunpack.c.l.b16 %v83
    %v245 = vunpack.c.l.b16 %v84
    %v246 = vunpack.c.l.b16 %v85
    %v247 = vpack.c.b16 %v185, %v184
    %v248 = vpack.c.b16 %v187, %v186
    %v249 = vpack.c.b16 %v189, %v188
    %v250 = vpack.c.b16 %v191, %v190
    %v251 = vpack.c.b16 %v193, %v192
    %v252 = vpack.c.b16 %v195, %v194
    %v253 = vpack.c.b16 %v197, %v196
    %v254 = vpack.c.b16 %v199, %v198
    %v255 = vpack.c.b16 %v201, %v200
    %v256 = vpack.c.b16 %v203, %v202
    %v257 = vpack.c.b16 %v205, %v204
    %v258 = vpack.c.b16 %v207, %v206
    %v259 = vpack.c.b16 %v209, %v208
    %v260 = vpack.c.b16 %v211, %v210
    %v261 = vpack.c.b16 %v213, %v212
    %v262 = vpack.c.b16 %v215, %v214
    %v263 = vpack.c.b16 %v217, %v216
    %v264 = vpack.c.b16 %v219, %v218
    %v265 = vpack.c.b16 %v221, %v220
    %v266 = vpack.c.b16 %v223, %v222
    %v267 = vpack.c.b16 %v225, %v224
    %v268 = vpack.c.b16 %v227, %v226
    %v269 = vpack.c.b16 %v229, %v228
    %v270 = vpack.c.b16 %v231, %v230
    %v271 = vpack.c.b16 %v233, %v232
    %v272 = vpack.c.b16 %v235, %v234
    %v273 = vpack.c.b16 %v237, %v236
    %v274 = vpack.c.b16 %v239, %v238
    %v275 = vpack.c.b16 %v241, %v240
    %v276 = vpack.c.b16 %v243, %v242
    %v277 = vpack.c.b16 %v245, %v244
    %v278 = vpack.c.b16 %v246, %v246
    %vm310 = vcmask 949248
    %v312 = vsel %vm310, %v117, 0
    %vm314 = vcmask 1041408
    %v316 = vsel %vm314, %v278, 0
    %318 = vmatprep.subr.bf16.mxu0 0
    %319 = vmatpush1.bf16.msra.mxu0 %v254
    %320 = vmatprep.subr.bf16.mxu0 0
    %321 = vmatpush1.bf16.msra.mxu0 %v253
    %322 = vmatprep.subr.bf16.mxu0 0
    %323 = vmatpush1.bf16.msra.mxu0 %v252
    %324 = vmatprep.subr.bf16.mxu0 0
    %325 = vmatpush1.bf16.msra.mxu0 %v251
    %326 = vmatprep.subr.bf16.mxu0 0
    %327 = vmatpush1.bf16.msra.mxu0 %v250
    %328 = vmatprep.subr.bf16.mxu0 0
    %329 = vmatpush1.bf16.msra.mxu0 %v249
    %330 = vmatprep.subr.bf16.mxu0 0
    %331 = vmatpush1.bf16.msra.mxu0 %v248
    %332 = vmatprep.subr.bf16.mxu0 0
    %333 = vmatpush1.bf16.msra.mxu0 %v247
    %334 = vmatprep.subr.bf16.mxu0 0
    %335 = vmatpush2.bf16.msra.mxu0 %v262
    %336 = vmatprep.subr.bf16.mxu0 0
    %337 = vmatpush2.bf16.msra.mxu0 %v261
    %338 = vmatprep.subr.bf16.mxu0 0
    %339 = vmatpush2.bf16.msra.mxu0 %v260
    %340 = vmatprep.subr.bf16.mxu0 0
    %341 = vmatpush2.bf16.msra.mxu0 %v259
    %342 = vmatprep.subr.bf16.mxu0 0
    %343 = vmatpush2.bf16.msra.mxu0 %v258
    %344 = vmatprep.subr.bf16.mxu0 0
    %345 = vmatpush2.bf16.msra.mxu0 %v257
    %346 = vmatprep.subr.bf16.mxu0 0
    %347 = vmatpush2.bf16.msra.mxu0 %v256
    %348 = vmatprep.subr.bf16.mxu0 0
    %349 = vmatpush2.bf16.msra.mxu0 %v255
    %350 = vmatprep.mubr.bf16.mxu0 %v115
    %351 = vmatmul.mubr.bf16.gmra.mxu0 %v108
    %v352 = vpop.f32.mrf.mxu0
    %v353 = vadd.f32 %v91, %v352
    %v354 = vpop.f32.mrf.mxu0
    %v355 = vpop.f32.mrf.mxu0
    %v356 = vpop.f32.mrf.mxu0
    %357 = vdwg.mxu0
    %358 = vmatprep.subr.bf16.mxu0 0
    %359 = vmatpush1.bf16.msra.mxu0 %v270
    %360 = vmatprep.subr.bf16.mxu0 0
    %361 = vmatpush1.bf16.msra.mxu0 %v269
    %362 = vmatprep.subr.bf16.mxu0 0
    %363 = vmatpush1.bf16.msra.mxu0 %v268
    %364 = vmatprep.subr.bf16.mxu0 0
    %365 = vmatpush1.bf16.msra.mxu0 %v267
    %366 = vmatprep.subr.bf16.mxu0 0
    %367 = vmatpush1.bf16.msra.mxu0 %v266
    %368 = vmatprep.subr.bf16.mxu0 0
    %369 = vmatpush1.bf16.msra.mxu0 %v265
    %370 = vmatprep.subr.bf16.mxu0 0
    %371 = vmatpush1.bf16.msra.mxu0 %v264
    %372 = vmatprep.subr.bf16.mxu0 0
    %373 = vmatpush1.bf16.msra.mxu0 %v263
    %374 = vmatprep.subr.bf16.mxu0 0
    %375 = vmatpush2.bf16.msra.mxu0 %v316
    %376 = vmatprep.subr.bf16.mxu0 0
    %377 = vmatpush2.bf16.msra.mxu0 %v277
    %378 = vmatprep.subr.bf16.mxu0 0
    %379 = vmatpush2.bf16.msra.mxu0 %v276
    %380 = vmatprep.subr.bf16.mxu0 0
    %381 = vmatpush2.bf16.msra.mxu0 %v275
    %382 = vmatprep.subr.bf16.mxu0 0
    %383 = vmatpush2.bf16.msra.mxu0 %v274
    %384 = vmatprep.subr.bf16.mxu0 0
    %385 = vmatpush2.bf16.msra.mxu0 %v273
    %386 = vmatprep.subr.bf16.mxu0 0
    %387 = vmatpush2.bf16.msra.mxu0 %v272
    %388 = vmatprep.subr.bf16.mxu0 0
    %389 = vmatpush2.bf16.msra.mxu0 %v271
    %390 = vmatprep.mubr.bf16.mxu0 %v312
    %391 = vmatmul.mubr.bf16.gmra.mxu0 %v116
    %v392 = vpop.f32.mrf.mxu0
    %v393 = vadd.f32 %v353, %v392
    %v394 = vpop.f32.mrf.mxu0
    %v395 = vpop.f32.mrf.mxu0
    %v396 = vpop.f32.mrf.mxu0
    %397 = vdwg.mxu0
    %v398 = vmax.f32 %v393, 0.0
    %v399 = vpack.c.bf16 %v398, %v398
    %v400 = vld [vmem:[%s3] sm:$0xf]
    %v401 = vld [vmem:[%s3 + $0x4] sm:$0xf]
    %v402 = vld [vmem:[%s3 + $0x8] sm:$0xf]
    %v403 = vld [vmem:[%s3 + $0xc] sm:$0xf]
    %v404 = vld [vmem:[%s3 + $0x10] sm:$0xf]
    %v405 = vld [vmem:[%s3 + $0x14] sm:$0xf]
    %v406 = vld [vmem:[%s3 + $0x18] sm:$0xf]
    %v407 = vld [vmem:[%s3 + $0x1c] sm:$0xf]
    %v408 = vld [vmem:[%s3 + $0x20] sm:$0xf]
    %v409 = vld [vmem:[%s3 + $0x24] sm:$0xf]
    %v410 = vld [vmem:[%s3 + $0x28] sm:$0xf]
    %v411 = vld [vmem:[%s3 + $0x2c] sm:$0xf]
    %v412 = vld [vmem:[%s3 + $0x30] sm:$0xf]
    %v413 = vld [vmem:[%s3 + $0x34] sm:$0xf]
    %v414 = vld [vmem:[%s3 + $0x38] sm:$0xf]
    %v415 = vld [vmem:[%s3 + $0x3c] sm:$0xf]
    %v416 = vld [vmem:[%s4] sm:$0x1]
    %v418 = vlaneseq
    %v419 = vshrl.u32 %v418, 7
    %v420 = vsub.s32 0, %v419
    %v421 = vrot.slane %v416, %v420
    %v439 = vunpack.c.l.b16 %v400
    %v440 = vunpack.c.l.b16 %v401
    %v441 = vunpack.c.l.b16 %v402
    %v442 = vunpack.c.l.b16 %v403
    %v443 = vunpack.c.l.b16 %v404
    %v444 = vunpack.c.l.b16 %v405
    %v445 = vunpack.c.l.b16 %v406
    %v446 = vunpack.c.l.b16 %v407
    %v447 = vunpack.c.l.b16 %v408
    %v448 = vunpack.c.l.b16 %v409
    %v449 = vunpack.c.l.b16 %v410
    %v450 = vunpack.c.l.b16 %v411
    %v451 = vunpack.c.l.b16 %v412
    %v452 = vunpack.c.l.b16 %v413
    %v453 = vunpack.c.l.b16 %v414
    %v454 = vunpack.c.l.b16 %v415
    %v455 = vpack.c.b16 %v440, %v439
    %v456 = vpack.c.b16 %v442, %v441
    %v457 = vpack.c.b16 %v444, %v443
    %v458 = vpack.c.b16 %v446, %v445
    %v459 = vpack.c.b16 %v448, %v447
    %v460 = vpack.c.b16 %v450, %v449
    %v461 = vpack.c.b16 %v452, %v451
    %v462 = vpack.c.b16 %v454, %v453
    %471 = vmatprep.subr.bf16.mxu0 0
    %472 = vmatpush1.bf16.msra.mxu0 %v462
    %473 = vmatprep.subr.bf16.mxu0 0
    %474 = vmatpush1.bf16.msra.mxu0 %v461
    %475 = vmatprep.subr.bf16.mxu0 0
    %476 = vmatpush1.bf16.msra.mxu0 %v460
    %477 = vmatprep.subr.bf16.mxu0 0
    %478 = vmatpush1.bf16.msra.mxu0 %v459
    %479 = vmatprep.subr.bf16.mxu0 0
    %480 = vmatpush1.bf16.msra.mxu0 %v458
    %481 = vmatprep.subr.bf16.mxu0 0
    %482 = vmatpush1.bf16.msra.mxu0 %v457
    %483 = vmatprep.subr.bf16.mxu0 0
    %484 = vmatpush1.bf16.msra.mxu0 %v456
    %485 = vmatprep.subr.bf16.mxu0 0
    %486 = vmatpush1.bf16.msra.mxu0 %v455
    %487 = vmatprep.subr.bf16.mxu0 0
    %488 = vmatpush2.bf16.msra.mxu0 0
    %489 = vmatprep.subr.bf16.mxu0 0
    %490 = vmatpush2.bf16.msra.mxu0 0
    %491 = vmatprep.subr.bf16.mxu0 0
    %492 = vmatpush2.bf16.msra.mxu0 0
    %493 = vmatprep.subr.bf16.mxu0 0
    %494 = vmatpush2.bf16.msra.mxu0 0
    %495 = vmatprep.subr.bf16.mxu0 0
    %496 = vmatpush2.bf16.msra.mxu0 0
    %497 = vmatprep.subr.bf16.mxu0 0
    %498 = vmatpush2.bf16.msra.mxu0 0
    %499 = vmatprep.subr.bf16.mxu0 0
    %500 = vmatpush2.bf16.msra.mxu0 0
    %501 = vmatprep.subr.bf16.mxu0 0
    %502 = vmatpush2.bf16.msra.mxu0 0
    %503 = vmatprep.mubr.bf16.mxu0 0
    %504 = vmatmul.mubr.bf16.gmra.mxu0 %v399
    %v505 = vpop.f32.mrf.mxu0
    %v506 = vadd.f32 %v421, %v505
    %v507 = vpop.f32.mrf.mxu0
    %v508 = vpop.f32.mrf.mxu0
    %v509 = vpop.f32.mrf.mxu0
    %510 = vdwg.mxu0
    %v511 = vsel %vm314, %v506, -inf
    %512 = vmax.xlane.f32.xlu0 %v511
    %v513 = vpop.xlane.xlu0 %512
    %v514 = vsub.f32 %v506, %v513
    %v515 = vmul.f32 %v514, 1.442695
    %v516 = vpow.pop %v515
    %v517 = vsel %vm314, %v516, 0.0
    %518 = vadd.xlane.f32.xlu0 %v517
    %v519 = vpop.xlane.xlu0 %518
    %v520 = vlog2.pop %v519
    %v521 = vmul.f32 %v520, 0.6931472
    %v522 = vsub.f32 %v514, %v521
    %523 = vst [vmem:[#allocation2] sm:$0x3] %v522
    // Predicated region
    $region22: #{cifar_convnet_forward.5} parent=1 // pred_check
      _
    $region23: #{cifar_convnet_forward.5} parent=1 // pred_check_branch
      %525 = sbr.rel (0) target = $region25
    $region24: #{cifar_convnet_forward.5} parent=1 // pred_region
      %s527 = ssub.s32 32, 32
      %528 = vsyncadd [#allocation3], %s527
      %s530 = sshll.u32 [#allocation2], 4
      %s531 = int_to_ptr.vmem [resolvable:$true] %s530
      %533 = dma.vmem_to_hbm [thread:$0]  %s531, 32, %s5, [#allocation3]
    $region25: #{cifar_convnet_forward.5} parent=1 // pred_fallthru
      _
    // Predicated region
    $region26: #{cifar_convnet_forward.5} parent=1 // pred_check
      _
    $region27: #{cifar_convnet_forward.5} parent=1 // pred_check_branch
      %535 = sbr.rel (0) target = $region29
    $region28: #{cifar_convnet_forward.5} parent=1 // pred_region
      %536 = dma.done [#allocation3], 32
    $region29: #{cifar_convnet_forward.5} parent=1 // pred_fallthru
      _
    %537 = vsyncpa [#allocation3], 1

</llo_original>
